<compile_context>
chip_gen: v6e
topology: v6e:2x2x1
jax: 0.10.0
libtpu: 0.0.40
codegen_flags: <defaults>
</compile_context>

<pallas_src>
import math

import jax
import jax.numpy as jnp
from jax.experimental import pallas as pl
from jax.experimental.pallas import tpu as pltpu

F32 = jnp.float32

# ---- small demo configuration (consistent with the module's constructor) ----
B = 2            # batch
S = 16           # sequence length
VOCAB = 50       # embedding vocab (20000 in the original; small for the demo)
EMB = 32         # d_model (emb_dims)
HEADS = 4        # attention heads
HD = EMB // HEADS
FF = 64          # dim_feedforward (hidden)
LAYERS = 1       # num encoder layers
CLASSES = 6
LN_EPS = 1e-5

VMEM_SPEC = pl.BlockSpec(memory_space=pltpu.MemorySpace.VMEM)


def _layer_norm(x, gamma, beta):
    mu = jnp.mean(x, axis=-1, keepdims=True)
    xc = x - mu
    var = jnp.mean(xc * xc, axis=-1, keepdims=True)
    return xc * jax.lax.rsqrt(var + LN_EPS) * gamma + beta


# ---------------------------------------------------------------------------
# Fused kernel: TransformerEncoder (post-norm) + mean/max pool + classifier
# ---------------------------------------------------------------------------
def encoder_kernel(x_ref, wq_ref, wk_ref, wv_ref, bq_ref, bk_ref, bv_ref,
                   wo_ref, bo_ref, g1_ref, be1_ref,
                   w1_ref, b1_ref, w2_ref, b2_ref, g2_ref, be2_ref,
                   wc_ref, bc_ref, o_ref):
    # x_ref: (B*S, E) tokens' embeddings, batch folded into the M dimension.
    h = x_ref[...]                                             # (B*S, E) f32
    scale = 1.0 / math.sqrt(HD)

    for l in range(LAYERS):                                    # static (LAYERS == 1)
        # ---- fused Q/K/V projections (heads fused, M = B*S = 32 rows) ------
        q = jnp.dot(h, wq_ref[l], preferred_element_type=F32) + bq_ref[l]
        k = jnp.dot(h, wk_ref[l], preferred_element_type=F32) + bk_ref[l]
        v = jnp.dot(h, wv_ref[l], preferred_element_type=F32) + bv_ref[l]

        # ---- per-batch, per-head scaled dot-product attention --------------
        # (scores are inherently per-batch; static tiny loops, aligned slices)
        ctx_rows = []
        for b in range(B):
            r0 = b * S
            head_out = []
            for hh in range(HEADS):
                c0 = hh * HD
                qh = q[r0:r0 + S, c0:c0 + HD]                  # (S, HD)
                kh = k[r0:r0 + S, c0:c0 + HD]
                vh = v[r0:r0 + S, c0:c0 + HD]
                s = jax.lax.dot_general(
                    qh, kh, (((1,), (1,)), ((), ())),
                    preferred_element_type=F32) * scale        # (S, S)
                s = s - jnp.max(s, axis=-1, keepdims=True)
                p = jnp.exp(s)
                p = p * pl.reciprocal(
                    jnp.sum(p, axis=-1, keepdims=True), approx=True)
                head_out.append(jnp.dot(p, vh, preferred_element_type=F32))
            ctx_rows.append(jnp.concatenate(head_out, axis=-1))  # (S, E)
        ctx = jnp.concatenate(ctx_rows, axis=0)                  # (B*S, E)

        # ---- out-projection + residual + LayerNorm1 (post-norm) ------------
        attn = jnp.dot(ctx, wo_ref[l], preferred_element_type=F32) + bo_ref[l]
        h = _layer_norm(h + attn, g1_ref[l], be1_ref[l])

        # ---- feed-forward (ReLU) + residual + LayerNorm2 --------------------
        ff = jnp.maximum(
            jnp.dot(h, w1_ref[l], preferred_element_type=F32) + b1_ref[l], 0.0)
        ff = jnp.dot(ff, w2_ref[l], preferred_element_type=F32) + b2_ref[l]
        h = _layer_norm(h + ff, g2_ref[l], be2_ref[l])
        # dropout layers inside the encoder layer are identity in eval mode

    # ---- mean/max pooling over the sequence + linear classifier ------------
    pooled_rows = []
    for b in range(B):
        rows = h[b * S:(b + 1) * S, :]                           # (S, E)
        mean = jnp.sum(rows, axis=0, keepdims=True) * (1.0 / float(S))
        mx = jnp.max(rows, axis=0, keepdims=True)
        pooled_rows.append(jnp.concatenate([mean, mx], axis=-1))  # (1, 2E)
    pooled = jnp.concatenate(pooled_rows, axis=0)                 # (B, 2E)
    logits = (jnp.dot(pooled, wc_ref[...], preferred_element_type=F32)
              + bc_ref[...])                                      # (B, CLASSES)
    o_ref[...] = logits.astype(o_ref.dtype)


def xform_encoder_call(x_flat, params):
    return pl.pallas_call(
        encoder_kernel,
        out_shape=jax.ShapeDtypeStruct((B, CLASSES), F32),
        in_specs=[VMEM_SPEC] * 19,
        out_specs=VMEM_SPEC,
    )(x_flat,
      params["wq"], params["wk"], params["wv"],
      params["bq"], params["bk"], params["bv"],
      params["wo"], params["bo"],
      params["ln1_g"], params["ln1_b"],
      params["w1"], params["b1"], params["w2"], params["b2"],
      params["ln2_g"], params["ln2_b"],
      params["wc"], params["bc"])


# ---------------------------------------------------------------------------
# Parameter init (deterministic, synthetic; weights stored (in, out))
# ---------------------------------------------------------------------------
def init_params(key):
    ks = jax.random.split(key, 16)

    def nrm(k, shape, scale=0.1):
        return scale * jax.random.normal(k, shape, dtype=F32)

    return {
        "emb": nrm(ks[0], (VOCAB, EMB), 1.0),
        # attention projections (torch Linear weights are the (out, in) transpose)
        "wq": nrm(ks[1], (LAYERS, EMB, EMB)),
        "wk": nrm(ks[2], (LAYERS, EMB, EMB)),
        "wv": nrm(ks[3], (LAYERS, EMB, EMB)),
        "bq": nrm(ks[4], (LAYERS, 1, EMB)),
        "bk": nrm(ks[5], (LAYERS, 1, EMB)),
        "bv": nrm(ks[6], (LAYERS, 1, EMB)),
        "wo": nrm(ks[7], (LAYERS, EMB, EMB)),
        "bo": nrm(ks[8], (LAYERS, 1, EMB)),
        "ln1_g": jnp.ones((LAYERS, 1, EMB), F32),
        "ln1_b": jnp.zeros((LAYERS, 1, EMB), F32),
        "w1": nrm(ks[9], (LAYERS, EMB, FF)),
        "b1": nrm(ks[10], (LAYERS, 1, FF)),
        "w2": nrm(ks[11], (LAYERS, FF, EMB)),
        "b2": nrm(ks[12], (LAYERS, 1, EMB)),
        "ln2_g": jnp.ones((LAYERS, 1, EMB), F32),
        "ln2_b": jnp.zeros((LAYERS, 1, EMB), F32),
        "wc": nrm(ks[13], (2 * EMB, CLASSES)),
        "bc": nrm(ks[14], (1, CLASSES)),
    }


def forward(params, tokens, lengths=None):
    del lengths  # accepted but unused, exactly like the PyTorch forward
    # TODO(synk): nn.Embedding gather is done as an XLA take here; a manual DMA
    # gather kernel is not worth it at vocab=50 / EMB=32.
    emb = params["emb"][tokens]                 # (B, S, E)
    x_flat = emb.reshape(B * S, EMB)            # fold batch into the matmul M dim
    return xform_encoder_call(x_flat, params)   # (B, CLASSES)


if __name__ == "__main__":
    key = jax.random.PRNGKey(0)
    pkey, tkey = jax.random.split(key)
    params = init_params(pkey)
    tokens = jax.random.randint(tkey, (B, S), 0, VOCAB, dtype=jnp.int32)
    lengths = jnp.array([S, S - 4], dtype=jnp.int32)   # ignored by the module

    out = forward(params, tokens, lengths)
    out = jax.block_until_ready(out)
    assert out.shape == (B, CLASSES), out.shape
    assert bool(jnp.all(jnp.isfinite(out)))
    print("KERNEL_OK")
</pallas_src>

<mosaic_0001>
module attributes {stable_mosaic.version = 11 : i64} {
  func.func @encoder_kernel(%arg0: memref<32x32xf32, #tpu.memory_space<vmem>>, %arg1: memref<1x32x32xf32, #tpu.memory_space<vmem>>, %arg2: memref<1x32x32xf32, #tpu.memory_space<vmem>>, %arg3: memref<1x32x32xf32, #tpu.memory_space<vmem>>, %arg4: memref<1x1x32xf32, #tpu.memory_space<vmem>>, %arg5: memref<1x1x32xf32, #tpu.memory_space<vmem>>, %arg6: memref<1x1x32xf32, #tpu.memory_space<vmem>>, %arg7: memref<1x32x32xf32, #tpu.memory_space<vmem>>, %arg8: memref<1x1x32xf32, #tpu.memory_space<vmem>>, %arg9: memref<1x1x32xf32, #tpu.memory_space<vmem>>, %arg10: memref<1x1x32xf32, #tpu.memory_space<vmem>>, %arg11: memref<1x32x64xf32, #tpu.memory_space<vmem>>, %arg12: memref<1x1x64xf32, #tpu.memory_space<vmem>>, %arg13: memref<1x64x32xf32, #tpu.memory_space<vmem>>, %arg14: memref<1x1x32xf32, #tpu.memory_space<vmem>>, %arg15: memref<1x1x32xf32, #tpu.memory_space<vmem>>, %arg16: memref<1x1x32xf32, #tpu.memory_space<vmem>>, %arg17: memref<64x6xf32, #tpu.memory_space<vmem>>, %arg18: memref<1x6xf32, #tpu.memory_space<vmem>>, %arg19: memref<2x6xf32, #tpu.memory_space<vmem>>) attributes {dimension_semantics = [], scalar_prefetch = 0 : i64, scratch_operands = 0 : i64, tpu.core_type = #tpu.core_type<tc>} {
    %c0 = arith.constant 0 : index
    %c0_0 = arith.constant 0 : index
    %0 = vector.load %arg0[%c0, %c0_0] : memref<32x32xf32, #tpu.memory_space<vmem>>, vector<32x32xf32>
    %c0_1 = arith.constant 0 : index
    %c0_2 = arith.constant 0 : index
    %c0_3 = arith.constant 0 : index
    %1 = vector.load %arg1[%c0_1, %c0_2, %c0_3] : memref<1x32x32xf32, #tpu.memory_space<vmem>>, vector<1x32x32xf32>
    %2 = vector.shape_cast %1 : vector<1x32x32xf32> to vector<32x32xf32>
    %cst = arith.constant dense<0.000000e+00> : vector<32x32xf32>
    %3 = tpu.matmul %0, %2, %cst {dimension_numbers = #tpu.dot_dimension_numbers<[1], [0], [0], [1], [0, 0, 1, 1], [], []>} : vector<32x32xf32>, vector<32x32xf32>, vector<32x32xf32> -> vector<32x32xf32>
    %c0_4 = arith.constant 0 : index
    %c0_5 = arith.constant 0 : index
    %c0_6 = arith.constant 0 : index
    %4 = vector.load %arg4[%c0_4, %c0_5, %c0_6] : memref<1x1x32xf32, #tpu.memory_space<vmem>>, vector<1x1x32xf32>
    %5 = vector.shape_cast %4 : vector<1x1x32xf32> to vector<1x32xf32>
    %6 = vector.broadcast %5 : vector<1x32xf32> to vector<32x32xf32>
    %7 = arith.addf %3, %6 : vector<32x32xf32>
    %c0_7 = arith.constant 0 : index
    %c0_8 = arith.constant 0 : index
    %c0_9 = arith.constant 0 : index
    %8 = vector.load %arg2[%c0_7, %c0_8, %c0_9] : memref<1x32x32xf32, #tpu.memory_space<vmem>>, vector<1x32x32xf32>
    %9 = vector.shape_cast %8 : vector<1x32x32xf32> to vector<32x32xf32>
    %cst_10 = arith.constant dense<0.000000e+00> : vector<32x32xf32>
    %10 = tpu.matmul %0, %9, %cst_10 {dimension_numbers = #tpu.dot_dimension_numbers<[1], [0], [0], [1], [0, 0, 1, 1], [], []>} : vector<32x32xf32>, vector<32x32xf32>, vector<32x32xf32> -> vector<32x32xf32>
    %c0_11 = arith.constant 0 : index
    %c0_12 = arith.constant 0 : index
    %c0_13 = arith.constant 0 : index
    %11 = vector.load %arg5[%c0_11, %c0_12, %c0_13] : memref<1x1x32xf32, #tpu.memory_space<vmem>>, vector<1x1x32xf32>
    %12 = vector.shape_cast %11 : vector<1x1x32xf32> to vector<1x32xf32>
    %13 = vector.broadcast %12 : vector<1x32xf32> to vector<32x32xf32>
    %14 = arith.addf %10, %13 : vector<32x32xf32>
    %c0_14 = arith.constant 0 : index
    %c0_15 = arith.constant 0 : index
    %c0_16 = arith.constant 0 : index
    %15 = vector.load %arg3[%c0_14, %c0_15, %c0_16] : memref<1x32x32xf32, #tpu.memory_space<vmem>>, vector<1x32x32xf32>
    %16 = vector.shape_cast %15 : vector<1x32x32xf32> to vector<32x32xf32>
    %cst_17 = arith.constant dense<0.000000e+00> : vector<32x32xf32>
    %17 = tpu.matmul %0, %16, %cst_17 {dimension_numbers = #tpu.dot_dimension_numbers<[1], [0], [0], [1], [0, 0, 1, 1], [], []>} : vector<32x32xf32>, vector<32x32xf32>, vector<32x32xf32> -> vector<32x32xf32>
    %c0_18 = arith.constant 0 : index
    %c0_19 = arith.constant 0 : index
    %c0_20 = arith.constant 0 : index
    %18 = vector.load %arg6[%c0_18, %c0_19, %c0_20] : memref<1x1x32xf32, #tpu.memory_space<vmem>>, vector<1x1x32xf32>
    %19 = vector.shape_cast %18 : vector<1x1x32xf32> to vector<1x32xf32>
    %20 = vector.broadcast %19 : vector<1x32xf32> to vector<32x32xf32>
    %21 = arith.addf %17, %20 : vector<32x32xf32>
    %22 = vector.extract_strided_slice %7 {offsets = [0, 0], sizes = [16, 8], strides = [1, 1]} : vector<32x32xf32> to vector<16x8xf32>
    %23 = vector.extract_strided_slice %14 {offsets = [0, 0], sizes = [16, 8], strides = [1, 1]} : vector<32x32xf32> to vector<16x8xf32>
    %24 = vector.extract_strided_slice %21 {offsets = [0, 0], sizes = [16, 8], strides = [1, 1]} : vector<32x32xf32> to vector<16x8xf32>
    %cst_21 = arith.constant dense<0.000000e+00> : vector<16x16xf32>
    %25 = tpu.matmul %22, %23, %cst_21 {dimension_numbers = #tpu.dot_dimension_numbers<[1], [1], [0], [0], [0, 0, 1, 0], [], []>} : vector<16x8xf32>, vector<16x8xf32>, vector<16x16xf32> -> vector<16x16xf32>
    %cst_22 = arith.constant 0.353553385 : f32
    %26 = vector.broadcast %cst_22 : f32 to vector<16x16xf32>
    %27 = arith.mulf %25, %26 : vector<16x16xf32>
    %cst_23 = arith.constant dense<0xFF800000> : vector<16xf32>
    %28 = vector.multi_reduction <maximumf>, %27, %cst_23 [1] : vector<16x16xf32> to vector<16xf32>
    %29 = vector.shape_cast %28 : vector<16xf32> to vector<16x1xf32>
    %30 = vector.broadcast %29 : vector<16x1xf32> to vector<16x16xf32>
    %31 = arith.subf %27, %30 : vector<16x16xf32>
    %32 = math.exp %31 : vector<16x16xf32>
    %cst_24 = arith.constant dense<0.000000e+00> : vector<16xf32>
    %33 = vector.multi_reduction <add>, %32, %cst_24 [1] : vector<16x16xf32> to vector<16xf32>
    %34 = vector.shape_cast %33 : vector<16xf32> to vector<16x1xf32>
    %35 = tpu.reciprocal %34 {approx = true} : vector<16x1xf32> -> vector<16x1xf32>
    %36 = vector.broadcast %35 : vector<16x1xf32> to vector<16x16xf32>
    %37 = arith.mulf %32, %36 : vector<16x16xf32>
    %cst_25 = arith.constant dense<0.000000e+00> : vector<16x8xf32>
    %38 = tpu.matmul %37, %24, %cst_25 {dimension_numbers = #tpu.dot_dimension_numbers<[1], [0], [0], [1], [0, 0, 1, 1], [], []>} : vector<16x16xf32>, vector<16x8xf32>, vector<16x8xf32> -> vector<16x8xf32>
    %39 = vector.extract_strided_slice %7 {offsets = [0, 8], sizes = [16, 8], strides = [1, 1]} : vector<32x32xf32> to vector<16x8xf32>
    %40 = vector.extract_strided_slice %14 {offsets = [0, 8], sizes = [16, 8], strides = [1, 1]} : vector<32x32xf32> to vector<16x8xf32>
    %41 = vector.extract_strided_slice %21 {offsets = [0, 8], sizes = [16, 8], strides = [1, 1]} : vector<32x32xf32> to vector<16x8xf32>
    %cst_26 = arith.constant dense<0.000000e+00> : vector<16x16xf32>
    %42 = tpu.matmul %39, %40, %cst_26 {dimension_numbers = #tpu.dot_dimension_numbers<[1], [1], [0], [0], [0, 0, 1, 0], [], []>} : vector<16x8xf32>, vector<16x8xf32>, vector<16x16xf32> -> vector<16x16xf32>
    %cst_27 = arith.constant 0.353553385 : f32
    %43 = vector.broadcast %cst_27 : f32 to vector<16x16xf32>
    %44 = arith.mulf %42, %43 : vector<16x16xf32>
    %cst_28 = arith.constant dense<0xFF800000> : vector<16xf32>
    %45 = vector.multi_reduction <maximumf>, %44, %cst_28 [1] : vector<16x16xf32> to vector<16xf32>
    %46 = vector.shape_cast %45 : vector<16xf32> to vector<16x1xf32>
    %47 = vector.broadcast %46 : vector<16x1xf32> to vector<16x16xf32>
    %48 = arith.subf %44, %47 : vector<16x16xf32>
    %49 = math.exp %48 : vector<16x16xf32>
    %cst_29 = arith.constant dense<0.000000e+00> : vector<16xf32>
    %50 = vector.multi_reduction <add>, %49, %cst_29 [1] : vector<16x16xf32> to vector<16xf32>
    %51 = vector.shape_cast %50 : vector<16xf32> to vector<16x1xf32>
    %52 = tpu.reciprocal %51 {approx = true} : vector<16x1xf32> -> vector<16x1xf32>
    %53 = vector.broadcast %52 : vector<16x1xf32> to vector<16x16xf32>
    %54 = arith.mulf %49, %53 : vector<16x16xf32>
    %cst_30 = arith.constant dense<0.000000e+00> : vector<16x8xf32>
    %55 = tpu.matmul %54, %41, %cst_30 {dimension_numbers = #tpu.dot_dimension_numbers<[1], [0], [0], [1], [0, 0, 1, 1], [], []>} : vector<16x16xf32>, vector<16x8xf32>, vector<16x8xf32> -> vector<16x8xf32>
    %56 = vector.extract_strided_slice %7 {offsets = [0, 16], sizes = [16, 8], strides = [1, 1]} : vector<32x32xf32> to vector<16x8xf32>
    %57 = vector.extract_strided_slice %14 {offsets = [0, 16], sizes = [16, 8], strides = [1, 1]} : vector<32x32xf32> to vector<16x8xf32>
    %58 = vector.extract_strided_slice %21 {offsets = [0, 16], sizes = [16, 8], strides = [1, 1]} : vector<32x32xf32> to vector<16x8xf32>
    %cst_31 = arith.constant dense<0.000000e+00> : vector<16x16xf32>
    %59 = tpu.matmul %56, %57, %cst_31 {dimension_numbers = #tpu.dot_dimension_numbers<[1], [1], [0], [0], [0, 0, 1, 0], [], []>} : vector<16x8xf32>, vector<16x8xf32>, vector<16x16xf32> -> vector<16x16xf32>
    %cst_32 = arith.constant 0.353553385 : f32
    %60 = vector.broadcast %cst_32 : f32 to vector<16x16xf32>
    %61 = arith.mulf %59, %60 : vector<16x16xf32>
    %cst_33 = arith.constant dense<0xFF800000> : vector<16xf32>
    %62 = vector.multi_reduction <maximumf>, %61, %cst_33 [1] : vector<16x16xf32> to vector<16xf32>
    %63 = vector.shape_cast %62 : vector<16xf32> to vector<16x1xf32>
    %64 = vector.broadcast %63 : vector<16x1xf32> to vector<16x16xf32>
    %65 = arith.subf %61, %64 : vector<16x16xf32>
    %66 = math.exp %65 : vector<16x16xf32>
    %cst_34 = arith.constant dense<0.000000e+00> : vector<16xf32>
    %67 = vector.multi_reduction <add>, %66, %cst_34 [1] : vector<16x16xf32> to vector<16xf32>
    %68 = vector.shape_cast %67 : vector<16xf32> to vector<16x1xf32>
    %69 = tpu.reciprocal %68 {approx = true} : vector<16x1xf32> -> vector<16x1xf32>
    %70 = vector.broadcast %69 : vector<16x1xf32> to vector<16x16xf32>
    %71 = arith.mulf %66, %70 : vector<16x16xf32>
    %cst_35 = arith.constant dense<0.000000e+00> : vector<16x8xf32>
    %72 = tpu.matmul %71, %58, %cst_35 {dimension_numbers = #tpu.dot_dimension_numbers<[1], [0], [0], [1], [0, 0, 1, 1], [], []>} : vector<16x16xf32>, vector<16x8xf32>, vector<16x8xf32> -> vector<16x8xf32>
    %73 = vector.extract_strided_slice %7 {offsets = [0, 24], sizes = [16, 8], strides = [1, 1]} : vector<32x32xf32> to vector<16x8xf32>
    %74 = vector.extract_strided_slice %14 {offsets = [0, 24], sizes = [16, 8], strides = [1, 1]} : vector<32x32xf32> to vector<16x8xf32>
    %75 = vector.extract_strided_slice %21 {offsets = [0, 24], sizes = [16, 8], strides = [1, 1]} : vector<32x32xf32> to vector<16x8xf32>
    %cst_36 = arith.constant dense<0.000000e+00> : vector<16x16xf32>
    %76 = tpu.matmul %73, %74, %cst_36 {dimension_numbers = #tpu.dot_dimension_numbers<[1], [1], [0], [0], [0, 0, 1, 0], [], []>} : vector<16x8xf32>, vector<16x8xf32>, vector<16x16xf32> -> vector<16x16xf32>
    %cst_37 = arith.constant 0.353553385 : f32
    %77 = vector.broadcast %cst_37 : f32 to vector<16x16xf32>
    %78 = arith.mulf %76, %77 : vector<16x16xf32>
    %cst_38 = arith.constant dense<0xFF800000> : vector<16xf32>
    %79 = vector.multi_reduction <maximumf>, %78, %cst_38 [1] : vector<16x16xf32> to vector<16xf32>
    %80 = vector.shape_cast %79 : vector<16xf32> to vector<16x1xf32>
    %81 = vector.broadcast %80 : vector<16x1xf32> to vector<16x16xf32>
    %82 = arith.subf %78, %81 : vector<16x16xf32>
    %83 = math.exp %82 : vector<16x16xf32>
    %cst_39 = arith.constant dense<0.000000e+00> : vector<16xf32>
    %84 = vector.multi_reduction <add>, %83, %cst_39 [1] : vector<16x16xf32> to vector<16xf32>
    %85 = vector.shape_cast %84 : vector<16xf32> to vector<16x1xf32>
    %86 = tpu.reciprocal %85 {approx = true} : vector<16x1xf32> -> vector<16x1xf32>
    %87 = vector.broadcast %86 : vector<16x1xf32> to vector<16x16xf32>
    %88 = arith.mulf %83, %87 : vector<16x16xf32>
    %cst_40 = arith.constant dense<0.000000e+00> : vector<16x8xf32>
    %89 = tpu.matmul %88, %75, %cst_40 {dimension_numbers = #tpu.dot_dimension_numbers<[1], [0], [0], [1], [0, 0, 1, 1], [], []>} : vector<16x16xf32>, vector<16x8xf32>, vector<16x8xf32> -> vector<16x8xf32>
    %90 = tpu.concatenate %38, %55, %72, %89 in 1 : vector<16x8xf32>, vector<16x8xf32>, vector<16x8xf32>, vector<16x8xf32> -> vector<16x32xf32>
    %91 = vector.extract_strided_slice %7 {offsets = [16, 0], sizes = [16, 8], strides = [1, 1]} : vector<32x32xf32> to vector<16x8xf32>
    %92 = vector.extract_strided_slice %14 {offsets = [16, 0], sizes = [16, 8], strides = [1, 1]} : vector<32x32xf32> to vector<16x8xf32>
    %93 = vector.extract_strided_slice %21 {offsets = [16, 0], sizes = [16, 8], strides = [1, 1]} : vector<32x32xf32> to vector<16x8xf32>
    %cst_41 = arith.constant dense<0.000000e+00> : vector<16x16xf32>
    %94 = tpu.matmul %91, %92, %cst_41 {dimension_numbers = #tpu.dot_dimension_numbers<[1], [1], [0], [0], [0, 0, 1, 0], [], []>} : vector<16x8xf32>, vector<16x8xf32>, vector<16x16xf32> -> vector<16x16xf32>
    %cst_42 = arith.constant 0.353553385 : f32
    %95 = vector.broadcast %cst_42 : f32 to vector<16x16xf32>
    %96 = arith.mulf %94, %95 : vector<16x16xf32>
    %cst_43 = arith.constant dense<0xFF800000> : vector<16xf32>
    %97 = vector.multi_reduction <maximumf>, %96, %cst_43 [1] : vector<16x16xf32> to vector<16xf32>
    %98 = vector.shape_cast %97 : vector<16xf32> to vector<16x1xf32>
    %99 = vector.broadcast %98 : vector<16x1xf32> to vector<16x16xf32>
    %100 = arith.subf %96, %99 : vector<16x16xf32>
    %101 = math.exp %100 : vector<16x16xf32>
    %cst_44 = arith.constant dense<0.000000e+00> : vector<16xf32>
    %102 = vector.multi_reduction <add>, %101, %cst_44 [1] : vector<16x16xf32> to vector<16xf32>
    %103 = vector.shape_cast %102 : vector<16xf32> to vector<16x1xf32>
    %104 = tpu.reciprocal %103 {approx = true} : vector<16x1xf32> -> vector<16x1xf32>
    %105 = vector.broadcast %104 : vector<16x1xf32> to vector<16x16xf32>
    %106 = arith.mulf %101, %105 : vector<16x16xf32>
    %cst_45 = arith.constant dense<0.000000e+00> : vector<16x8xf32>
    %107 = tpu.matmul %106, %93, %cst_45 {dimension_numbers = #tpu.dot_dimension_numbers<[1], [0], [0], [1], [0, 0, 1, 1], [], []>} : vector<16x16xf32>, vector<16x8xf32>, vector<16x8xf32> -> vector<16x8xf32>
    %108 = vector.extract_strided_slice %7 {offsets = [16, 8], sizes = [16, 8], strides = [1, 1]} : vector<32x32xf32> to vector<16x8xf32>
    %109 = vector.extract_strided_slice %14 {offsets = [16, 8], sizes = [16, 8], strides = [1, 1]} : vector<32x32xf32> to vector<16x8xf32>
    %110 = vector.extract_strided_slice %21 {offsets = [16, 8], sizes = [16, 8], strides = [1, 1]} : vector<32x32xf32> to vector<16x8xf32>
    %cst_46 = arith.constant dense<0.000000e+00> : vector<16x16xf32>
    %111 = tpu.matmul %108, %109, %cst_46 {dimension_numbers = #tpu.dot_dimension_numbers<[1], [1], [0], [0], [0, 0, 1, 0], [], []>} : vector<16x8xf32>, vector<16x8xf32>, vector<16x16xf32> -> vector<16x16xf32>
    %cst_47 = arith.constant 0.353553385 : f32
    %112 = vector.broadcast %cst_47 : f32 to vector<16x16xf32>
    %113 = arith.mulf %111, %112 : vector<16x16xf32>
    %cst_48 = arith.constant dense<0xFF800000> : vector<16xf32>
    %114 = vector.multi_reduction <maximumf>, %113, %cst_48 [1] : vector<16x16xf32> to vector<16xf32>
    %115 = vector.shape_cast %114 : vector<16xf32> to vector<16x1xf32>
    %116 = vector.broadcast %115 : vector<16x1xf32> to vector<16x16xf32>
    %117 = arith.subf %113, %116 : vector<16x16xf32>
    %118 = math.exp %117 : vector<16x16xf32>
    %cst_49 = arith.constant dense<0.000000e+00> : vector<16xf32>
    %119 = vector.multi_reduction <add>, %118, %cst_49 [1] : vector<16x16xf32> to vector<16xf32>
    %120 = vector.shape_cast %119 : vector<16xf32> to vector<16x1xf32>
    %121 = tpu.reciprocal %120 {approx = true} : vector<16x1xf32> -> vector<16x1xf32>
    %122 = vector.broadcast %121 : vector<16x1xf32> to vector<16x16xf32>
    %123 = arith.mulf %118, %122 : vector<16x16xf32>
    %cst_50 = arith.constant dense<0.000000e+00> : vector<16x8xf32>
    %124 = tpu.matmul %123, %110, %cst_50 {dimension_numbers = #tpu.dot_dimension_numbers<[1], [0], [0], [1], [0, 0, 1, 1], [], []>} : vector<16x16xf32>, vector<16x8xf32>, vector<16x8xf32> -> vector<16x8xf32>
    %125 = vector.extract_strided_slice %7 {offsets = [16, 16], sizes = [16, 8], strides = [1, 1]} : vector<32x32xf32> to vector<16x8xf32>
    %126 = vector.extract_strided_slice %14 {offsets = [16, 16], sizes = [16, 8], strides = [1, 1]} : vector<32x32xf32> to vector<16x8xf32>
    %127 = vector.extract_strided_slice %21 {offsets = [16, 16], sizes = [16, 8], strides = [1, 1]} : vector<32x32xf32> to vector<16x8xf32>
    %cst_51 = arith.constant dense<0.000000e+00> : vector<16x16xf32>
    %128 = tpu.matmul %125, %126, %cst_51 {dimension_numbers = #tpu.dot_dimension_numbers<[1], [1], [0], [0], [0, 0, 1, 0], [], []>} : vector<16x8xf32>, vector<16x8xf32>, vector<16x16xf32> -> vector<16x16xf32>
    %cst_52 = arith.constant 0.353553385 : f32
    %129 = vector.broadcast %cst_52 : f32 to vector<16x16xf32>
    %130 = arith.mulf %128, %129 : vector<16x16xf32>
    %cst_53 = arith.constant dense<0xFF800000> : vector<16xf32>
    %131 = vector.multi_reduction <maximumf>, %130, %cst_53 [1] : vector<16x16xf32> to vector<16xf32>
    %132 = vector.shape_cast %131 : vector<16xf32> to vector<16x1xf32>
    %133 = vector.broadcast %132 : vector<16x1xf32> to vector<16x16xf32>
    %134 = arith.subf %130, %133 : vector<16x16xf32>
    %135 = math.exp %134 : vector<16x16xf32>
    %cst_54 = arith.constant dense<0.000000e+00> : vector<16xf32>
    %136 = vector.multi_reduction <add>, %135, %cst_54 [1] : vector<16x16xf32> to vector<16xf32>
    %137 = vector.shape_cast %136 : vector<16xf32> to vector<16x1xf32>
    %138 = tpu.reciprocal %137 {approx = true} : vector<16x1xf32> -> vector<16x1xf32>
    %139 = vector.broadcast %138 : vector<16x1xf32> to vector<16x16xf32>
    %140 = arith.mulf %135, %139 : vector<16x16xf32>
    %cst_55 = arith.constant dense<0.000000e+00> : vector<16x8xf32>
    %141 = tpu.matmul %140, %127, %cst_55 {dimension_numbers = #tpu.dot_dimension_numbers<[1], [0], [0], [1], [0, 0, 1, 1], [], []>} : vector<16x16xf32>, vector<16x8xf32>, vector<16x8xf32> -> vector<16x8xf32>
    %142 = vector.extract_strided_slice %7 {offsets = [16, 24], sizes = [16, 8], strides = [1, 1]} : vector<32x32xf32> to vector<16x8xf32>
    %143 = vector.extract_strided_slice %14 {offsets = [16, 24], sizes = [16, 8], strides = [1, 1]} : vector<32x32xf32> to vector<16x8xf32>
    %144 = vector.extract_strided_slice %21 {offsets = [16, 24], sizes = [16, 8], strides = [1, 1]} : vector<32x32xf32> to vector<16x8xf32>
    %cst_56 = arith.constant dense<0.000000e+00> : vector<16x16xf32>
    %145 = tpu.matmul %142, %143, %cst_56 {dimension_numbers = #tpu.dot_dimension_numbers<[1], [1], [0], [0], [0, 0, 1, 0], [], []>} : vector<16x8xf32>, vector<16x8xf32>, vector<16x16xf32> -> vector<16x16xf32>
    %cst_57 = arith.constant 0.353553385 : f32
    %146 = vector.broadcast %cst_57 : f32 to vector<16x16xf32>
    %147 = arith.mulf %145, %146 : vector<16x16xf32>
    %cst_58 = arith.constant dense<0xFF800000> : vector<16xf32>
    %148 = vector.multi_reduction <maximumf>, %147, %cst_58 [1] : vector<16x16xf32> to vector<16xf32>
    %149 = vector.shape_cast %148 : vector<16xf32> to vector<16x1xf32>
    %150 = vector.broadcast %149 : vector<16x1xf32> to vector<16x16xf32>
    %151 = arith.subf %147, %150 : vector<16x16xf32>
    %152 = math.exp %151 : vector<16x16xf32>
    %cst_59 = arith.constant dense<0.000000e+00> : vector<16xf32>
    %153 = vector.multi_reduction <add>, %152, %cst_59 [1] : vector<16x16xf32> to vector<16xf32>
    %154 = vector.shape_cast %153 : vector<16xf32> to vector<16x1xf32>
    %155 = tpu.reciprocal %154 {approx = true} : vector<16x1xf32> -> vector<16x1xf32>
    %156 = vector.broadcast %155 : vector<16x1xf32> to vector<16x16xf32>
    %157 = arith.mulf %152, %156 : vector<16x16xf32>
    %cst_60 = arith.constant dense<0.000000e+00> : vector<16x8xf32>
    %158 = tpu.matmul %157, %144, %cst_60 {dimension_numbers = #tpu.dot_dimension_numbers<[1], [0], [0], [1], [0, 0, 1, 1], [], []>} : vector<16x16xf32>, vector<16x8xf32>, vector<16x8xf32> -> vector<16x8xf32>
    %159 = tpu.concatenate %107, %124, %141, %158 in 1 : vector<16x8xf32>, vector<16x8xf32>, vector<16x8xf32>, vector<16x8xf32> -> vector<16x32xf32>
    %160 = tpu.concatenate %90, %159 in 0 : vector<16x32xf32>, vector<16x32xf32> -> vector<32x32xf32>
    %c0_61 = arith.constant 0 : index
    %c0_62 = arith.constant 0 : index
    %c0_63 = arith.constant 0 : index
    %161 = vector.load %arg7[%c0_61, %c0_62, %c0_63] : memref<1x32x32xf32, #tpu.memory_space<vmem>>, vector<1x32x32xf32>
    %162 = vector.shape_cast %161 : vector<1x32x32xf32> to vector<32x32xf32>
    %cst_64 = arith.constant dense<0.000000e+00> : vector<32x32xf32>
    %163 = tpu.matmul %160, %162, %cst_64 {dimension_numbers = #tpu.dot_dimension_numbers<[1], [0], [0], [1], [0, 0, 1, 1], [], []>} : vector<32x32xf32>, vector<32x32xf32>, vector<32x32xf32> -> vector<32x32xf32>
    %c0_65 = arith.constant 0 : index
    %c0_66 = arith.constant 0 : index
    %c0_67 = arith.constant 0 : index
    %164 = vector.load %arg8[%c0_65, %c0_66, %c0_67] : memref<1x1x32xf32, #tpu.memory_space<vmem>>, vector<1x1x32xf32>
    %165 = vector.shape_cast %164 : vector<1x1x32xf32> to vector<1x32xf32>
    %166 = vector.broadcast %165 : vector<1x32xf32> to vector<32x32xf32>
    %167 = arith.addf %163, %166 : vector<32x32xf32>
    %168 = arith.addf %0, %167 : vector<32x32xf32>
    %c0_68 = arith.constant 0 : index
    %c0_69 = arith.constant 0 : index
    %c0_70 = arith.constant 0 : index
    %169 = vector.load %arg9[%c0_68, %c0_69, %c0_70] : memref<1x1x32xf32, #tpu.memory_space<vmem>>, vector<1x1x32xf32>
    %170 = vector.shape_cast %169 : vector<1x1x32xf32> to vector<1x32xf32>
    %c0_71 = arith.constant 0 : index
    %c0_72 = arith.constant 0 : index
    %c0_73 = arith.constant 0 : index
    %171 = vector.load %arg10[%c0_71, %c0_72, %c0_73] : memref<1x1x32xf32, #tpu.memory_space<vmem>>, vector<1x1x32xf32>
    %172 = vector.shape_cast %171 : vector<1x1x32xf32> to vector<1x32xf32>
    %cst_74 = arith.constant dense<0.000000e+00> : vector<32xf32>
    %173 = vector.multi_reduction <add>, %168, %cst_74 [1] : vector<32x32xf32> to vector<32xf32>
    %174 = vector.shape_cast %173 : vector<32xf32> to vector<32x1xf32>
    %cst_75 = arith.constant 3.200000e+01 : f32
    %175 = vector.broadcast %cst_75 : f32 to vector<32x1xf32>
    %176 = arith.divf %174, %175 : vector<32x1xf32>
    %177 = vector.broadcast %176 : vector<32x1xf32> to vector<32x32xf32>
    %178 = arith.subf %168, %177 : vector<32x32xf32>
    %179 = arith.mulf %178, %178 : vector<32x32xf32>
    %cst_76 = arith.constant dense<0.000000e+00> : vector<32xf32>
    %180 = vector.multi_reduction <add>, %179, %cst_76 [1] : vector<32x32xf32> to vector<32xf32>
    %181 = vector.shape_cast %180 : vector<32xf32> to vector<32x1xf32>
    %cst_77 = arith.constant 3.200000e+01 : f32
    %182 = vector.broadcast %cst_77 : f32 to vector<32x1xf32>
    %183 = arith.divf %181, %182 : vector<32x1xf32>
    %cst_78 = arith.constant 9.99999974E-6 : f32
    %184 = vector.broadcast %cst_78 : f32 to vector<32x1xf32>
    %185 = arith.addf %183, %184 : vector<32x1xf32>
    %186 = math.rsqrt %185 : vector<32x1xf32>
    %187 = vector.broadcast %186 : vector<32x1xf32> to vector<32x32xf32>
    %188 = arith.mulf %178, %187 : vector<32x32xf32>
    %189 = vector.broadcast %170 : vector<1x32xf32> to vector<32x32xf32>
    %190 = arith.mulf %188, %189 : vector<32x32xf32>
    %191 = vector.broadcast %172 : vector<1x32xf32> to vector<32x32xf32>
    %192 = arith.addf %190, %191 : vector<32x32xf32>
    %c0_79 = arith.constant 0 : index
    %c0_80 = arith.constant 0 : index
    %c0_81 = arith.constant 0 : index
    %193 = vector.load %arg11[%c0_79, %c0_80, %c0_81] : memref<1x32x64xf32, #tpu.memory_space<vmem>>, vector<1x32x64xf32>
    %194 = vector.shape_cast %193 : vector<1x32x64xf32> to vector<32x64xf32>
    %cst_82 = arith.constant dense<0.000000e+00> : vector<32x64xf32>
    %195 = tpu.matmul %192, %194, %cst_82 {dimension_numbers = #tpu.dot_dimension_numbers<[1], [0], [0], [1], [0, 0, 1, 1], [], []>} : vector<32x32xf32>, vector<32x64xf32>, vector<32x64xf32> -> vector<32x64xf32>
    %c0_83 = arith.constant 0 : index
    %c0_84 = arith.constant 0 : index
    %c0_85 = arith.constant 0 : index
    %196 = vector.load %arg12[%c0_83, %c0_84, %c0_85] : memref<1x1x64xf32, #tpu.memory_space<vmem>>, vector<1x1x64xf32>
    %197 = vector.shape_cast %196 : vector<1x1x64xf32> to vector<1x64xf32>
    %198 = vector.broadcast %197 : vector<1x64xf32> to vector<32x64xf32>
    %199 = arith.addf %195, %198 : vector<32x64xf32>
    %cst_86 = arith.constant 0.000000e+00 : f32
    %200 = vector.broadcast %cst_86 : f32 to vector<32x64xf32>
    %201 = arith.maximumf %199, %200 : vector<32x64xf32>
    %c0_87 = arith.constant 0 : index
    %c0_88 = arith.constant 0 : index
    %c0_89 = arith.constant 0 : index
    %202 = vector.load %arg13[%c0_87, %c0_88, %c0_89] : memref<1x64x32xf32, #tpu.memory_space<vmem>>, vector<1x64x32xf32>
    %203 = vector.shape_cast %202 : vector<1x64x32xf32> to vector<64x32xf32>
    %cst_90 = arith.constant dense<0.000000e+00> : vector<32x32xf32>
    %204 = tpu.matmul %201, %203, %cst_90 {dimension_numbers = #tpu.dot_dimension_numbers<[1], [0], [0], [1], [0, 0, 1, 1], [], []>} : vector<32x64xf32>, vector<64x32xf32>, vector<32x32xf32> -> vector<32x32xf32>
    %c0_91 = arith.constant 0 : index
    %c0_92 = arith.constant 0 : index
    %c0_93 = arith.constant 0 : index
    %205 = vector.load %arg14[%c0_91, %c0_92, %c0_93] : memref<1x1x32xf32, #tpu.memory_space<vmem>>, vector<1x1x32xf32>
    %206 = vector.shape_cast %205 : vector<1x1x32xf32> to vector<1x32xf32>
    %207 = vector.broadcast %206 : vector<1x32xf32> to vector<32x32xf32>
    %208 = arith.addf %204, %207 : vector<32x32xf32>
    %209 = arith.addf %192, %208 : vector<32x32xf32>
    %c0_94 = arith.constant 0 : index
    %c0_95 = arith.constant 0 : index
    %c0_96 = arith.constant 0 : index
    %210 = vector.load %arg15[%c0_94, %c0_95, %c0_96] : memref<1x1x32xf32, #tpu.memory_space<vmem>>, vector<1x1x32xf32>
    %211 = vector.shape_cast %210 : vector<1x1x32xf32> to vector<1x32xf32>
    %c0_97 = arith.constant 0 : index
    %c0_98 = arith.constant 0 : index
    %c0_99 = arith.constant 0 : index
    %212 = vector.load %arg16[%c0_97, %c0_98, %c0_99] : memref<1x1x32xf32, #tpu.memory_space<vmem>>, vector<1x1x32xf32>
    %213 = vector.shape_cast %212 : vector<1x1x32xf32> to vector<1x32xf32>
    %cst_100 = arith.constant dense<0.000000e+00> : vector<32xf32>
    %214 = vector.multi_reduction <add>, %209, %cst_100 [1] : vector<32x32xf32> to vector<32xf32>
    %215 = vector.shape_cast %214 : vector<32xf32> to vector<32x1xf32>
    %cst_101 = arith.constant 3.200000e+01 : f32
    %216 = vector.broadcast %cst_101 : f32 to vector<32x1xf32>
    %217 = arith.divf %215, %216 : vector<32x1xf32>
    %218 = vector.broadcast %217 : vector<32x1xf32> to vector<32x32xf32>
    %219 = arith.subf %209, %218 : vector<32x32xf32>
    %220 = arith.mulf %219, %219 : vector<32x32xf32>
    %cst_102 = arith.constant dense<0.000000e+00> : vector<32xf32>
    %221 = vector.multi_reduction <add>, %220, %cst_102 [1] : vector<32x32xf32> to vector<32xf32>
    %222 = vector.shape_cast %221 : vector<32xf32> to vector<32x1xf32>
    %cst_103 = arith.constant 3.200000e+01 : f32
    %223 = vector.broadcast %cst_103 : f32 to vector<32x1xf32>
    %224 = arith.divf %222, %223 : vector<32x1xf32>
    %cst_104 = arith.constant 9.99999974E-6 : f32
    %225 = vector.broadcast %cst_104 : f32 to vector<32x1xf32>
    %226 = arith.addf %224, %225 : vector<32x1xf32>
    %227 = math.rsqrt %226 : vector<32x1xf32>
    %228 = vector.broadcast %227 : vector<32x1xf32> to vector<32x32xf32>
    %229 = arith.mulf %219, %228 : vector<32x32xf32>
    %230 = vector.broadcast %211 : vector<1x32xf32> to vector<32x32xf32>
    %231 = arith.mulf %229, %230 : vector<32x32xf32>
    %232 = vector.broadcast %213 : vector<1x32xf32> to vector<32x32xf32>
    %233 = arith.addf %231, %232 : vector<32x32xf32>
    %234 = vector.extract_strided_slice %233 {offsets = [0, 0], sizes = [16, 32], strides = [1, 1]} : vector<32x32xf32> to vector<16x32xf32>
    %cst_105 = arith.constant dense<0.000000e+00> : vector<32xf32>
    %235 = vector.multi_reduction <add>, %234, %cst_105 [0] : vector<16x32xf32> to vector<32xf32>
    %236 = vector.shape_cast %235 : vector<32xf32> to vector<1x32xf32>
    %cst_106 = arith.constant 6.250000e-02 : f32
    %237 = vector.broadcast %cst_106 : f32 to vector<1x32xf32>
    %238 = arith.mulf %236, %237 : vector<1x32xf32>
    %cst_107 = arith.constant dense<0xFF800000> : vector<32xf32>
    %239 = vector.multi_reduction <maximumf>, %234, %cst_107 [0] : vector<16x32xf32> to vector<32xf32>
    %240 = vector.shape_cast %239 : vector<32xf32> to vector<1x32xf32>
    %241 = tpu.concatenate %238, %240 in 1 : vector<1x32xf32>, vector<1x32xf32> -> vector<1x64xf32>
    %242 = vector.extract_strided_slice %233 {offsets = [16, 0], sizes = [16, 32], strides = [1, 1]} : vector<32x32xf32> to vector<16x32xf32>
    %cst_108 = arith.constant dense<0.000000e+00> : vector<32xf32>
    %243 = vector.multi_reduction <add>, %242, %cst_108 [0] : vector<16x32xf32> to vector<32xf32>
    %244 = vector.shape_cast %243 : vector<32xf32> to vector<1x32xf32>
    %cst_109 = arith.constant 6.250000e-02 : f32
    %245 = vector.broadcast %cst_109 : f32 to vector<1x32xf32>
    %246 = arith.mulf %244, %245 : vector<1x32xf32>
    %cst_110 = arith.constant dense<0xFF800000> : vector<32xf32>
    %247 = vector.multi_reduction <maximumf>, %242, %cst_110 [0] : vector<16x32xf32> to vector<32xf32>
    %248 = vector.shape_cast %247 : vector<32xf32> to vector<1x32xf32>
    %249 = tpu.concatenate %246, %248 in 1 : vector<1x32xf32>, vector<1x32xf32> -> vector<1x64xf32>
    %250 = tpu.concatenate %241, %249 in 0 : vector<1x64xf32>, vector<1x64xf32> -> vector<2x64xf32>
    %c0_111 = arith.constant 0 : index
    %c0_112 = arith.constant 0 : index
    %251 = vector.load %arg17[%c0_111, %c0_112] : memref<64x6xf32, #tpu.memory_space<vmem>>, vector<64x6xf32>
    %cst_113 = arith.constant dense<0.000000e+00> : vector<2x6xf32>
    %252 = tpu.matmul %250, %251, %cst_113 {dimension_numbers = #tpu.dot_dimension_numbers<[1], [0], [0], [1], [0, 0, 1, 1], [], []>} : vector<2x64xf32>, vector<64x6xf32>, vector<2x6xf32> -> vector<2x6xf32>
    %c0_114 = arith.constant 0 : index
    %c0_115 = arith.constant 0 : index
    %253 = vector.load %arg18[%c0_114, %c0_115] : memref<1x6xf32, #tpu.memory_space<vmem>>, vector<1x6xf32>
    %254 = vector.broadcast %253 : vector<1x6xf32> to vector<2x6xf32>
    %255 = arith.addf %252, %254 : vector<2x6xf32>
    %c0_116 = arith.constant 0 : index
    %c0_117 = arith.constant 0 : index
    %256 = vector.load %arg19[%c0_116, %c0_117] : memref<2x6xf32, #tpu.memory_space<vmem>>, vector<2x6xf32>
    tpu.vector_store %arg19[%c0_116, %c0_117], %255 {strides = array<i32>} : memref<2x6xf32, #tpu.memory_space<vmem>>, vector<2x6xf32>,
    return
  }
}

</mosaic_0001>

<llo_original>
// kernel: tpu_custom_call.1
$region0: #{tpu_custom_call.1}
  #allocation0 [shape = 'u32[]', space=smem, size = 0x4, offset = 0x4, fixed_abs, tag = 'smem constant byte address 0x4 - core index']
  #allocation1 [shape = 'u32[144,128]{1,0:T(1,128)}', space=vmem, size = 0x12000, scoped, tag = 'internal scratch']
  %s0 = inlined_call_operand.vmem [shape: f32[32,32], index: 0, kind: input, shape index: {}]
  %s1 = inlined_call_operand.vmem [shape: f32[1,32,32], index: 1, kind: input, shape index: {}]
  %s2 = inlined_call_operand.vmem [shape: f32[1,32,32], index: 2, kind: input, shape index: {}]
  %s3 = inlined_call_operand.vmem [shape: f32[1,32,32], index: 3, kind: input, shape index: {}]
  %s4 = inlined_call_operand.vmem [shape: f32[1,1,32], index: 4, kind: input, shape index: {}]
  %s5 = inlined_call_operand.vmem [shape: f32[1,1,32], index: 5, kind: input, shape index: {}]
  %s6 = inlined_call_operand.vmem [shape: f32[1,1,32], index: 6, kind: input, shape index: {}]
  %s7 = inlined_call_operand.vmem [shape: f32[1,32,32], index: 7, kind: input, shape index: {}]
  %s8 = inlined_call_operand.vmem [shape: f32[1,1,32], index: 8, kind: input, shape index: {}]
  %s9 = inlined_call_operand.vmem [shape: f32[1,1,32], index: 9, kind: input, shape index: {}]
  %s10 = inlined_call_operand.vmem [shape: f32[1,1,32], index: 10, kind: input, shape index: {}]
  %s11 = inlined_call_operand.hbm [shape: f32[1,32,64], index: 11, kind: input, shape index: {}]
  %s12 = inlined_call_operand.vmem [shape: f32[1,1,64], index: 12, kind: input, shape index: {}]
  %s13 = inlined_call_operand.vmem [shape: f32[1,64,32], index: 13, kind: input, shape index: {}]
  %s14 = inlined_call_operand.vmem [shape: f32[1,1,32], index: 14, kind: input, shape index: {}]
  %s15 = inlined_call_operand.vmem [shape: f32[1,1,32], index: 15, kind: input, shape index: {}]
  %s16 = inlined_call_operand.vmem [shape: f32[1,1,32], index: 16, kind: input, shape index: {}]
  %s17 = inlined_call_operand.vmem [shape: f32[64,6], index: 17, kind: input, shape index: {}]
  %s18 = inlined_call_operand.vmem [shape: f32[1,6], index: 18, kind: input, shape index: {}]
  %s19 = inlined_call_operand.hbm [shape: f32[2,6], index: 19, kind: output, shape index: {}]
  %s20 = sld [smem:[#allocation0]]
  $region90: #{tpu_custom_call.1} parent=0
    _
  %s22 = ssub.s32 1, %s20
  %s23 = scalar_select 0, %s22, %s20
  $region1: #{tpu_custom_call.1} parent=0
    #allocation2 [shape = 'u8[16384]{0}', space=vmem, size = 0x4000, scoped, tag = 'input window, operand 11, single buffered']
    #allocation3 [shape = 's32[1]{0}', space=sflag, size = 0x4, scoped, tag = 'scoped memory for tpu_custom_call.1']
    #allocation4 [shape = 's32[1]{0}', space=sflag, size = 0x4, scoped, tag = 'scoped memory for tpu_custom_call.1']
    #allocation5 [shape = 'u8[1024]{0}', space=vmem, size = 0x400, scoped, tag = 'output window, operand 0, single buffered']
    %24 = vsyncpa [#allocation3], 0
    %25 = vsyncpa [#allocation4], 0
    // Predicated region
    $region2: #{tpu_custom_call.1} parent=1 // pred_check
      _
    $region3: #{tpu_custom_call.1} parent=1 // pred_check_branch
      %27 = sbr.rel (0) target = $region5
    $region4: #{tpu_custom_call.1} parent=1 // pred_region
      _
    $region5: #{tpu_custom_call.1} parent=1 // pred_fallthru
      _
    // Predicated region
    $region6: #{tpu_custom_call.1} parent=1 // pred_check
      _
    $region7: #{tpu_custom_call.1} parent=1 // pred_check_branch
      %29 = sbr.rel (0) target = $region9
    $region8: #{tpu_custom_call.1} parent=1 // pred_region
      _
    $region9: #{tpu_custom_call.1} parent=1 // pred_fallthru
      _
    // Predicated region
    $region10: #{tpu_custom_call.1} parent=1 // pred_check
      _
    $region11: #{tpu_custom_call.1} parent=1 // pred_check_branch
      %31 = sbr.rel (0) target = $region13
    $region12: #{tpu_custom_call.1} parent=1 // pred_region
      _
    $region13: #{tpu_custom_call.1} parent=1 // pred_fallthru
      _
    // Predicated region
    $region14: #{tpu_custom_call.1} parent=1 // pred_check
      _
    $region15: #{tpu_custom_call.1} parent=1 // pred_check_branch
      %33 = sbr.rel (0) target = $region17
    $region16: #{tpu_custom_call.1} parent=1 // pred_region
      _
    $region17: #{tpu_custom_call.1} parent=1 // pred_fallthru
      _
    // Predicated region
    $region18: #{tpu_custom_call.1} parent=1 // pred_check
      _
    $region19: #{tpu_custom_call.1} parent=1 // pred_check_branch
      %35 = sbr.rel (0) target = $region21
    $region20: #{tpu_custom_call.1} parent=1 // pred_region
      _
    $region21: #{tpu_custom_call.1} parent=1 // pred_fallthru
      _
    // Predicated region
    $region22: #{tpu_custom_call.1} parent=1 // pred_check
      _
    $region23: #{tpu_custom_call.1} parent=1 // pred_check_branch
      %37 = sbr.rel (0) target = $region25
    $region24: #{tpu_custom_call.1} parent=1 // pred_region
      _
    $region25: #{tpu_custom_call.1} parent=1 // pred_fallthru
      _
    // Predicated region
    $region26: #{tpu_custom_call.1} parent=1 // pred_check
      _
    $region27: #{tpu_custom_call.1} parent=1 // pred_check_branch
      %39 = sbr.rel (0) target = $region29
    $region28: #{tpu_custom_call.1} parent=1 // pred_region
      _
    $region29: #{tpu_custom_call.1} parent=1 // pred_fallthru
      _
    // Predicated region
    $region30: #{tpu_custom_call.1} parent=1 // pred_check
      _
    $region31: #{tpu_custom_call.1} parent=1 // pred_check_branch
      %41 = sbr.rel (0) target = $region33
    $region32: #{tpu_custom_call.1} parent=1 // pred_region
      _
    $region33: #{tpu_custom_call.1} parent=1 // pred_fallthru
      _
    // Predicated region
    $region34: #{tpu_custom_call.1} parent=1 // pred_check
      _
    $region35: #{tpu_custom_call.1} parent=1 // pred_check_branch
      %43 = sbr.rel (0) target = $region37
    $region36: #{tpu_custom_call.1} parent=1 // pred_region
      _
    $region37: #{tpu_custom_call.1} parent=1 // pred_fallthru
      _
    // Predicated region
    $region38: #{tpu_custom_call.1} parent=1 // pred_check
      _
    $region39: #{tpu_custom_call.1} parent=1 // pred_check_branch
      %45 = sbr.rel (0) target = $region41
    $region40: #{tpu_custom_call.1} parent=1 // pred_region
      _
    $region41: #{tpu_custom_call.1} parent=1 // pred_fallthru
      _
    // Predicated region
    $region42: #{tpu_custom_call.1} parent=1 // pred_check
      _
    $region43: #{tpu_custom_call.1} parent=1 // pred_check_branch
      %47 = sbr.rel (0) target = $region45
    $region44: #{tpu_custom_call.1} parent=1 // pred_region
      _
    $region45: #{tpu_custom_call.1} parent=1 // pred_fallthru
      _
    // Predicated region
    $region46: #{tpu_custom_call.1} parent=1 // pred_check
      _
    $region47: #{tpu_custom_call.1} parent=1 // pred_check_branch
      %49 = sbr.rel (0) target = $region49
    $region48: #{tpu_custom_call.1} parent=1 // pred_region
      %s51 = ssub.s32 512, 512
      %52 = vsyncadd [#allocation3], %s51
      %s53 = sshll.u32 [#allocation2], 4
      %s54 = int_to_ptr.vmem [resolvable:$true] %s53
      %59 = dma.hbm_to_vmem [thread:$0]  %s11, 512, %s54, [#allocation3], 128, 128, 8
    $region49: #{tpu_custom_call.1} parent=1 // pred_fallthru
      _
    // Predicated region
    $region50: #{tpu_custom_call.1} parent=1 // pred_check
      _
    $region51: #{tpu_custom_call.1} parent=1 // pred_check_branch
      %61 = sbr.rel (0) target = $region53
    $region52: #{tpu_custom_call.1} parent=1 // pred_region
      _
    $region53: #{tpu_custom_call.1} parent=1 // pred_fallthru
      _
    // Predicated region
    $region54: #{tpu_custom_call.1} parent=1 // pred_check
      _
    $region55: #{tpu_custom_call.1} parent=1 // pred_check_branch
      %63 = sbr.rel (0) target = $region57
    $region56: #{tpu_custom_call.1} parent=1 // pred_region
      _
    $region57: #{tpu_custom_call.1} parent=1 // pred_fallthru
      _
    // Predicated region
    $region58: #{tpu_custom_call.1} parent=1 // pred_check
      _
    $region59: #{tpu_custom_call.1} parent=1 // pred_check_branch
      %65 = sbr.rel (0) target = $region61
    $region60: #{tpu_custom_call.1} parent=1 // pred_region
      _
    $region61: #{tpu_custom_call.1} parent=1 // pred_fallthru
      _
    // Predicated region
    $region62: #{tpu_custom_call.1} parent=1 // pred_check
      _
    $region63: #{tpu_custom_call.1} parent=1 // pred_check_branch
      %67 = sbr.rel (0) target = $region65
    $region64: #{tpu_custom_call.1} parent=1 // pred_region
      _
    $region65: #{tpu_custom_call.1} parent=1 // pred_fallthru
      _
    // Predicated region
    $region66: #{tpu_custom_call.1} parent=1 // pred_check
      _
    $region67: #{tpu_custom_call.1} parent=1 // pred_check_branch
      %69 = sbr.rel (0) target = $region69
    $region68: #{tpu_custom_call.1} parent=1 // pred_region
      _
    $region69: #{tpu_custom_call.1} parent=1 // pred_fallthru
      _
    // Predicated region
    $region70: #{tpu_custom_call.1} parent=1 // pred_check
      _
    $region71: #{tpu_custom_call.1} parent=1 // pred_check_branch
      %71 = sbr.rel (0) target = $region73
    $region72: #{tpu_custom_call.1} parent=1 // pred_region
      _
    $region73: #{tpu_custom_call.1} parent=1 // pred_fallthru
      _
    // Predicated region
    $region74: #{tpu_custom_call.1} parent=1 // pred_check
      _
    $region75: #{tpu_custom_call.1} parent=1 // pred_check_branch
      %73 = sbr.rel (0) target = $region77
    $region76: #{tpu_custom_call.1} parent=1 // pred_region
      _
    $region77: #{tpu_custom_call.1} parent=1 // pred_fallthru
      _
    // Predicated region
    $region78: #{tpu_custom_call.1} parent=1 // pred_check
      _
    $region79: #{tpu_custom_call.1} parent=1 // pred_check_branch
      %75 = sbr.rel (0) target = $region81
    $region80: #{tpu_custom_call.1} parent=1 // pred_region
      %76 = dma.done [#allocation3], 512
    $region81: #{tpu_custom_call.1} parent=1 // pred_fallthru
      _
    %v77 = vld [vmem:[%s0] sm:$0xff]
    %v78 = vld [vmem:[%s0 + $0x8] sm:$0xff]
    %v79 = vld [vmem:[%s0 + $0x10] sm:$0xff]
    %v80 = vld [vmem:[%s0 + $0x18] sm:$0xff]
    %v81 = vld [vmem:[%s1] sm:$0xff]
    %v82 = vld [vmem:[%s1 + $0x8] sm:$0xff]
    %v83 = vld [vmem:[%s1 + $0x10] sm:$0xff]
    %v84 = vld [vmem:[%s1 + $0x18] sm:$0xff]
    %v85 = vld [vmem:[%s4] sm:$0x1]
    %v87 = vlaneseq
    %v88 = vshrl.u32 %v87, 7
    %v89 = vsub.s32 0, %v88
    %v90 = vrot.slane %v85, %v89
    %vm92 = vcmask 261120
    %v94 = vsel %vm92, %v77, 0
    %v97 = vsel %vm92, %v78, 0
    %v100 = vsel %vm92, %v79, 0
    %v103 = vsel %vm92, %v80, 0
    %105 = vmatprep.subr.mxu0 0.0
    %106 = vmatpush1.msra.mxu0 0.0
    %107 = vmatprep.subr.mxu0 0.0
    %108 = vmatpush1.msra.mxu0 0.0
    %109 = vmatprep.subr.mxu0 0.0
    %110 = vmatpush1.msra.mxu0 0.0
    %111 = vmatprep.subr.mxu0 0.0
    %112 = vmatpush1.msra.mxu0 0.0
    %113 = vmatprep.subr.mxu0 0.0
    %114 = vmatpush1.msra.mxu0 0.0
    %115 = vmatprep.subr.mxu0 0.0
    %116 = vmatpush1.msra.mxu0 0.0
    %117 = vmatprep.subr.mxu0 0.0
    %118 = vmatpush1.msra.mxu0 0.0
    %119 = vmatprep.subr.mxu0 0.0
    %120 = vmatpush1.msra.mxu0 0.0
    %121 = vmatprep.subr.mxu0 0.0
    %122 = vmatpush1.msra.mxu0 0.0
    %123 = vmatprep.subr.mxu0 0.0
    %124 = vmatpush1.msra.mxu0 0.0
    %125 = vmatprep.subr.mxu0 0.0
    %126 = vmatpush1.msra.mxu0 0.0
    %127 = vmatprep.subr.mxu0 0.0
    %128 = vmatpush1.msra.mxu0 0.0
    %129 = vmatprep.subr.mxu0 0.0
    %130 = vmatpush1.msra.mxu0 %v84
    %131 = vmatprep.subr.mxu0 0.0
    %132 = vmatpush1.msra.mxu0 %v83
    %133 = vmatprep.subr.mxu0 0.0
    %134 = vmatpush1.msra.mxu0 %v82
    %135 = vmatprep.subr.mxu0 0.0
    %136 = vmatpush1.msra.mxu0 %v81
    %137 = vmatprep.subr.mxu0 0.0
    %138 = vmatpush2.msra.mxu0 0.0
    %139 = vmatprep.subr.mxu0 0.0
    %140 = vmatpush2.msra.mxu0 0.0
    %141 = vmatprep.subr.mxu0 0.0
    %142 = vmatpush2.msra.mxu0 0.0
    %143 = vmatprep.subr.mxu0 0.0
    %144 = vmatpush2.msra.mxu0 0.0
    %145 = vmatprep.subr.mxu0 0.0
    %146 = vmatpush2.msra.mxu0 0.0
    %147 = vmatprep.subr.mxu0 0.0
    %148 = vmatpush2.msra.mxu0 0.0
    %149 = vmatprep.subr.mxu0 0.0
    %150 = vmatpush2.msra.mxu0 0.0
    %151 = vmatprep.subr.mxu0 0.0
    %152 = vmatpush2.msra.mxu0 0.0
    %153 = vmatprep.subr.mxu0 0.0
    %154 = vmatpush2.msra.mxu0 0.0
    %155 = vmatprep.subr.mxu0 0.0
    %156 = vmatpush2.msra.mxu0 0.0
    %157 = vmatprep.subr.mxu0 0.0
    %158 = vmatpush2.msra.mxu0 0.0
    %159 = vmatprep.subr.mxu0 0.0
    %160 = vmatpush2.msra.mxu0 0.0
    %161 = vmatprep.subr.mxu0 0.0
    %162 = vmatpush2.msra.mxu0 0.0
    %163 = vmatprep.subr.mxu0 0.0
    %164 = vmatpush2.msra.mxu0 0.0
    %165 = vmatprep.subr.mxu0 0.0
    %166 = vmatpush2.msra.mxu0 0.0
    %167 = vmatprep.subr.mxu0 0.0
    %168 = vmatpush2.msra.mxu0 0.0
    %169 = vmatprep.mubr.f32.mxu0 0.0
    %170 = vmatmul.mubr.f32.gmra.mxu0 %v94
    %v171 = vpop.f32.mrf.mxu0
    %v172 = vadd.f32 %v90, %v171
    %v173 = vpop.f32.mrf.mxu0
    %174 = vmatprep.mubr.f32.mxu0 0.0
    %175 = vmatmul.mubr.f32.gmra.mxu0 %v97
    %v176 = vpop.f32.mrf.mxu0
    %v177 = vadd.f32 %v90, %v176
    %v178 = vpop.f32.mrf.mxu0
    %179 = vmatprep.mubr.f32.mxu0 0.0
    %180 = vmatmul.mubr.f32.gmra.mxu0 %v100
    %v181 = vpop.f32.mrf.mxu0
    %v182 = vadd.f32 %v90, %v181
    %v183 = vpop.f32.mrf.mxu0
    %184 = vmatprep.mubr.f32.mxu0 0.0
    %185 = vmatmul.mubr.f32.gmra.mxu0 %v103
    %v186 = vpop.f32.mrf.mxu0
    %v187 = vadd.f32 %v90, %v186
    %v188 = vpop.f32.mrf.mxu0
    %189 = vdwg.mxu0
    %v190 = vld [vmem:[%s2] sm:$0xff]
    %v191 = vld [vmem:[%s2 + $0x8] sm:$0xff]
    %v192 = vld [vmem:[%s2 + $0x10] sm:$0xff]
    %v193 = vld [vmem:[%s2 + $0x18] sm:$0xff]
    %v194 = vld [vmem:[%s5] sm:$0x1]
    %v196 = vlaneseq
    %v197 = vshrl.u32 %v196, 7
    %v198 = vsub.s32 0, %v197
    %v199 = vrot.slane %v194, %v198
    %201 = vmatprep.subr.mxu0 0.0
    %202 = vmatpush1.msra.mxu0 0.0
    %203 = vmatprep.subr.mxu0 0.0
    %204 = vmatpush1.msra.mxu0 0.0
    %205 = vmatprep.subr.mxu0 0.0
    %206 = vmatpush1.msra.mxu0 0.0
    %207 = vmatprep.subr.mxu0 0.0
    %208 = vmatpush1.msra.mxu0 0.0
    %209 = vmatprep.subr.mxu0 0.0
    %210 = vmatpush1.msra.mxu0 0.0
    %211 = vmatprep.subr.mxu0 0.0
    %212 = vmatpush1.msra.mxu0 0.0
    %213 = vmatprep.subr.mxu0 0.0
    %214 = vmatpush1.msra.mxu0 0.0
    %215 = vmatprep.subr.mxu0 0.0
    %216 = vmatpush1.msra.mxu0 0.0
    %217 = vmatprep.subr.mxu0 0.0
    %218 = vmatpush1.msra.mxu0 0.0
    %219 = vmatprep.subr.mxu0 0.0
    %220 = vmatpush1.msra.mxu0 0.0
    %221 = vmatprep.subr.mxu0 0.0
    %222 = vmatpush1.msra.mxu0 0.0
    %223 = vmatprep.subr.mxu0 0.0
    %224 = vmatpush1.msra.mxu0 0.0
    %225 = vmatprep.subr.mxu0 0.0
    %226 = vmatpush1.msra.mxu0 %v193
    %227 = vmatprep.subr.mxu0 0.0
    %228 = vmatpush1.msra.mxu0 %v192
    %229 = vmatprep.subr.mxu0 0.0
    %230 = vmatpush1.msra.mxu0 %v191
    %231 = vmatprep.subr.mxu0 0.0
    %232 = vmatpush1.msra.mxu0 %v190
    %233 = vmatprep.subr.mxu0 0.0
    %234 = vmatpush2.msra.mxu0 0.0
    %235 = vmatprep.subr.mxu0 0.0
    %236 = vmatpush2.msra.mxu0 0.0
    %237 = vmatprep.subr.mxu0 0.0
    %238 = vmatpush2.msra.mxu0 0.0
    %239 = vmatprep.subr.mxu0 0.0
    %240 = vmatpush2.msra.mxu0 0.0
    %241 = vmatprep.subr.mxu0 0.0
    %242 = vmatpush2.msra.mxu0 0.0
    %243 = vmatprep.subr.mxu0 0.0
    %244 = vmatpush2.msra.mxu0 0.0
    %245 = vmatprep.subr.mxu0 0.0
    %246 = vmatpush2.msra.mxu0 0.0
    %247 = vmatprep.subr.mxu0 0.0
    %248 = vmatpush2.msra.mxu0 0.0
    %249 = vmatprep.subr.mxu0 0.0
    %250 = vmatpush2.msra.mxu0 0.0
    %251 = vmatprep.subr.mxu0 0.0
    %252 = vmatpush2.msra.mxu0 0.0
    %253 = vmatprep.subr.mxu0 0.0
    %254 = vmatpush2.msra.mxu0 0.0
    %255 = vmatprep.subr.mxu0 0.0
    %256 = vmatpush2.msra.mxu0 0.0
    %257 = vmatprep.subr.mxu0 0.0
    %258 = vmatpush2.msra.mxu0 0.0
    %259 = vmatprep.subr.mxu0 0.0
    %260 = vmatpush2.msra.mxu0 0.0
    %261 = vmatprep.subr.mxu0 0.0
    %262 = vmatpush2.msra.mxu0 0.0
    %263 = vmatprep.subr.mxu0 0.0
    %264 = vmatpush2.msra.mxu0 0.0
    %265 = vmatprep.mubr.f32.mxu0 0.0
    %266 = vmatmul.mubr.f32.gmra.mxu0 %v94
    %v267 = vpop.f32.mrf.mxu0
    %v268 = vadd.f32 %v199, %v267
    %v269 = vpop.f32.mrf.mxu0
    %270 = vmatprep.mubr.f32.mxu0 0.0
    %271 = vmatmul.mubr.f32.gmra.mxu0 %v97
    %v272 = vpop.f32.mrf.mxu0
    %v273 = vadd.f32 %v199, %v272
    %v274 = vpop.f32.mrf.mxu0
    %275 = vmatprep.mubr.f32.mxu0 0.0
    %276 = vmatmul.mubr.f32.gmra.mxu0 %v100
    %v277 = vpop.f32.mrf.mxu0
    %v278 = vadd.f32 %v199, %v277
    %v279 = vpop.f32.mrf.mxu0
    %280 = vmatprep.mubr.f32.mxu0 0.0
    %281 = vmatmul.mubr.f32.gmra.mxu0 %v103
    %v282 = vpop.f32.mrf.mxu0
    %v283 = vadd.f32 %v199, %v282
    %v284 = vpop.f32.mrf.mxu0
    %285 = vdwg.mxu0
    %v286 = vld [vmem:[%s3] sm:$0xff]
    %v287 = vld [vmem:[%s3 + $0x8] sm:$0xff]
    %v288 = vld [vmem:[%s3 + $0x10] sm:$0xff]
    %v289 = vld [vmem:[%s3 + $0x18] sm:$0xff]
    %v290 = vld [vmem:[%s6] sm:$0x1]
    %v292 = vlaneseq
    %v293 = vshrl.u32 %v292, 7
    %v294 = vsub.s32 0, %v293
    %v295 = vrot.slane %v290, %v294
    %297 = vmatprep.subr.mxu0 0.0
    %298 = vmatpush1.msra.mxu0 0.0
    %299 = vmatprep.subr.mxu0 0.0
    %300 = vmatpush1.msra.mxu0 0.0
    %301 = vmatprep.subr.mxu0 0.0
    %302 = vmatpush1.msra.mxu0 0.0
    %303 = vmatprep.subr.mxu0 0.0
    %304 = vmatpush1.msra.mxu0 0.0
    %305 = vmatprep.subr.mxu0 0.0
    %306 = vmatpush1.msra.mxu0 0.0
    %307 = vmatprep.subr.mxu0 0.0
    %308 = vmatpush1.msra.mxu0 0.0
    %309 = vmatprep.subr.mxu0 0.0
    %310 = vmatpush1.msra.mxu0 0.0
    %311 = vmatprep.subr.mxu0 0.0
    %312 = vmatpush1.msra.mxu0 0.0
    %313 = vmatprep.subr.mxu0 0.0
    %314 = vmatpush1.msra.mxu0 0.0
    %315 = vmatprep.subr.mxu0 0.0
    %316 = vmatpush1.msra.mxu0 0.0
    %317 = vmatprep.subr.mxu0 0.0
    %318 = vmatpush1.msra.mxu0 0.0
    %319 = vmatprep.subr.mxu0 0.0
    %320 = vmatpush1.msra.mxu0 0.0
    %321 = vmatprep.subr.mxu0 0.0
    %322 = vmatpush1.msra.mxu0 %v289
    %323 = vmatprep.subr.mxu0 0.0
    %324 = vmatpush1.msra.mxu0 %v288
    %325 = vmatprep.subr.mxu0 0.0
    %326 = vmatpush1.msra.mxu0 %v287
    %327 = vmatprep.subr.mxu0 0.0
    %328 = vmatpush1.msra.mxu0 %v286
    %329 = vmatprep.subr.mxu0 0.0
    %330 = vmatpush2.msra.mxu0 0.0
    %331 = vmatprep.subr.mxu0 0.0
    %332 = vmatpush2.msra.mxu0 0.0
    %333 = vmatprep.subr.mxu0 0.0
    %334 = vmatpush2.msra.mxu0 0.0
    %335 = vmatprep.subr.mxu0 0.0
    %336 = vmatpush2.msra.mxu0 0.0
    %337 = vmatprep.subr.mxu0 0.0
    %338 = vmatpush2.msra.mxu0 0.0
    %339 = vmatprep.subr.mxu0 0.0
    %340 = vmatpush2.msra.mxu0 0.0
    %341 = vmatprep.subr.mxu0 0.0
    %342 = vmatpush2.msra.mxu0 0.0
    %343 = vmatprep.subr.mxu0 0.0
    %344 = vmatpush2.msra.mxu0 0.0
    %345 = vmatprep.subr.mxu0 0.0
    %346 = vmatpush2.msra.mxu0 0.0
    %347 = vmatprep.subr.mxu0 0.0
    %348 = vmatpush2.msra.mxu0 0.0
    %349 = vmatprep.subr.mxu0 0.0
    %350 = vmatpush2.msra.mxu0 0.0
    %351 = vmatprep.subr.mxu0 0.0
    %352 = vmatpush2.msra.mxu0 0.0
    %353 = vmatprep.subr.mxu0 0.0
    %354 = vmatpush2.msra.mxu0 0.0
    %355 = vmatprep.subr.mxu0 0.0
    %356 = vmatpush2.msra.mxu0 0.0
    %357 = vmatprep.subr.mxu0 0.0
    %358 = vmatpush2.msra.mxu0 0.0
    %359 = vmatprep.subr.mxu0 0.0
    %360 = vmatpush2.msra.mxu0 0.0
    %361 = vmatprep.mubr.f32.mxu0 0.0
    %362 = vmatmul.mubr.f32.gmra.mxu0 %v94
    %v363 = vpop.f32.mrf.mxu0
    %v364 = vadd.f32 %v295, %v363
    %v365 = vpop.f32.mrf.mxu0
    %366 = vmatprep.mubr.f32.mxu0 0.0
    %367 = vmatmul.mubr.f32.gmra.mxu0 %v97
    %v368 = vpop.f32.mrf.mxu0
    %v369 = vadd.f32 %v295, %v368
    %v370 = vpop.f32.mrf.mxu0
    %371 = vmatprep.mubr.f32.mxu0 0.0
    %372 = vmatmul.mubr.f32.gmra.mxu0 %v100
    %v373 = vpop.f32.mrf.mxu0
    %v374 = vadd.f32 %v295, %v373
    %v375 = vpop.f32.mrf.mxu0
    %376 = vmatprep.mubr.f32.mxu0 0.0
    %377 = vmatmul.mubr.f32.gmra.mxu0 %v103
    %v378 = vpop.f32.mrf.mxu0
    %v379 = vadd.f32 %v295, %v378
    %v380 = vpop.f32.mrf.mxu0
    %381 = vdwg.mxu0
    %vm382 = vcmask 64512
    %v384 = vsel %vm382, %v172, 0
    %v387 = vsel %vm382, %v177, 0
    %v390 = vsel %vm382, %v268, 0
    %v393 = vsel %vm382, %v273, 0
    %395 = vmatprep.subr.mxu0 0.0
    %396 = vmatpush1.xpose.msra.mxu0 0.0
    %397 = vmatprep.subr.mxu0 0.0
    %398 = vmatpush1.xpose.msra.mxu0 0.0
    %399 = vmatprep.subr.mxu0 0.0
    %400 = vmatpush1.xpose.msra.mxu0 0.0
    %401 = vmatprep.subr.mxu0 0.0
    %402 = vmatpush1.xpose.msra.mxu0 0.0
    %403 = vmatprep.subr.mxu0 0.0
    %404 = vmatpush1.xpose.msra.mxu0 0.0
    %405 = vmatprep.subr.mxu0 0.0
    %406 = vmatpush1.xpose.msra.mxu0 0.0
    %407 = vmatprep.subr.mxu0 0.0
    %408 = vmatpush1.xpose.msra.mxu0 0.0
    %409 = vmatprep.subr.mxu0 0.0
    %410 = vmatpush1.xpose.msra.mxu0 0.0
    %411 = vmatprep.subr.mxu0 0.0
    %412 = vmatpush1.xpose.msra.mxu0 0.0
    %413 = vmatprep.subr.mxu0 0.0
    %414 = vmatpush1.xpose.msra.mxu0 0.0
    %415 = vmatprep.subr.mxu0 0.0
    %416 = vmatpush1.xpose.msra.mxu0 0.0
    %417 = vmatprep.subr.mxu0 0.0
    %418 = vmatpush1.xpose.msra.mxu0 0.0
    %419 = vmatprep.subr.mxu0 0.0
    %420 = vmatpush1.xpose.msra.mxu0 0.0
    %421 = vmatprep.subr.mxu0 0.0
    %422 = vmatpush1.xpose.msra.mxu0 0.0
    %423 = vmatprep.subr.mxu0 0.0
    %424 = vmatpush1.xpose.msra.mxu0 %v393
    %425 = vmatprep.subr.mxu0 0.0
    %426 = vmatpush1.xpose.msra.mxu0 %v390
    %427 = vmatprep.subr.mxu0 0.0
    %428 = vmatpush2.xpose.msra.mxu0 0.0
    %429 = vmatprep.subr.mxu0 0.0
    %430 = vmatpush2.xpose.msra.mxu0 0.0
    %431 = vmatprep.subr.mxu0 0.0
    %432 = vmatpush2.xpose.msra.mxu0 0.0
    %433 = vmatprep.subr.mxu0 0.0
    %434 = vmatpush2.xpose.msra.mxu0 0.0
    %435 = vmatprep.subr.mxu0 0.0
    %436 = vmatpush2.xpose.msra.mxu0 0.0
    %437 = vmatprep.subr.mxu0 0.0
    %438 = vmatpush2.xpose.msra.mxu0 0.0
    %439 = vmatprep.subr.mxu0 0.0
    %440 = vmatpush2.xpose.msra.mxu0 0.0
    %441 = vmatprep.subr.mxu0 0.0
    %442 = vmatpush2.xpose.msra.mxu0 0.0
    %443 = vmatprep.subr.mxu0 0.0
    %444 = vmatpush2.xpose.msra.mxu0 0.0
    %445 = vmatprep.subr.mxu0 0.0
    %446 = vmatpush2.xpose.msra.mxu0 0.0
    %447 = vmatprep.subr.mxu0 0.0
    %448 = vmatpush2.xpose.msra.mxu0 0.0
    %449 = vmatprep.subr.mxu0 0.0
    %450 = vmatpush2.xpose.msra.mxu0 0.0
    %451 = vmatprep.subr.mxu0 0.0
    %452 = vmatpush2.xpose.msra.mxu0 0.0
    %453 = vmatprep.subr.mxu0 0.0
    %454 = vmatpush2.xpose.msra.mxu0 0.0
    %455 = vmatprep.subr.mxu0 0.0
    %456 = vmatpush2.xpose.msra.mxu0 0.0
    %457 = vmatprep.subr.mxu0 0.0
    %458 = vmatpush2.xpose.msra.mxu0 0.0
    %459 = vmatprep.mubr.f32.mxu0 0.0
    %460 = vmatmul.mubr.f32.gmra.mxu0 %v384
    %v461 = vpop.f32.mrf.mxu0
    %v462 = vadd.f32 0.0, %v461
    %v463 = vpop.f32.mrf.mxu0
    %464 = vmatprep.mubr.f32.mxu0 0.0
    %465 = vmatmul.mubr.f32.gmra.mxu0 %v387
    %v466 = vpop.f32.mrf.mxu0
    %v467 = vadd.f32 0.0, %v466
    %v468 = vpop.f32.mrf.mxu0
    %469 = vdwg.mxu0
    %v470 = vmul.f32 %v462, 0.35355338
    %v471 = vmul.f32 %v467, 0.35355338
    %vm472 = vcmask 130048
    %v473 = vsel %vm472, %v470, -inf
    %474 = vmax.xlane.f32.xlu0 %v473
    %v475 = vpop.xlane.xlu0 %474
    %v476 = vsel %vm472, %v471, -inf
    %477 = vmax.xlane.f32.xlu0 %v476
    %v478 = vpop.xlane.xlu0 %477
    %v479 = vsub.f32 %v470, %v475
    %v480 = vsub.f32 %v471, %v478
    %v481 = vmul.f32 %v479, 1.442695
    %v482 = vpow.pop %v481
    %v483 = vmul.f32 %v480, 1.442695
    %v484 = vpow.pop %v483
    %v485 = vsel %vm472, %v482, 0.0
    %486 = vadd.xlane.f32.xlu0 %v485
    %v487 = vpop.xlane.xlu0 %486
    %v488 = vsel %vm472, %v484, 0.0
    %489 = vadd.xlane.f32.xlu0 %v488
    %v490 = vpop.xlane.xlu0 %489
    %v491 = vrcp.pop %v487
    %v492 = vrcp.pop %v490
    %v493 = vmul.f32 %v482, %v491
    %v494 = vmul.f32 %v484, %v492
    %v496 = vsel %vm472, %v493, 0
    %v499 = vsel %vm472, %v494, 0
    %501 = vmatprep.subr.mxu0 0.0
    %502 = vmatpush1.msra.mxu0 0.0
    %503 = vmatprep.subr.mxu0 0.0
    %504 = vmatpush1.msra.mxu0 0.0
    %505 = vmatprep.subr.mxu0 0.0
    %506 = vmatpush1.msra.mxu0 0.0
    %507 = vmatprep.subr.mxu0 0.0
    %508 = vmatpush1.msra.mxu0 0.0
    %509 = vmatprep.subr.mxu0 0.0
    %510 = vmatpush1.msra.mxu0 0.0
    %511 = vmatprep.subr.mxu0 0.0
    %512 = vmatpush1.msra.mxu0 0.0
    %513 = vmatprep.subr.mxu0 0.0
    %514 = vmatpush1.msra.mxu0 0.0
    %515 = vmatprep.subr.mxu0 0.0
    %516 = vmatpush1.msra.mxu0 0.0
    %517 = vmatprep.subr.mxu0 0.0
    %518 = vmatpush1.msra.mxu0 0.0
    %519 = vmatprep.subr.mxu0 0.0
    %520 = vmatpush1.msra.mxu0 0.0
    %521 = vmatprep.subr.mxu0 0.0
    %522 = vmatpush1.msra.mxu0 0.0
    %523 = vmatprep.subr.mxu0 0.0
    %524 = vmatpush1.msra.mxu0 0.0
    %525 = vmatprep.subr.mxu0 0.0
    %526 = vmatpush1.msra.mxu0 0.0
    %527 = vmatprep.subr.mxu0 0.0
    %528 = vmatpush1.msra.mxu0 0.0
    %529 = vmatprep.subr.mxu0 0.0
    %530 = vmatpush1.msra.mxu0 %v369
    %531 = vmatprep.subr.mxu0 0.0
    %532 = vmatpush1.msra.mxu0 %v364
    %533 = vmatprep.subr.mxu0 0.0
    %534 = vmatpush2.msra.mxu0 0.0
    %535 = vmatprep.subr.mxu0 0.0
    %536 = vmatpush2.msra.mxu0 0.0
    %537 = vmatprep.subr.mxu0 0.0
    %538 = vmatpush2.msra.mxu0 0.0
    %539 = vmatprep.subr.mxu0 0.0
    %540 = vmatpush2.msra.mxu0 0.0
    %541 = vmatprep.subr.mxu0 0.0
    %542 = vmatpush2.msra.mxu0 0.0
    %543 = vmatprep.subr.mxu0 0.0
    %544 = vmatpush2.msra.mxu0 0.0
    %545 = vmatprep.subr.mxu0 0.0
    %546 = vmatpush2.msra.mxu0 0.0
    %547 = vmatprep.subr.mxu0 0.0
    %548 = vmatpush2.msra.mxu0 0.0
    %549 = vmatprep.subr.mxu0 0.0
    %550 = vmatpush2.msra.mxu0 0.0
    %551 = vmatprep.subr.mxu0 0.0
    %552 = vmatpush2.msra.mxu0 0.0
    %553 = vmatprep.subr.mxu0 0.0
    %554 = vmatpush2.msra.mxu0 0.0
    %555 = vmatprep.subr.mxu0 0.0
    %556 = vmatpush2.msra.mxu0 0.0
    %557 = vmatprep.subr.mxu0 0.0
    %558 = vmatpush2.msra.mxu0 0.0
    %559 = vmatprep.subr.mxu0 0.0
    %560 = vmatpush2.msra.mxu0 0.0
    %561 = vmatprep.subr.mxu0 0.0
    %562 = vmatpush2.msra.mxu0 0.0
    %563 = vmatprep.subr.mxu0 0.0
    %564 = vmatpush2.msra.mxu0 0.0
    %565 = vmatprep.mubr.f32.mxu0 0.0
    %566 = vmatmul.mubr.f32.gmra.mxu0 %v496
    %v567 = vpop.f32.mrf.mxu0
    %v568 = vadd.f32 0.0, %v567
    %v569 = vpop.f32.mrf.mxu0
    %570 = vmatprep.mubr.f32.mxu0 0.0
    %571 = vmatmul.mubr.f32.gmra.mxu0 %v499
    %v572 = vpop.f32.mrf.mxu0
    %v573 = vadd.f32 0.0, %v572
    %v574 = vpop.f32.mrf.mxu0
    %575 = vdwg.mxu0
    %576 = vrot.lane.b32.xlu0 %v172, 120
    %v577 = vpop.permute.xlu0 %576
    %578 = vrot.lane.b32.xlu0 %v177, 120
    %v579 = vpop.permute.xlu0 %578
    %580 = vrot.lane.b32.xlu0 %v268, 120
    %v581 = vpop.permute.xlu0 %580
    %582 = vrot.lane.b32.xlu0 %v273, 120
    %v583 = vpop.permute.xlu0 %582
    %v584 = vsel %vm382, %v577, 0
    %v586 = vsel %vm382, %v579, 0
    %v588 = vsel %vm382, %v581, 0
    %v590 = vsel %vm382, %v583, 0
    %592 = vmatprep.subr.mxu0 0.0
    %593 = vmatpush1.xpose.msra.mxu0 0.0
    %594 = vmatprep.subr.mxu0 0.0
    %595 = vmatpush1.xpose.msra.mxu0 0.0
    %596 = vmatprep.subr.mxu0 0.0
    %597 = vmatpush1.xpose.msra.mxu0 0.0
    %598 = vmatprep.subr.mxu0 0.0
    %599 = vmatpush1.xpose.msra.mxu0 0.0
    %600 = vmatprep.subr.mxu0 0.0
    %601 = vmatpush1.xpose.msra.mxu0 0.0
    %602 = vmatprep.subr.mxu0 0.0
    %603 = vmatpush1.xpose.msra.mxu0 0.0
    %604 = vmatprep.subr.mxu0 0.0
    %605 = vmatpush1.xpose.msra.mxu0 0.0
    %606 = vmatprep.subr.mxu0 0.0
    %607 = vmatpush1.xpose.msra.mxu0 0.0
    %608 = vmatprep.subr.mxu0 0.0
    %609 = vmatpush1.xpose.msra.mxu0 0.0
    %610 = vmatprep.subr.mxu0 0.0
    %611 = vmatpush1.xpose.msra.mxu0 0.0
    %612 = vmatprep.subr.mxu0 0.0
    %613 = vmatpush1.xpose.msra.mxu0 0.0
    %614 = vmatprep.subr.mxu0 0.0
    %615 = vmatpush1.xpose.msra.mxu0 0.0
    %616 = vmatprep.subr.mxu0 0.0
    %617 = vmatpush1.xpose.msra.mxu0 0.0
    %618 = vmatprep.subr.mxu0 0.0
    %619 = vmatpush1.xpose.msra.mxu0 0.0
    %620 = vmatprep.subr.mxu0 0.0
    %621 = vmatpush1.xpose.msra.mxu0 %v590
    %622 = vmatprep.subr.mxu0 0.0
    %623 = vmatpush1.xpose.msra.mxu0 %v588
    %624 = vmatprep.subr.mxu0 0.0
    %625 = vmatpush2.xpose.msra.mxu0 0.0
    %626 = vmatprep.subr.mxu0 0.0
    %627 = vmatpush2.xpose.msra.mxu0 0.0
    %628 = vmatprep.subr.mxu0 0.0
    %629 = vmatpush2.xpose.msra.mxu0 0.0
    %630 = vmatprep.subr.mxu0 0.0
    %631 = vmatpush2.xpose.msra.mxu0 0.0
    %632 = vmatprep.subr.mxu0 0.0
    %633 = vmatpush2.xpose.msra.mxu0 0.0
    %634 = vmatprep.subr.mxu0 0.0
    %635 = vmatpush2.xpose.msra.mxu0 0.0
    %636 = vmatprep.subr.mxu0 0.0
    %637 = vmatpush2.xpose.msra.mxu0 0.0
    %638 = vmatprep.subr.mxu0 0.0
    %639 = vmatpush2.xpose.msra.mxu0 0.0
    %640 = vmatprep.subr.mxu0 0.0
    %641 = vmatpush2.xpose.msra.mxu0 0.0
    %642 = vmatprep.subr.mxu0 0.0
    %643 = vmatpush2.xpose.msra.mxu0 0.0
    %644 = vmatprep.subr.mxu0 0.0
    %645 = vmatpush2.xpose.msra.mxu0 0.0
    %646 = vmatprep.subr.mxu0 0.0
    %647 = vmatpush2.xpose.msra.mxu0 0.0
    %648 = vmatprep.subr.mxu0 0.0
    %649 = vmatpush2.xpose.msra.mxu0 0.0
    %650 = vmatprep.subr.mxu0 0.0
    %651 = vmatpush2.xpose.msra.mxu0 0.0
    %652 = vmatprep.subr.mxu0 0.0
    %653 = vmatpush2.xpose.msra.mxu0 0.0
    %654 = vmatprep.subr.mxu0 0.0
    %655 = vmatpush2.xpose.msra.mxu0 0.0
    %656 = vmatprep.mubr.f32.mxu0 0.0
    %657 = vmatmul.mubr.f32.gmra.mxu0 %v584
    %v658 = vpop.f32.mrf.mxu0
    %v659 = vadd.f32 0.0, %v658
    %v660 = vpop.f32.mrf.mxu0
    %661 = vmatprep.mubr.f32.mxu0 0.0
    %662 = vmatmul.mubr.f32.gmra.mxu0 %v586
    %v663 = vpop.f32.mrf.mxu0
    %v664 = vadd.f32 0.0, %v663
    %v665 = vpop.f32.mrf.mxu0
    %666 = vdwg.mxu0
    %v667 = vmul.f32 %v659, 0.35355338
    %v668 = vmul.f32 %v664, 0.35355338
    %v669 = vsel %vm472, %v667, -inf
    %670 = vmax.xlane.f32.xlu0 %v669
    %v671 = vpop.xlane.xlu0 %670
    %v672 = vsel %vm472, %v668, -inf
    %673 = vmax.xlane.f32.xlu0 %v672
    %v674 = vpop.xlane.xlu0 %673
    %v675 = vsub.f32 %v667, %v671
    %v676 = vsub.f32 %v668, %v674
    %v677 = vmul.f32 %v675, 1.442695
    %v678 = vpow.pop %v677
    %v679 = vmul.f32 %v676, 1.442695
    %v680 = vpow.pop %v679
    %v681 = vsel %vm472, %v678, 0.0
    %682 = vadd.xlane.f32.xlu0 %v681
    %v683 = vpop.xlane.xlu0 %682
    %v684 = vsel %vm472, %v680, 0.0
    %685 = vadd.xlane.f32.xlu0 %v684
    %v686 = vpop.xlane.xlu0 %685
    %v687 = vrcp.pop %v683
    %v688 = vrcp.pop %v686
    %v689 = vmul.f32 %v678, %v687
    %v690 = vmul.f32 %v680, %v688
    %693 = vrot.lane.b32.xlu0 %v364, 120
    %v694 = vpop.permute.xlu0 %693
    %695 = vrot.lane.b32.xlu0 %v369, 120
    %v696 = vpop.permute.xlu0 %695
    %v700 = vsel %vm472, %v689, 0
    %v703 = vsel %vm472, %v690, 0
    %705 = vmatprep.subr.mxu0 0.0
    %706 = vmatpush1.msra.mxu0 0.0
    %707 = vmatprep.subr.mxu0 0.0
    %708 = vmatpush1.msra.mxu0 0.0
    %709 = vmatprep.subr.mxu0 0.0
    %710 = vmatpush1.msra.mxu0 0.0
    %711 = vmatprep.subr.mxu0 0.0
    %712 = vmatpush1.msra.mxu0 0.0
    %713 = vmatprep.subr.mxu0 0.0
    %714 = vmatpush1.msra.mxu0 0.0
    %715 = vmatprep.subr.mxu0 0.0
    %716 = vmatpush1.msra.mxu0 0.0
    %717 = vmatprep.subr.mxu0 0.0
    %718 = vmatpush1.msra.mxu0 0.0
    %719 = vmatprep.subr.mxu0 0.0
    %720 = vmatpush1.msra.mxu0 0.0
    %721 = vmatprep.subr.mxu0 0.0
    %722 = vmatpush1.msra.mxu0 0.0
    %723 = vmatprep.subr.mxu0 0.0
    %724 = vmatpush1.msra.mxu0 0.0
    %725 = vmatprep.subr.mxu0 0.0
    %726 = vmatpush1.msra.mxu0 0.0
    %727 = vmatprep.subr.mxu0 0.0
    %728 = vmatpush1.msra.mxu0 0.0
    %729 = vmatprep.subr.mxu0 0.0
    %730 = vmatpush1.msra.mxu0 0.0
    %731 = vmatprep.subr.mxu0 0.0
    %732 = vmatpush1.msra.mxu0 0.0
    %733 = vmatprep.subr.mxu0 0.0
    %734 = vmatpush1.msra.mxu0 %v696
    %735 = vmatprep.subr.mxu0 0.0
    %736 = vmatpush1.msra.mxu0 %v694
    %737 = vmatprep.subr.mxu0 0.0
    %738 = vmatpush2.msra.mxu0 0.0
    %739 = vmatprep.subr.mxu0 0.0
    %740 = vmatpush2.msra.mxu0 0.0
    %741 = vmatprep.subr.mxu0 0.0
    %742 = vmatpush2.msra.mxu0 0.0
    %743 = vmatprep.subr.mxu0 0.0
    %744 = vmatpush2.msra.mxu0 0.0
    %745 = vmatprep.subr.mxu0 0.0
    %746 = vmatpush2.msra.mxu0 0.0
    %747 = vmatprep.subr.mxu0 0.0
    %748 = vmatpush2.msra.mxu0 0.0
    %749 = vmatprep.subr.mxu0 0.0
    %750 = vmatpush2.msra.mxu0 0.0
    %751 = vmatprep.subr.mxu0 0.0
    %752 = vmatpush2.msra.mxu0 0.0
    %753 = vmatprep.subr.mxu0 0.0
    %754 = vmatpush2.msra.mxu0 0.0
    %755 = vmatprep.subr.mxu0 0.0
    %756 = vmatpush2.msra.mxu0 0.0
    %757 = vmatprep.subr.mxu0 0.0
    %758 = vmatpush2.msra.mxu0 0.0
    %759 = vmatprep.subr.mxu0 0.0
    %760 = vmatpush2.msra.mxu0 0.0
    %761 = vmatprep.subr.mxu0 0.0
    %762 = vmatpush2.msra.mxu0 0.0
    %763 = vmatprep.subr.mxu0 0.0
    %764 = vmatpush2.msra.mxu0 0.0
    %765 = vmatprep.subr.mxu0 0.0
    %766 = vmatpush2.msra.mxu0 0.0
    %767 = vmatprep.subr.mxu0 0.0
    %768 = vmatpush2.msra.mxu0 0.0
    %769 = vmatprep.mubr.f32.mxu0 0.0
    %770 = vmatmul.mubr.f32.gmra.mxu0 %v700
    %v771 = vpop.f32.mrf.mxu0
    %v772 = vadd.f32 0.0, %v771
    %v773 = vpop.f32.mrf.mxu0
    %774 = vmatprep.mubr.f32.mxu0 0.0
    %775 = vmatmul.mubr.f32.gmra.mxu0 %v703
    %v776 = vpop.f32.mrf.mxu0
    %v777 = vadd.f32 0.0, %v776
    %v778 = vpop.f32.mrf.mxu0
    %779 = vdwg.mxu0
    %780 = vrot.lane.b32.xlu0 %v172, 112
    %v781 = vpop.permute.xlu0 %780
    %782 = vrot.lane.b32.xlu0 %v177, 112
    %v783 = vpop.permute.xlu0 %782
    %784 = vrot.lane.b32.xlu0 %v268, 112
    %v785 = vpop.permute.xlu0 %784
    %786 = vrot.lane.b32.xlu0 %v273, 112
    %v787 = vpop.permute.xlu0 %786
    %v788 = vsel %vm382, %v781, 0
    %v790 = vsel %vm382, %v783, 0
    %v792 = vsel %vm382, %v785, 0
    %v794 = vsel %vm382, %v787, 0
    %796 = vmatprep.subr.mxu0 0.0
    %797 = vmatpush1.xpose.msra.mxu0 0.0
    %798 = vmatprep.subr.mxu0 0.0
    %799 = vmatpush1.xpose.msra.mxu0 0.0
    %800 = vmatprep.subr.mxu0 0.0
    %801 = vmatpush1.xpose.msra.mxu0 0.0
    %802 = vmatprep.subr.mxu0 0.0
    %803 = vmatpush1.xpose.msra.mxu0 0.0
    %804 = vmatprep.subr.mxu0 0.0
    %805 = vmatpush1.xpose.msra.mxu0 0.0
    %806 = vmatprep.subr.mxu0 0.0
    %807 = vmatpush1.xpose.msra.mxu0 0.0
    %808 = vmatprep.subr.mxu0 0.0
    %809 = vmatpush1.xpose.msra.mxu0 0.0
    %810 = vmatprep.subr.mxu0 0.0
    %811 = vmatpush1.xpose.msra.mxu0 0.0
    %812 = vmatprep.subr.mxu0 0.0
    %813 = vmatpush1.xpose.msra.mxu0 0.0
    %814 = vmatprep.subr.mxu0 0.0
    %815 = vmatpush1.xpose.msra.mxu0 0.0
    %816 = vmatprep.subr.mxu0 0.0
    %817 = vmatpush1.xpose.msra.mxu0 0.0
    %818 = vmatprep.subr.mxu0 0.0
    %819 = vmatpush1.xpose.msra.mxu0 0.0
    %820 = vmatprep.subr.mxu0 0.0
    %821 = vmatpush1.xpose.msra.mxu0 0.0
    %822 = vmatprep.subr.mxu0 0.0
    %823 = vmatpush1.xpose.msra.mxu0 0.0
    %824 = vmatprep.subr.mxu0 0.0
    %825 = vmatpush1.xpose.msra.mxu0 %v794
    %826 = vmatprep.subr.mxu0 0.0
    %827 = vmatpush1.xpose.msra.mxu0 %v792
    %828 = vmatprep.subr.mxu0 0.0
    %829 = vmatpush2.xpose.msra.mxu0 0.0
    %830 = vmatprep.subr.mxu0 0.0
    %831 = vmatpush2.xpose.msra.mxu0 0.0
    %832 = vmatprep.subr.mxu0 0.0
    %833 = vmatpush2.xpose.msra.mxu0 0.0
    %834 = vmatprep.subr.mxu0 0.0
    %835 = vmatpush2.xpose.msra.mxu0 0.0
    %836 = vmatprep.subr.mxu0 0.0
    %837 = vmatpush2.xpose.msra.mxu0 0.0
    %838 = vmatprep.subr.mxu0 0.0
    %839 = vmatpush2.xpose.msra.mxu0 0.0
    %840 = vmatprep.subr.mxu0 0.0
    %841 = vmatpush2.xpose.msra.mxu0 0.0
    %842 = vmatprep.subr.mxu0 0.0
    %843 = vmatpush2.xpose.msra.mxu0 0.0
    %844 = vmatprep.subr.mxu0 0.0
    %845 = vmatpush2.xpose.msra.mxu0 0.0
    %846 = vmatprep.subr.mxu0 0.0
    %847 = vmatpush2.xpose.msra.mxu0 0.0
    %848 = vmatprep.subr.mxu0 0.0
    %849 = vmatpush2.xpose.msra.mxu0 0.0
    %850 = vmatprep.subr.mxu0 0.0
    %851 = vmatpush2.xpose.msra.mxu0 0.0
    %852 = vmatprep.subr.mxu0 0.0
    %853 = vmatpush2.xpose.msra.mxu0 0.0
    %854 = vmatprep.subr.mxu0 0.0
    %855 = vmatpush2.xpose.msra.mxu0 0.0
    %856 = vmatprep.subr.mxu0 0.0
    %857 = vmatpush2.xpose.msra.mxu0 0.0
    %858 = vmatprep.subr.mxu0 0.0
    %859 = vmatpush2.xpose.msra.mxu0 0.0
    %860 = vmatprep.mubr.f32.mxu0 0.0
    %861 = vmatmul.mubr.f32.gmra.mxu0 %v788
    %v862 = vpop.f32.mrf.mxu0
    %v863 = vadd.f32 0.0, %v862
    %v864 = vpop.f32.mrf.mxu0
    %865 = vmatprep.mubr.f32.mxu0 0.0
    %866 = vmatmul.mubr.f32.gmra.mxu0 %v790
    %v867 = vpop.f32.mrf.mxu0
    %v868 = vadd.f32 0.0, %v867
    %v869 = vpop.f32.mrf.mxu0
    %870 = vdwg.mxu0
    %v871 = vmul.f32 %v863, 0.35355338
    %v872 = vmul.f32 %v868, 0.35355338
    %v873 = vsel %vm472, %v871, -inf
    %874 = vmax.xlane.f32.xlu0 %v873
    %v875 = vpop.xlane.xlu0 %874
    %v876 = vsel %vm472, %v872, -inf
    %877 = vmax.xlane.f32.xlu0 %v876
    %v878 = vpop.xlane.xlu0 %877
    %v879 = vsub.f32 %v871, %v875
    %v880 = vsub.f32 %v872, %v878
    %v881 = vmul.f32 %v879, 1.442695
    %v882 = vpow.pop %v881
    %v883 = vmul.f32 %v880, 1.442695
    %v884 = vpow.pop %v883
    %v885 = vsel %vm472, %v882, 0.0
    %886 = vadd.xlane.f32.xlu0 %v885
    %v887 = vpop.xlane.xlu0 %886
    %v888 = vsel %vm472, %v884, 0.0
    %889 = vadd.xlane.f32.xlu0 %v888
    %v890 = vpop.xlane.xlu0 %889
    %v891 = vrcp.pop %v887
    %v892 = vrcp.pop %v890
    %v893 = vmul.f32 %v882, %v891
    %v894 = vmul.f32 %v884, %v892
    %895 = vrot.lane.b32.xlu0 %v364, 112
    %v896 = vpop.permute.xlu0 %895
    %897 = vrot.lane.b32.xlu0 %v369, 112
    %v898 = vpop.permute.xlu0 %897
    %v902 = vsel %vm472, %v893, 0
    %v905 = vsel %vm472, %v894, 0
    %907 = vmatprep.subr.mxu0 0.0
    %908 = vmatpush1.msra.mxu0 0.0
    %909 = vmatprep.subr.mxu0 0.0
    %910 = vmatpush1.msra.mxu0 0.0
    %911 = vmatprep.subr.mxu0 0.0
    %912 = vmatpush1.msra.mxu0 0.0
    %913 = vmatprep.subr.mxu0 0.0
    %914 = vmatpush1.msra.mxu0 0.0
    %915 = vmatprep.subr.mxu0 0.0
    %916 = vmatpush1.msra.mxu0 0.0
    %917 = vmatprep.subr.mxu0 0.0
    %918 = vmatpush1.msra.mxu0 0.0
    %919 = vmatprep.subr.mxu0 0.0
    %920 = vmatpush1.msra.mxu0 0.0
    %921 = vmatprep.subr.mxu0 0.0
    %922 = vmatpush1.msra.mxu0 0.0
    %923 = vmatprep.subr.mxu0 0.0
    %924 = vmatpush1.msra.mxu0 0.0
    %925 = vmatprep.subr.mxu0 0.0
    %926 = vmatpush1.msra.mxu0 0.0
    %927 = vmatprep.subr.mxu0 0.0
    %928 = vmatpush1.msra.mxu0 0.0
    %929 = vmatprep.subr.mxu0 0.0
    %930 = vmatpush1.msra.mxu0 0.0
    %931 = vmatprep.subr.mxu0 0.0
    %932 = vmatpush1.msra.mxu0 0.0
    %933 = vmatprep.subr.mxu0 0.0
    %934 = vmatpush1.msra.mxu0 0.0
    %935 = vmatprep.subr.mxu0 0.0
    %936 = vmatpush1.msra.mxu0 %v898
    %937 = vmatprep.subr.mxu0 0.0
    %938 = vmatpush1.msra.mxu0 %v896
    %939 = vmatprep.subr.mxu0 0.0
    %940 = vmatpush2.msra.mxu0 0.0
    %941 = vmatprep.subr.mxu0 0.0
    %942 = vmatpush2.msra.mxu0 0.0
    %943 = vmatprep.subr.mxu0 0.0
    %944 = vmatpush2.msra.mxu0 0.0
    %945 = vmatprep.subr.mxu0 0.0
    %946 = vmatpush2.msra.mxu0 0.0
    %947 = vmatprep.subr.mxu0 0.0
    %948 = vmatpush2.msra.mxu0 0.0
    %949 = vmatprep.subr.mxu0 0.0
    %950 = vmatpush2.msra.mxu0 0.0
    %951 = vmatprep.subr.mxu0 0.0
    %952 = vmatpush2.msra.mxu0 0.0
    %953 = vmatprep.subr.mxu0 0.0
    %954 = vmatpush2.msra.mxu0 0.0
    %955 = vmatprep.subr.mxu0 0.0
    %956 = vmatpush2.msra.mxu0 0.0
    %957 = vmatprep.subr.mxu0 0.0
    %958 = vmatpush2.msra.mxu0 0.0
    %959 = vmatprep.subr.mxu0 0.0
    %960 = vmatpush2.msra.mxu0 0.0
    %961 = vmatprep.subr.mxu0 0.0
    %962 = vmatpush2.msra.mxu0 0.0
    %963 = vmatprep.subr.mxu0 0.0
    %964 = vmatpush2.msra.mxu0 0.0
    %965 = vmatprep.subr.mxu0 0.0
    %966 = vmatpush2.msra.mxu0 0.0
    %967 = vmatprep.subr.mxu0 0.0
    %968 = vmatpush2.msra.mxu0 0.0
    %969 = vmatprep.subr.mxu0 0.0
    %970 = vmatpush2.msra.mxu0 0.0
    %971 = vmatprep.mubr.f32.mxu0 0.0
    %972 = vmatmul.mubr.f32.gmra.mxu0 %v902
    %v973 = vpop.f32.mrf.mxu0
    %v974 = vadd.f32 0.0, %v973
    %v975 = vpop.f32.mrf.mxu0
    %976 = vmatprep.mubr.f32.mxu0 0.0
    %977 = vmatmul.mubr.f32.gmra.mxu0 %v905
    %v978 = vpop.f32.mrf.mxu0
    %v979 = vadd.f32 0.0, %v978
    %v980 = vpop.f32.mrf.mxu0
    %981 = vdwg.mxu0
    %982 = vrot.lane.b32.xlu0 %v172, 104
    %v983 = vpop.permute.xlu0 %982
    %984 = vrot.lane.b32.xlu0 %v177, 104
    %v985 = vpop.permute.xlu0 %984
    %986 = vrot.lane.b32.xlu0 %v268, 104
    %v987 = vpop.permute.xlu0 %986
    %988 = vrot.lane.b32.xlu0 %v273, 104
    %v989 = vpop.permute.xlu0 %988
    %v990 = vsel %vm382, %v983, 0
    %v992 = vsel %vm382, %v985, 0
    %v994 = vsel %vm382, %v987, 0
    %v996 = vsel %vm382, %v989, 0
    %998 = vmatprep.subr.mxu0 0.0
    %999 = vmatpush1.xpose.msra.mxu0 0.0
    %1000 = vmatprep.subr.mxu0 0.0
    %1001 = vmatpush1.xpose.msra.mxu0 0.0
    %1002 = vmatprep.subr.mxu0 0.0
    %1003 = vmatpush1.xpose.msra.mxu0 0.0
    %1004 = vmatprep.subr.mxu0 0.0
    %1005 = vmatpush1.xpose.msra.mxu0 0.0
    %1006 = vmatprep.subr.mxu0 0.0
    %1007 = vmatpush1.xpose.msra.mxu0 0.0
    %1008 = vmatprep.subr.mxu0 0.0
    %1009 = vmatpush1.xpose.msra.mxu0 0.0
    %1010 = vmatprep.subr.mxu0 0.0
    %1011 = vmatpush1.xpose.msra.mxu0 0.0
    %1012 = vmatprep.subr.mxu0 0.0
    %1013 = vmatpush1.xpose.msra.mxu0 0.0
    %1014 = vmatprep.subr.mxu0 0.0
    %1015 = vmatpush1.xpose.msra.mxu0 0.0
    %1016 = vmatprep.subr.mxu0 0.0
    %1017 = vmatpush1.xpose.msra.mxu0 0.0
    %1018 = vmatprep.subr.mxu0 0.0
    %1019 = vmatpush1.xpose.msra.mxu0 0.0
    %1020 = vmatprep.subr.mxu0 0.0
    %1021 = vmatpush1.xpose.msra.mxu0 0.0
    %1022 = vmatprep.subr.mxu0 0.0
    %1023 = vmatpush1.xpose.msra.mxu0 0.0
    %1024 = vmatprep.subr.mxu0 0.0
    %1025 = vmatpush1.xpose.msra.mxu0 0.0
    %1026 = vmatprep.subr.mxu0 0.0
    %1027 = vmatpush1.xpose.msra.mxu0 %v996
    %1028 = vmatprep.subr.mxu0 0.0
    %1029 = vmatpush1.xpose.msra.mxu0 %v994
    %1030 = vmatprep.subr.mxu0 0.0
    %1031 = vmatpush2.xpose.msra.mxu0 0.0
    %1032 = vmatprep.subr.mxu0 0.0
    %1033 = vmatpush2.xpose.msra.mxu0 0.0
    %1034 = vmatprep.subr.mxu0 0.0
    %1035 = vmatpush2.xpose.msra.mxu0 0.0
    %1036 = vmatprep.subr.mxu0 0.0
    %1037 = vmatpush2.xpose.msra.mxu0 0.0
    %1038 = vmatprep.subr.mxu0 0.0
    %1039 = vmatpush2.xpose.msra.mxu0 0.0
    %1040 = vmatprep.subr.mxu0 0.0
    %1041 = vmatpush2.xpose.msra.mxu0 0.0
    %1042 = vmatprep.subr.mxu0 0.0
    %1043 = vmatpush2.xpose.msra.mxu0 0.0
    %1044 = vmatprep.subr.mxu0 0.0
    %1045 = vmatpush2.xpose.msra.mxu0 0.0
    %1046 = vmatprep.subr.mxu0 0.0
    %1047 = vmatpush2.xpose.msra.mxu0 0.0
    %1048 = vmatprep.subr.mxu0 0.0
    %1049 = vmatpush2.xpose.msra.mxu0 0.0
    %1050 = vmatprep.subr.mxu0 0.0
    %1051 = vmatpush2.xpose.msra.mxu0 0.0
    %1052 = vmatprep.subr.mxu0 0.0
    %1053 = vmatpush2.xpose.msra.mxu0 0.0
    %1054 = vmatprep.subr.mxu0 0.0
    %1055 = vmatpush2.xpose.msra.mxu0 0.0
    %1056 = vmatprep.subr.mxu0 0.0
    %1057 = vmatpush2.xpose.msra.mxu0 0.0
    %1058 = vmatprep.subr.mxu0 0.0
    %1059 = vmatpush2.xpose.msra.mxu0 0.0
    %1060 = vmatprep.subr.mxu0 0.0
    %1061 = vmatpush2.xpose.msra.mxu0 0.0
    %1062 = vmatprep.mubr.f32.mxu0 0.0
    %1063 = vmatmul.mubr.f32.gmra.mxu0 %v990
    %v1064 = vpop.f32.mrf.mxu0
    %v1065 = vadd.f32 0.0, %v1064
    %v1066 = vpop.f32.mrf.mxu0
    %1067 = vmatprep.mubr.f32.mxu0 0.0
    %1068 = vmatmul.mubr.f32.gmra.mxu0 %v992
    %v1069 = vpop.f32.mrf.mxu0
    %v1070 = vadd.f32 0.0, %v1069
    %v1071 = vpop.f32.mrf.mxu0
    %1072 = vdwg.mxu0
    %v1073 = vmul.f32 %v1065, 0.35355338
    %v1074 = vmul.f32 %v1070, 0.35355338
    %v1075 = vsel %vm472, %v1073, -inf
    %1076 = vmax.xlane.f32.xlu0 %v1075
    %v1077 = vpop.xlane.xlu0 %1076
    %v1078 = vsel %vm472, %v1074, -inf
    %1079 = vmax.xlane.f32.xlu0 %v1078
    %v1080 = vpop.xlane.xlu0 %1079
    %v1081 = vsub.f32 %v1073, %v1077
    %v1082 = vsub.f32 %v1074, %v1080
    %v1083 = vmul.f32 %v1081, 1.442695
    %v1084 = vpow.pop %v1083
    %v1085 = vmul.f32 %v1082, 1.442695
    %v1086 = vpow.pop %v1085
    %v1087 = vsel %vm472, %v1084, 0.0
    %1088 = vadd.xlane.f32.xlu0 %v1087
    %v1089 = vpop.xlane.xlu0 %1088
    %v1090 = vsel %vm472, %v1086, 0.0
    %1091 = vadd.xlane.f32.xlu0 %v1090
    %v1092 = vpop.xlane.xlu0 %1091
    %v1093 = vrcp.pop %v1089
    %v1094 = vrcp.pop %v1092
    %v1095 = vmul.f32 %v1084, %v1093
    %v1096 = vmul.f32 %v1086, %v1094
    %1097 = vrot.lane.b32.xlu0 %v364, 104
    %v1098 = vpop.permute.xlu0 %1097
    %1099 = vrot.lane.b32.xlu0 %v369, 104
    %v1100 = vpop.permute.xlu0 %1099
    %v1104 = vsel %vm472, %v1095, 0
    %v1107 = vsel %vm472, %v1096, 0
    %1109 = vmatprep.subr.mxu0 0.0
    %1110 = vmatpush1.msra.mxu0 0.0
    %1111 = vmatprep.subr.mxu0 0.0
    %1112 = vmatpush1.msra.mxu0 0.0
    %1113 = vmatprep.subr.mxu0 0.0
    %1114 = vmatpush1.msra.mxu0 0.0
    %1115 = vmatprep.subr.mxu0 0.0
    %1116 = vmatpush1.msra.mxu0 0.0
    %1117 = vmatprep.subr.mxu0 0.0
    %1118 = vmatpush1.msra.mxu0 0.0
    %1119 = vmatprep.subr.mxu0 0.0
    %1120 = vmatpush1.msra.mxu0 0.0
    %1121 = vmatprep.subr.mxu0 0.0
    %1122 = vmatpush1.msra.mxu0 0.0
    %1123 = vmatprep.subr.mxu0 0.0
    %1124 = vmatpush1.msra.mxu0 0.0
    %1125 = vmatprep.subr.mxu0 0.0
    %1126 = vmatpush1.msra.mxu0 0.0
    %1127 = vmatprep.subr.mxu0 0.0
    %1128 = vmatpush1.msra.mxu0 0.0
    %1129 = vmatprep.subr.mxu0 0.0
    %1130 = vmatpush1.msra.mxu0 0.0
    %1131 = vmatprep.subr.mxu0 0.0
    %1132 = vmatpush1.msra.mxu0 0.0
    %1133 = vmatprep.subr.mxu0 0.0
    %1134 = vmatpush1.msra.mxu0 0.0
    %1135 = vmatprep.subr.mxu0 0.0
    %1136 = vmatpush1.msra.mxu0 0.0
    %1137 = vmatprep.subr.mxu0 0.0
    %1138 = vmatpush1.msra.mxu0 %v1100
    %1139 = vmatprep.subr.mxu0 0.0
    %1140 = vmatpush1.msra.mxu0 %v1098
    %1141 = vmatprep.subr.mxu0 0.0
    %1142 = vmatpush2.msra.mxu0 0.0
    %1143 = vmatprep.subr.mxu0 0.0
    %1144 = vmatpush2.msra.mxu0 0.0
    %1145 = vmatprep.subr.mxu0 0.0
    %1146 = vmatpush2.msra.mxu0 0.0
    %1147 = vmatprep.subr.mxu0 0.0
    %1148 = vmatpush2.msra.mxu0 0.0
    %1149 = vmatprep.subr.mxu0 0.0
    %1150 = vmatpush2.msra.mxu0 0.0
    %1151 = vmatprep.subr.mxu0 0.0
    %1152 = vmatpush2.msra.mxu0 0.0
    %1153 = vmatprep.subr.mxu0 0.0
    %1154 = vmatpush2.msra.mxu0 0.0
    %1155 = vmatprep.subr.mxu0 0.0
    %1156 = vmatpush2.msra.mxu0 0.0
    %1157 = vmatprep.subr.mxu0 0.0
    %1158 = vmatpush2.msra.mxu0 0.0
    %1159 = vmatprep.subr.mxu0 0.0
    %1160 = vmatpush2.msra.mxu0 0.0
    %1161 = vmatprep.subr.mxu0 0.0
    %1162 = vmatpush2.msra.mxu0 0.0
    %1163 = vmatprep.subr.mxu0 0.0
    %1164 = vmatpush2.msra.mxu0 0.0
    %1165 = vmatprep.subr.mxu0 0.0
    %1166 = vmatpush2.msra.mxu0 0.0
    %1167 = vmatprep.subr.mxu0 0.0
    %1168 = vmatpush2.msra.mxu0 0.0
    %1169 = vmatprep.subr.mxu0 0.0
    %1170 = vmatpush2.msra.mxu0 0.0
    %1171 = vmatprep.subr.mxu0 0.0
    %1172 = vmatpush2.msra.mxu0 0.0
    %1173 = vmatprep.mubr.f32.mxu0 0.0
    %1174 = vmatmul.mubr.f32.gmra.mxu0 %v1104
    %v1175 = vpop.f32.mrf.mxu0
    %v1176 = vadd.f32 0.0, %v1175
    %v1177 = vpop.f32.mrf.mxu0
    %1178 = vmatprep.mubr.f32.mxu0 0.0
    %1179 = vmatmul.mubr.f32.gmra.mxu0 %v1107
    %v1180 = vpop.f32.mrf.mxu0
    %v1181 = vadd.f32 0.0, %v1180
    %v1182 = vpop.f32.mrf.mxu0
    %1183 = vdwg.mxu0
    %1186 = vrot.lane.b32.xlu0 %v772, 8
    %v1187 = vpop.permute.xlu0 %1186
    %1188 = vrot.lane.b32.xlu0 %v777, 8
    %v1189 = vpop.permute.xlu0 %1188
    %1194 = vrot.lane.b32.xlu0 %v974, 16
    %v1195 = vpop.permute.xlu0 %1194
    %1196 = vrot.lane.b32.xlu0 %v979, 16
    %v1197 = vpop.permute.xlu0 %1196
    %1202 = vrot.lane.b32.xlu0 %v1176, 24
    %v1203 = vpop.permute.xlu0 %1202
    %1204 = vrot.lane.b32.xlu0 %v1181, 24
    %v1205 = vpop.permute.xlu0 %1204
    %v1208 = vsel %vm382, %v568, %v1187
    %v1209 = vsel %vm382, %v573, %v1189
    %v1210 = vsel %vm472, %v1208, %v1195
    %v1211 = vsel %vm472, %v1209, %v1197
    %vm1212 = vcmask 195584
    %v1213 = vsel %vm1212, %v1210, %v1203
    %v1214 = vsel %vm1212, %v1211, %v1205
    %v1216 = vsel %vm382, %v182, 0
    %v1219 = vsel %vm382, %v187, 0
    %v1222 = vsel %vm382, %v278, 0
    %v1225 = vsel %vm382, %v283, 0
    %1227 = vmatprep.subr.mxu0 0.0
    %1228 = vmatpush1.xpose.msra.mxu0 0.0
    %1229 = vmatprep.subr.mxu0 0.0
    %1230 = vmatpush1.xpose.msra.mxu0 0.0
    %1231 = vmatprep.subr.mxu0 0.0
    %1232 = vmatpush1.xpose.msra.mxu0 0.0
    %1233 = vmatprep.subr.mxu0 0.0
    %1234 = vmatpush1.xpose.msra.mxu0 0.0
    %1235 = vmatprep.subr.mxu0 0.0
    %1236 = vmatpush1.xpose.msra.mxu0 0.0
    %1237 = vmatprep.subr.mxu0 0.0
    %1238 = vmatpush1.xpose.msra.mxu0 0.0
    %1239 = vmatprep.subr.mxu0 0.0
    %1240 = vmatpush1.xpose.msra.mxu0 0.0
    %1241 = vmatprep.subr.mxu0 0.0
    %1242 = vmatpush1.xpose.msra.mxu0 0.0
    %1243 = vmatprep.subr.mxu0 0.0
    %1244 = vmatpush1.xpose.msra.mxu0 0.0
    %1245 = vmatprep.subr.mxu0 0.0
    %1246 = vmatpush1.xpose.msra.mxu0 0.0
    %1247 = vmatprep.subr.mxu0 0.0
    %1248 = vmatpush1.xpose.msra.mxu0 0.0
    %1249 = vmatprep.subr.mxu0 0.0
    %1250 = vmatpush1.xpose.msra.mxu0 0.0
    %1251 = vmatprep.subr.mxu0 0.0
    %1252 = vmatpush1.xpose.msra.mxu0 0.0
    %1253 = vmatprep.subr.mxu0 0.0
    %1254 = vmatpush1.xpose.msra.mxu0 0.0
    %1255 = vmatprep.subr.mxu0 0.0
    %1256 = vmatpush1.xpose.msra.mxu0 %v1225
    %1257 = vmatprep.subr.mxu0 0.0
    %1258 = vmatpush1.xpose.msra.mxu0 %v1222
    %1259 = vmatprep.subr.mxu0 0.0
    %1260 = vmatpush2.xpose.msra.mxu0 0.0
    %1261 = vmatprep.subr.mxu0 0.0
    %1262 = vmatpush2.xpose.msra.mxu0 0.0
    %1263 = vmatprep.subr.mxu0 0.0
    %1264 = vmatpush2.xpose.msra.mxu0 0.0
    %1265 = vmatprep.subr.mxu0 0.0
    %1266 = vmatpush2.xpose.msra.mxu0 0.0
    %1267 = vmatprep.subr.mxu0 0.0
    %1268 = vmatpush2.xpose.msra.mxu0 0.0
    %1269 = vmatprep.subr.mxu0 0.0
    %1270 = vmatpush2.xpose.msra.mxu0 0.0
    %1271 = vmatprep.subr.mxu0 0.0
    %1272 = vmatpush2.xpose.msra.mxu0 0.0
    %1273 = vmatprep.subr.mxu0 0.0
    %1274 = vmatpush2.xpose.msra.mxu0 0.0
    %1275 = vmatprep.subr.mxu0 0.0
    %1276 = vmatpush2.xpose.msra.mxu0 0.0
    %1277 = vmatprep.subr.mxu0 0.0
    %1278 = vmatpush2.xpose.msra.mxu0 0.0
    %1279 = vmatprep.subr.mxu0 0.0
    %1280 = vmatpush2.xpose.msra.mxu0 0.0
    %1281 = vmatprep.subr.mxu0 0.0
    %1282 = vmatpush2.xpose.msra.mxu0 0.0
    %1283 = vmatprep.subr.mxu0 0.0
    %1284 = vmatpush2.xpose.msra.mxu0 0.0
    %1285 = vmatprep.subr.mxu0 0.0
    %1286 = vmatpush2.xpose.msra.mxu0 0.0
    %1287 = vmatprep.subr.mxu0 0.0
    %1288 = vmatpush2.xpose.msra.mxu0 0.0
    %1289 = vmatprep.subr.mxu0 0.0
    %1290 = vmatpush2.xpose.msra.mxu0 0.0
    %1291 = vmatprep.mubr.f32.mxu0 0.0
    %1292 = vmatmul.mubr.f32.gmra.mxu0 %v1216
    %v1293 = vpop.f32.mrf.mxu0
    %v1294 = vadd.f32 0.0, %v1293
    %v1295 = vpop.f32.mrf.mxu0
    %1296 = vmatprep.mubr.f32.mxu0 0.0
    %1297 = vmatmul.mubr.f32.gmra.mxu0 %v1219
    %v1298 = vpop.f32.mrf.mxu0
    %v1299 = vadd.f32 0.0, %v1298
    %v1300 = vpop.f32.mrf.mxu0
    %1301 = vdwg.mxu0
    %v1302 = vmul.f32 %v1294, 0.35355338
    %v1303 = vmul.f32 %v1299, 0.35355338
    %v1304 = vsel %vm472, %v1302, -inf
    %1305 = vmax.xlane.f32.xlu0 %v1304
    %v1306 = vpop.xlane.xlu0 %1305
    %v1307 = vsel %vm472, %v1303, -inf
    %1308 = vmax.xlane.f32.xlu0 %v1307
    %v1309 = vpop.xlane.xlu0 %1308
    %v1310 = vsub.f32 %v1302, %v1306
    %v1311 = vsub.f32 %v1303, %v1309
    %v1312 = vmul.f32 %v1310, 1.442695
    %v1313 = vpow.pop %v1312
    %v1314 = vmul.f32 %v1311, 1.442695
    %v1315 = vpow.pop %v1314
    %v1316 = vsel %vm472, %v1313, 0.0
    %1317 = vadd.xlane.f32.xlu0 %v1316
    %v1318 = vpop.xlane.xlu0 %1317
    %v1319 = vsel %vm472, %v1315, 0.0
    %1320 = vadd.xlane.f32.xlu0 %v1319
    %v1321 = vpop.xlane.xlu0 %1320
    %v1322 = vrcp.pop %v1318
    %v1323 = vrcp.pop %v1321
    %v1324 = vmul.f32 %v1313, %v1322
    %v1325 = vmul.f32 %v1315, %v1323
    %v1327 = vsel %vm472, %v1324, 0
    %v1330 = vsel %vm472, %v1325, 0
    %1332 = vmatprep.subr.mxu0 0.0
    %1333 = vmatpush1.msra.mxu0 0.0
    %1334 = vmatprep.subr.mxu0 0.0
    %1335 = vmatpush1.msra.mxu0 0.0
    %1336 = vmatprep.subr.mxu0 0.0
    %1337 = vmatpush1.msra.mxu0 0.0
    %1338 = vmatprep.subr.mxu0 0.0
    %1339 = vmatpush1.msra.mxu0 0.0
    %1340 = vmatprep.subr.mxu0 0.0
    %1341 = vmatpush1.msra.mxu0 0.0
    %1342 = vmatprep.subr.mxu0 0.0
    %1343 = vmatpush1.msra.mxu0 0.0
    %1344 = vmatprep.subr.mxu0 0.0
    %1345 = vmatpush1.msra.mxu0 0.0
    %1346 = vmatprep.subr.mxu0 0.0
    %1347 = vmatpush1.msra.mxu0 0.0
    %1348 = vmatprep.subr.mxu0 0.0
    %1349 = vmatpush1.msra.mxu0 0.0
    %1350 = vmatprep.subr.mxu0 0.0
    %1351 = vmatpush1.msra.mxu0 0.0
    %1352 = vmatprep.subr.mxu0 0.0
    %1353 = vmatpush1.msra.mxu0 0.0
    %1354 = vmatprep.subr.mxu0 0.0
    %1355 = vmatpush1.msra.mxu0 0.0
    %1356 = vmatprep.subr.mxu0 0.0
    %1357 = vmatpush1.msra.mxu0 0.0
    %1358 = vmatprep.subr.mxu0 0.0
    %1359 = vmatpush1.msra.mxu0 0.0
    %1360 = vmatprep.subr.mxu0 0.0
    %1361 = vmatpush1.msra.mxu0 %v379
    %1362 = vmatprep.subr.mxu0 0.0
    %1363 = vmatpush1.msra.mxu0 %v374
    %1364 = vmatprep.subr.mxu0 0.0
    %1365 = vmatpush2.msra.mxu0 0.0
    %1366 = vmatprep.subr.mxu0 0.0
    %1367 = vmatpush2.msra.mxu0 0.0
    %1368 = vmatprep.subr.mxu0 0.0
    %1369 = vmatpush2.msra.mxu0 0.0
    %1370 = vmatprep.subr.mxu0 0.0
    %1371 = vmatpush2.msra.mxu0 0.0
    %1372 = vmatprep.subr.mxu0 0.0
    %1373 = vmatpush2.msra.mxu0 0.0
    %1374 = vmatprep.subr.mxu0 0.0
    %1375 = vmatpush2.msra.mxu0 0.0
    %1376 = vmatprep.subr.mxu0 0.0
    %1377 = vmatpush2.msra.mxu0 0.0
    %1378 = vmatprep.subr.mxu0 0.0
    %1379 = vmatpush2.msra.mxu0 0.0
    %1380 = vmatprep.subr.mxu0 0.0
    %1381 = vmatpush2.msra.mxu0 0.0
    %1382 = vmatprep.subr.mxu0 0.0
    %1383 = vmatpush2.msra.mxu0 0.0
    %1384 = vmatprep.subr.mxu0 0.0
    %1385 = vmatpush2.msra.mxu0 0.0
    %1386 = vmatprep.subr.mxu0 0.0
    %1387 = vmatpush2.msra.mxu0 0.0
    %1388 = vmatprep.subr.mxu0 0.0
    %1389 = vmatpush2.msra.mxu0 0.0
    %1390 = vmatprep.subr.mxu0 0.0
    %1391 = vmatpush2.msra.mxu0 0.0
    %1392 = vmatprep.subr.mxu0 0.0
    %1393 = vmatpush2.msra.mxu0 0.0
    %1394 = vmatprep.subr.mxu0 0.0
    %1395 = vmatpush2.msra.mxu0 0.0
    %1396 = vmatprep.mubr.f32.mxu0 0.0
    %1397 = vmatmul.mubr.f32.gmra.mxu0 %v1327
    %v1398 = vpop.f32.mrf.mxu0
    %v1399 = vadd.f32 0.0, %v1398
    %v1400 = vpop.f32.mrf.mxu0
    %1401 = vmatprep.mubr.f32.mxu0 0.0
    %1402 = vmatmul.mubr.f32.gmra.mxu0 %v1330
    %v1403 = vpop.f32.mrf.mxu0
    %v1404 = vadd.f32 0.0, %v1403
    %v1405 = vpop.f32.mrf.mxu0
    %1406 = vdwg.mxu0
    %1407 = vrot.lane.b32.xlu0 %v182, 120
    %v1408 = vpop.permute.xlu0 %1407
    %1409 = vrot.lane.b32.xlu0 %v187, 120
    %v1410 = vpop.permute.xlu0 %1409
    %1411 = vrot.lane.b32.xlu0 %v278, 120
    %v1412 = vpop.permute.xlu0 %1411
    %1413 = vrot.lane.b32.xlu0 %v283, 120
    %v1414 = vpop.permute.xlu0 %1413
    %v1415 = vsel %vm382, %v1408, 0
    %v1417 = vsel %vm382, %v1410, 0
    %v1419 = vsel %vm382, %v1412, 0
    %v1421 = vsel %vm382, %v1414, 0
    %1423 = vmatprep.subr.mxu0 0.0
    %1424 = vmatpush1.xpose.msra.mxu0 0.0
    %1425 = vmatprep.subr.mxu0 0.0
    %1426 = vmatpush1.xpose.msra.mxu0 0.0
    %1427 = vmatprep.subr.mxu0 0.0
    %1428 = vmatpush1.xpose.msra.mxu0 0.0
    %1429 = vmatprep.subr.mxu0 0.0
    %1430 = vmatpush1.xpose.msra.mxu0 0.0
    %1431 = vmatprep.subr.mxu0 0.0
    %1432 = vmatpush1.xpose.msra.mxu0 0.0
    %1433 = vmatprep.subr.mxu0 0.0
    %1434 = vmatpush1.xpose.msra.mxu0 0.0
    %1435 = vmatprep.subr.mxu0 0.0
    %1436 = vmatpush1.xpose.msra.mxu0 0.0
    %1437 = vmatprep.subr.mxu0 0.0
    %1438 = vmatpush1.xpose.msra.mxu0 0.0
    %1439 = vmatprep.subr.mxu0 0.0
    %1440 = vmatpush1.xpose.msra.mxu0 0.0
    %1441 = vmatprep.subr.mxu0 0.0
    %1442 = vmatpush1.xpose.msra.mxu0 0.0
    %1443 = vmatprep.subr.mxu0 0.0
    %1444 = vmatpush1.xpose.msra.mxu0 0.0
    %1445 = vmatprep.subr.mxu0 0.0
    %1446 = vmatpush1.xpose.msra.mxu0 0.0
    %1447 = vmatprep.subr.mxu0 0.0
    %1448 = vmatpush1.xpose.msra.mxu0 0.0
    %1449 = vmatprep.subr.mxu0 0.0
    %1450 = vmatpush1.xpose.msra.mxu0 0.0
    %1451 = vmatprep.subr.mxu0 0.0
    %1452 = vmatpush1.xpose.msra.mxu0 %v1421
    %1453 = vmatprep.subr.mxu0 0.0
    %1454 = vmatpush1.xpose.msra.mxu0 %v1419
    %1455 = vmatprep.subr.mxu0 0.0
    %1456 = vmatpush2.xpose.msra.mxu0 0.0
    %1457 = vmatprep.subr.mxu0 0.0
    %1458 = vmatpush2.xpose.msra.mxu0 0.0
    %1459 = vmatprep.subr.mxu0 0.0
    %1460 = vmatpush2.xpose.msra.mxu0 0.0
    %1461 = vmatprep.subr.mxu0 0.0
    %1462 = vmatpush2.xpose.msra.mxu0 0.0
    %1463 = vmatprep.subr.mxu0 0.0
    %1464 = vmatpush2.xpose.msra.mxu0 0.0
    %1465 = vmatprep.subr.mxu0 0.0
    %1466 = vmatpush2.xpose.msra.mxu0 0.0
    %1467 = vmatprep.subr.mxu0 0.0
    %1468 = vmatpush2.xpose.msra.mxu0 0.0
    %1469 = vmatprep.subr.mxu0 0.0
    %1470 = vmatpush2.xpose.msra.mxu0 0.0
    %1471 = vmatprep.subr.mxu0 0.0
    %1472 = vmatpush2.xpose.msra.mxu0 0.0
    %1473 = vmatprep.subr.mxu0 0.0
    %1474 = vmatpush2.xpose.msra.mxu0 0.0
    %1475 = vmatprep.subr.mxu0 0.0
    %1476 = vmatpush2.xpose.msra.mxu0 0.0
    %1477 = vmatprep.subr.mxu0 0.0
    %1478 = vmatpush2.xpose.msra.mxu0 0.0
    %1479 = vmatprep.subr.mxu0 0.0
    %1480 = vmatpush2.xpose.msra.mxu0 0.0
    %1481 = vmatprep.subr.mxu0 0.0
    %1482 = vmatpush2.xpose.msra.mxu0 0.0
    %1483 = vmatprep.subr.mxu0 0.0
    %1484 = vmatpush2.xpose.msra.mxu0 0.0
    %1485 = vmatprep.subr.mxu0 0.0
    %1486 = vmatpush2.xpose.msra.mxu0 0.0
    %1487 = vmatprep.mubr.f32.mxu0 0.0
    %1488 = vmatmul.mubr.f32.gmra.mxu0 %v1415
    %v1489 = vpop.f32.mrf.mxu0
    %v1490 = vadd.f32 0.0, %v1489
    %v1491 = vpop.f32.mrf.mxu0
    %1492 = vmatprep.mubr.f32.mxu0 0.0
    %1493 = vmatmul.mubr.f32.gmra.mxu0 %v1417
    %v1494 = vpop.f32.mrf.mxu0
    %v1495 = vadd.f32 0.0, %v1494
    %v1496 = vpop.f32.mrf.mxu0
    %1497 = vdwg.mxu0
    %v1498 = vmul.f32 %v1490, 0.35355338
    %v1499 = vmul.f32 %v1495, 0.35355338
    %v1500 = vsel %vm472, %v1498, -inf
    %1501 = vmax.xlane.f32.xlu0 %v1500
    %v1502 = vpop.xlane.xlu0 %1501
    %v1503 = vsel %vm472, %v1499, -inf
    %1504 = vmax.xlane.f32.xlu0 %v1503
    %v1505 = vpop.xlane.xlu0 %1504
    %v1506 = vsub.f32 %v1498, %v1502
    %v1507 = vsub.f32 %v1499, %v1505
    %v1508 = vmul.f32 %v1506, 1.442695
    %v1509 = vpow.pop %v1508
    %v1510 = vmul.f32 %v1507, 1.442695
    %v1511 = vpow.pop %v1510
    %v1512 = vsel %vm472, %v1509, 0.0
    %1513 = vadd.xlane.f32.xlu0 %v1512
    %v1514 = vpop.xlane.xlu0 %1513
    %v1515 = vsel %vm472, %v1511, 0.0
    %1516 = vadd.xlane.f32.xlu0 %v1515
    %v1517 = vpop.xlane.xlu0 %1516
    %v1518 = vrcp.pop %v1514
    %v1519 = vrcp.pop %v1517
    %v1520 = vmul.f32 %v1509, %v1518
    %v1521 = vmul.f32 %v1511, %v1519
    %1524 = vrot.lane.b32.xlu0 %v374, 120
    %v1525 = vpop.permute.xlu0 %1524
    %1526 = vrot.lane.b32.xlu0 %v379, 120
    %v1527 = vpop.permute.xlu0 %1526
    %v1531 = vsel %vm472, %v1520, 0
    %v1534 = vsel %vm472, %v1521, 0
    %1536 = vmatprep.subr.mxu0 0.0
    %1537 = vmatpush1.msra.mxu0 0.0
    %1538 = vmatprep.subr.mxu0 0.0
    %1539 = vmatpush1.msra.mxu0 0.0
    %1540 = vmatprep.subr.mxu0 0.0
    %1541 = vmatpush1.msra.mxu0 0.0
    %1542 = vmatprep.subr.mxu0 0.0
    %1543 = vmatpush1.msra.mxu0 0.0
    %1544 = vmatprep.subr.mxu0 0.0
    %1545 = vmatpush1.msra.mxu0 0.0
    %1546 = vmatprep.subr.mxu0 0.0
    %1547 = vmatpush1.msra.mxu0 0.0
    %1548 = vmatprep.subr.mxu0 0.0
    %1549 = vmatpush1.msra.mxu0 0.0
    %1550 = vmatprep.subr.mxu0 0.0
    %1551 = vmatpush1.msra.mxu0 0.0
    %1552 = vmatprep.subr.mxu0 0.0
    %1553 = vmatpush1.msra.mxu0 0.0
    %1554 = vmatprep.subr.mxu0 0.0
    %1555 = vmatpush1.msra.mxu0 0.0
    %1556 = vmatprep.subr.mxu0 0.0
    %1557 = vmatpush1.msra.mxu0 0.0
    %1558 = vmatprep.subr.mxu0 0.0
    %1559 = vmatpush1.msra.mxu0 0.0
    %1560 = vmatprep.subr.mxu0 0.0
    %1561 = vmatpush1.msra.mxu0 0.0
    %1562 = vmatprep.subr.mxu0 0.0
    %1563 = vmatpush1.msra.mxu0 0.0
    %1564 = vmatprep.subr.mxu0 0.0
    %1565 = vmatpush1.msra.mxu0 %v1527
    %1566 = vmatprep.subr.mxu0 0.0
    %1567 = vmatpush1.msra.mxu0 %v1525
    %1568 = vmatprep.subr.mxu0 0.0
    %1569 = vmatpush2.msra.mxu0 0.0
    %1570 = vmatprep.subr.mxu0 0.0
    %1571 = vmatpush2.msra.mxu0 0.0
    %1572 = vmatprep.subr.mxu0 0.0
    %1573 = vmatpush2.msra.mxu0 0.0
    %1574 = vmatprep.subr.mxu0 0.0
    %1575 = vmatpush2.msra.mxu0 0.0
    %1576 = vmatprep.subr.mxu0 0.0
    %1577 = vmatpush2.msra.mxu0 0.0
    %1578 = vmatprep.subr.mxu0 0.0
    %1579 = vmatpush2.msra.mxu0 0.0
    %1580 = vmatprep.subr.mxu0 0.0
    %1581 = vmatpush2.msra.mxu0 0.0
    %1582 = vmatprep.subr.mxu0 0.0
    %1583 = vmatpush2.msra.mxu0 0.0
    %1584 = vmatprep.subr.mxu0 0.0
    %1585 = vmatpush2.msra.mxu0 0.0
    %1586 = vmatprep.subr.mxu0 0.0
    %1587 = vmatpush2.msra.mxu0 0.0
    %1588 = vmatprep.subr.mxu0 0.0
    %1589 = vmatpush2.msra.mxu0 0.0
    %1590 = vmatprep.subr.mxu0 0.0
    %1591 = vmatpush2.msra.mxu0 0.0
    %1592 = vmatprep.subr.mxu0 0.0
    %1593 = vmatpush2.msra.mxu0 0.0
    %1594 = vmatprep.subr.mxu0 0.0
    %1595 = vmatpush2.msra.mxu0 0.0
    %1596 = vmatprep.subr.mxu0 0.0
    %1597 = vmatpush2.msra.mxu0 0.0
    %1598 = vmatprep.subr.mxu0 0.0
    %1599 = vmatpush2.msra.mxu0 0.0
    %1600 = vmatprep.mubr.f32.mxu0 0.0
    %1601 = vmatmul.mubr.f32.gmra.mxu0 %v1531
    %v1602 = vpop.f32.mrf.mxu0
    %v1603 = vadd.f32 0.0, %v1602
    %v1604 = vpop.f32.mrf.mxu0
    %1605 = vmatprep.mubr.f32.mxu0 0.0
    %1606 = vmatmul.mubr.f32.gmra.mxu0 %v1534
    %v1607 = vpop.f32.mrf.mxu0
    %v1608 = vadd.f32 0.0, %v1607
    %v1609 = vpop.f32.mrf.mxu0
    %1610 = vdwg.mxu0
    %1611 = vrot.lane.b32.xlu0 %v182, 112
    %v1612 = vpop.permute.xlu0 %1611
    %1613 = vrot.lane.b32.xlu0 %v187, 112
    %v1614 = vpop.permute.xlu0 %1613
    %1615 = vrot.lane.b32.xlu0 %v278, 112
    %v1616 = vpop.permute.xlu0 %1615
    %1617 = vrot.lane.b32.xlu0 %v283, 112
    %v1618 = vpop.permute.xlu0 %1617
    %v1619 = vsel %vm382, %v1612, 0
    %v1621 = vsel %vm382, %v1614, 0
    %v1623 = vsel %vm382, %v1616, 0
    %v1625 = vsel %vm382, %v1618, 0
    %1627 = vmatprep.subr.mxu0 0.0
    %1628 = vmatpush1.xpose.msra.mxu0 0.0
    %1629 = vmatprep.subr.mxu0 0.0
    %1630 = vmatpush1.xpose.msra.mxu0 0.0
    %1631 = vmatprep.subr.mxu0 0.0
    %1632 = vmatpush1.xpose.msra.mxu0 0.0
    %1633 = vmatprep.subr.mxu0 0.0
    %1634 = vmatpush1.xpose.msra.mxu0 0.0
    %1635 = vmatprep.subr.mxu0 0.0
    %1636 = vmatpush1.xpose.msra.mxu0 0.0
    %1637 = vmatprep.subr.mxu0 0.0
    %1638 = vmatpush1.xpose.msra.mxu0 0.0
    %1639 = vmatprep.subr.mxu0 0.0
    %1640 = vmatpush1.xpose.msra.mxu0 0.0
    %1641 = vmatprep.subr.mxu0 0.0
    %1642 = vmatpush1.xpose.msra.mxu0 0.0
    %1643 = vmatprep.subr.mxu0 0.0
    %1644 = vmatpush1.xpose.msra.mxu0 0.0
    %1645 = vmatprep.subr.mxu0 0.0
    %1646 = vmatpush1.xpose.msra.mxu0 0.0
    %1647 = vmatprep.subr.mxu0 0.0
    %1648 = vmatpush1.xpose.msra.mxu0 0.0
    %1649 = vmatprep.subr.mxu0 0.0
    %1650 = vmatpush1.xpose.msra.mxu0 0.0
    %1651 = vmatprep.subr.mxu0 0.0
    %1652 = vmatpush1.xpose.msra.mxu0 0.0
    %1653 = vmatprep.subr.mxu0 0.0
    %1654 = vmatpush1.xpose.msra.mxu0 0.0
    %1655 = vmatprep.subr.mxu0 0.0
    %1656 = vmatpush1.xpose.msra.mxu0 %v1625
    %1657 = vmatprep.subr.mxu0 0.0
    %1658 = vmatpush1.xpose.msra.mxu0 %v1623
    %1659 = vmatprep.subr.mxu0 0.0
    %1660 = vmatpush2.xpose.msra.mxu0 0.0
    %1661 = vmatprep.subr.mxu0 0.0
    %1662 = vmatpush2.xpose.msra.mxu0 0.0
    %1663 = vmatprep.subr.mxu0 0.0
    %1664 = vmatpush2.xpose.msra.mxu0 0.0
    %1665 = vmatprep.subr.mxu0 0.0
    %1666 = vmatpush2.xpose.msra.mxu0 0.0
    %1667 = vmatprep.subr.mxu0 0.0
    %1668 = vmatpush2.xpose.msra.mxu0 0.0
    %1669 = vmatprep.subr.mxu0 0.0
    %1670 = vmatpush2.xpose.msra.mxu0 0.0
    %1671 = vmatprep.subr.mxu0 0.0
    %1672 = vmatpush2.xpose.msra.mxu0 0.0
    %1673 = vmatprep.subr.mxu0 0.0
    %1674 = vmatpush2.xpose.msra.mxu0 0.0
    %1675 = vmatprep.subr.mxu0 0.0
    %1676 = vmatpush2.xpose.msra.mxu0 0.0
    %1677 = vmatprep.subr.mxu0 0.0
    %1678 = vmatpush2.xpose.msra.mxu0 0.0
    %1679 = vmatprep.subr.mxu0 0.0
    %1680 = vmatpush2.xpose.msra.mxu0 0.0
    %1681 = vmatprep.subr.mxu0 0.0
    %1682 = vmatpush2.xpose.msra.mxu0 0.0
    %1683 = vmatprep.subr.mxu0 0.0
    %1684 = vmatpush2.xpose.msra.mxu0 0.0
    %1685 = vmatprep.subr.mxu0 0.0
    %1686 = vmatpush2.xpose.msra.mxu0 0.0
    %1687 = vmatprep.subr.mxu0 0.0
    %1688 = vmatpush2.xpose.msra.mxu0 0.0
    %1689 = vmatprep.subr.mxu0 0.0
    %1690 = vmatpush2.xpose.msra.mxu0 0.0
    %1691 = vmatprep.mubr.f32.mxu0 0.0
    %1692 = vmatmul.mubr.f32.gmra.mxu0 %v1619
    %v1693 = vpop.f32.mrf.mxu0
    %v1694 = vadd.f32 0.0, %v1693
    %v1695 = vpop.f32.mrf.mxu0
    %1696 = vmatprep.mubr.f32.mxu0 0.0
    %1697 = vmatmul.mubr.f32.gmra.mxu0 %v1621
    %v1698 = vpop.f32.mrf.mxu0
    %v1699 = vadd.f32 0.0, %v1698
    %v1700 = vpop.f32.mrf.mxu0
    %1701 = vdwg.mxu0
    %v1702 = vmul.f32 %v1694, 0.35355338
    %v1703 = vmul.f32 %v1699, 0.35355338
    %v1704 = vsel %vm472, %v1702, -inf
    %1705 = vmax.xlane.f32.xlu0 %v1704
    %v1706 = vpop.xlane.xlu0 %1705
    %v1707 = vsel %vm472, %v1703, -inf
    %1708 = vmax.xlane.f32.xlu0 %v1707
    %v1709 = vpop.xlane.xlu0 %1708
    %v1710 = vsub.f32 %v1702, %v1706
    %v1711 = vsub.f32 %v1703, %v1709
    %v1712 = vmul.f32 %v1710, 1.442695
    %v1713 = vpow.pop %v1712
    %v1714 = vmul.f32 %v1711, 1.442695
    %v1715 = vpow.pop %v1714
    %v1716 = vsel %vm472, %v1713, 0.0
    %1717 = vadd.xlane.f32.xlu0 %v1716
    %v1718 = vpop.xlane.xlu0 %1717
    %v1719 = vsel %vm472, %v1715, 0.0
    %1720 = vadd.xlane.f32.xlu0 %v1719
    %v1721 = vpop.xlane.xlu0 %1720
    %v1722 = vrcp.pop %v1718
    %v1723 = vrcp.pop %v1721
    %v1724 = vmul.f32 %v1713, %v1722
    %v1725 = vmul.f32 %v1715, %v1723
    %1726 = vrot.lane.b32.xlu0 %v374, 112
    %v1727 = vpop.permute.xlu0 %1726
    %1728 = vrot.lane.b32.xlu0 %v379, 112
    %v1729 = vpop.permute.xlu0 %1728
    %v1733 = vsel %vm472, %v1724, 0
    %v1736 = vsel %vm472, %v1725, 0
    %1738 = vmatprep.subr.mxu0 0.0
    %1739 = vmatpush1.msra.mxu0 0.0
    %1740 = vmatprep.subr.mxu0 0.0
    %1741 = vmatpush1.msra.mxu0 0.0
    %1742 = vmatprep.subr.mxu0 0.0
    %1743 = vmatpush1.msra.mxu0 0.0
    %1744 = vmatprep.subr.mxu0 0.0
    %1745 = vmatpush1.msra.mxu0 0.0
    %1746 = vmatprep.subr.mxu0 0.0
    %1747 = vmatpush1.msra.mxu0 0.0
    %1748 = vmatprep.subr.mxu0 0.0
    %1749 = vmatpush1.msra.mxu0 0.0
    %1750 = vmatprep.subr.mxu0 0.0
    %1751 = vmatpush1.msra.mxu0 0.0
    %1752 = vmatprep.subr.mxu0 0.0
    %1753 = vmatpush1.msra.mxu0 0.0
    %1754 = vmatprep.subr.mxu0 0.0
    %1755 = vmatpush1.msra.mxu0 0.0
    %1756 = vmatprep.subr.mxu0 0.0
    %1757 = vmatpush1.msra.mxu0 0.0
    %1758 = vmatprep.subr.mxu0 0.0
    %1759 = vmatpush1.msra.mxu0 0.0
    %1760 = vmatprep.subr.mxu0 0.0
    %1761 = vmatpush1.msra.mxu0 0.0
    %1762 = vmatprep.subr.mxu0 0.0
    %1763 = vmatpush1.msra.mxu0 0.0
    %1764 = vmatprep.subr.mxu0 0.0
    %1765 = vmatpush1.msra.mxu0 0.0
    %1766 = vmatprep.subr.mxu0 0.0
    %1767 = vmatpush1.msra.mxu0 %v1729
    %1768 = vmatprep.subr.mxu0 0.0
    %1769 = vmatpush1.msra.mxu0 %v1727
    %1770 = vmatprep.subr.mxu0 0.0
    %1771 = vmatpush2.msra.mxu0 0.0
    %1772 = vmatprep.subr.mxu0 0.0
    %1773 = vmatpush2.msra.mxu0 0.0
    %1774 = vmatprep.subr.mxu0 0.0
    %1775 = vmatpush2.msra.mxu0 0.0
    %1776 = vmatprep.subr.mxu0 0.0
    %1777 = vmatpush2.msra.mxu0 0.0
    %1778 = vmatprep.subr.mxu0 0.0
    %1779 = vmatpush2.msra.mxu0 0.0
    %1780 = vmatprep.subr.mxu0 0.0
    %1781 = vmatpush2.msra.mxu0 0.0
    %1782 = vmatprep.subr.mxu0 0.0
    %1783 = vmatpush2.msra.mxu0 0.0
    %1784 = vmatprep.subr.mxu0 0.0
    %1785 = vmatpush2.msra.mxu0 0.0
    %1786 = vmatprep.subr.mxu0 0.0
    %1787 = vmatpush2.msra.mxu0 0.0
    %1788 = vmatprep.subr.mxu0 0.0
    %1789 = vmatpush2.msra.mxu0 0.0
    %1790 = vmatprep.subr.mxu0 0.0
    %1791 = vmatpush2.msra.mxu0 0.0
    %1792 = vmatprep.subr.mxu0 0.0
    %1793 = vmatpush2.msra.mxu0 0.0
    %1794 = vmatprep.subr.mxu0 0.0
    %1795 = vmatpush2.msra.mxu0 0.0
    %1796 = vmatprep.subr.mxu0 0.0
    %1797 = vmatpush2.msra.mxu0 0.0
    %1798 = vmatprep.subr.mxu0 0.0
    %1799 = vmatpush2.msra.mxu0 0.0
    %1800 = vmatprep.subr.mxu0 0.0
    %1801 = vmatpush2.msra.mxu0 0.0
    %1802 = vmatprep.mubr.f32.mxu0 0.0
    %1803 = vmatmul.mubr.f32.gmra.mxu0 %v1733
    %v1804 = vpop.f32.mrf.mxu0
    %v1805 = vadd.f32 0.0, %v1804
    %v1806 = vpop.f32.mrf.mxu0
    %1807 = vmatprep.mubr.f32.mxu0 0.0
    %1808 = vmatmul.mubr.f32.gmra.mxu0 %v1736
    %v1809 = vpop.f32.mrf.mxu0
    %v1810 = vadd.f32 0.0, %v1809
    %v1811 = vpop.f32.mrf.mxu0
    %1812 = vdwg.mxu0
    %1813 = vrot.lane.b32.xlu0 %v182, 104
    %v1814 = vpop.permute.xlu0 %1813
    %1815 = vrot.lane.b32.xlu0 %v187, 104
    %v1816 = vpop.permute.xlu0 %1815
    %1817 = vrot.lane.b32.xlu0 %v278, 104
    %v1818 = vpop.permute.xlu0 %1817
    %1819 = vrot.lane.b32.xlu0 %v283, 104
    %v1820 = vpop.permute.xlu0 %1819
    %v1821 = vsel %vm382, %v1814, 0
    %v1823 = vsel %vm382, %v1816, 0
    %v1825 = vsel %vm382, %v1818, 0
    %v1827 = vsel %vm382, %v1820, 0
    %1829 = vmatprep.subr.mxu0 0.0
    %1830 = vmatpush1.xpose.msra.mxu0 0.0
    %1831 = vmatprep.subr.mxu0 0.0
    %1832 = vmatpush1.xpose.msra.mxu0 0.0
    %1833 = vmatprep.subr.mxu0 0.0
    %1834 = vmatpush1.xpose.msra.mxu0 0.0
    %1835 = vmatprep.subr.mxu0 0.0
    %1836 = vmatpush1.xpose.msra.mxu0 0.0
    %1837 = vmatprep.subr.mxu0 0.0
    %1838 = vmatpush1.xpose.msra.mxu0 0.0
    %1839 = vmatprep.subr.mxu0 0.0
    %1840 = vmatpush1.xpose.msra.mxu0 0.0
    %1841 = vmatprep.subr.mxu0 0.0
    %1842 = vmatpush1.xpose.msra.mxu0 0.0
    %1843 = vmatprep.subr.mxu0 0.0
    %1844 = vmatpush1.xpose.msra.mxu0 0.0
    %1845 = vmatprep.subr.mxu0 0.0
    %1846 = vmatpush1.xpose.msra.mxu0 0.0
    %1847 = vmatprep.subr.mxu0 0.0
    %1848 = vmatpush1.xpose.msra.mxu0 0.0
    %1849 = vmatprep.subr.mxu0 0.0
    %1850 = vmatpush1.xpose.msra.mxu0 0.0
    %1851 = vmatprep.subr.mxu0 0.0
    %1852 = vmatpush1.xpose.msra.mxu0 0.0
    %1853 = vmatprep.subr.mxu0 0.0
    %1854 = vmatpush1.xpose.msra.mxu0 0.0
    %1855 = vmatprep.subr.mxu0 0.0
    %1856 = vmatpush1.xpose.msra.mxu0 0.0
    %1857 = vmatprep.subr.mxu0 0.0
    %1858 = vmatpush1.xpose.msra.mxu0 %v1827
    %1859 = vmatprep.subr.mxu0 0.0
    %1860 = vmatpush1.xpose.msra.mxu0 %v1825
    %1861 = vmatprep.subr.mxu0 0.0
    %1862 = vmatpush2.xpose.msra.mxu0 0.0
    %1863 = vmatprep.subr.mxu0 0.0
    %1864 = vmatpush2.xpose.msra.mxu0 0.0
    %1865 = vmatprep.subr.mxu0 0.0
    %1866 = vmatpush2.xpose.msra.mxu0 0.0
    %1867 = vmatprep.subr.mxu0 0.0
    %1868 = vmatpush2.xpose.msra.mxu0 0.0
    %1869 = vmatprep.subr.mxu0 0.0
    %1870 = vmatpush2.xpose.msra.mxu0 0.0
    %1871 = vmatprep.subr.mxu0 0.0
    %1872 = vmatpush2.xpose.msra.mxu0 0.0
    %1873 = vmatprep.subr.mxu0 0.0
    %1874 = vmatpush2.xpose.msra.mxu0 0.0
    %1875 = vmatprep.subr.mxu0 0.0
    %1876 = vmatpush2.xpose.msra.mxu0 0.0
    %1877 = vmatprep.subr.mxu0 0.0
    %1878 = vmatpush2.xpose.msra.mxu0 0.0
    %1879 = vmatprep.subr.mxu0 0.0
    %1880 = vmatpush2.xpose.msra.mxu0 0.0
    %1881 = vmatprep.subr.mxu0 0.0
    %1882 = vmatpush2.xpose.msra.mxu0 0.0
    %1883 = vmatprep.subr.mxu0 0.0
    %1884 = vmatpush2.xpose.msra.mxu0 0.0
    %1885 = vmatprep.subr.mxu0 0.0
    %1886 = vmatpush2.xpose.msra.mxu0 0.0
    %1887 = vmatprep.subr.mxu0 0.0
    %1888 = vmatpush2.xpose.msra.mxu0 0.0
    %1889 = vmatprep.subr.mxu0 0.0
    %1890 = vmatpush2.xpose.msra.mxu0 0.0
    %1891 = vmatprep.subr.mxu0 0.0
    %1892 = vmatpush2.xpose.msra.mxu0 0.0
    %1893 = vmatprep.mubr.f32.mxu0 0.0
    %1894 = vmatmul.mubr.f32.gmra.mxu0 %v1821
    %v1895 = vpop.f32.mrf.mxu0
    %v1896 = vadd.f32 0.0, %v1895
    %v1897 = vpop.f32.mrf.mxu0
    %1898 = vmatprep.mubr.f32.mxu0 0.0
    %1899 = vmatmul.mubr.f32.gmra.mxu0 %v1823
    %v1900 = vpop.f32.mrf.mxu0
    %v1901 = vadd.f32 0.0, %v1900
    %v1902 = vpop.f32.mrf.mxu0
    %1903 = vdwg.mxu0
    %v1904 = vmul.f32 %v1896, 0.35355338
    %v1905 = vmul.f32 %v1901, 0.35355338
    %v1906 = vsel %vm472, %v1904, -inf
    %1907 = vmax.xlane.f32.xlu0 %v1906
    %v1908 = vpop.xlane.xlu0 %1907
    %v1909 = vsel %vm472, %v1905, -inf
    %1910 = vmax.xlane.f32.xlu0 %v1909
    %v1911 = vpop.xlane.xlu0 %1910
    %v1912 = vsub.f32 %v1904, %v1908
    %v1913 = vsub.f32 %v1905, %v1911
    %v1914 = vmul.f32 %v1912, 1.442695
    %v1915 = vpow.pop %v1914
    %v1916 = vmul.f32 %v1913, 1.442695
    %v1917 = vpow.pop %v1916
    %v1918 = vsel %vm472, %v1915, 0.0
    %1919 = vadd.xlane.f32.xlu0 %v1918
    %v1920 = vpop.xlane.xlu0 %1919
    %v1921 = vsel %vm472, %v1917, 0.0
    %1922 = vadd.xlane.f32.xlu0 %v1921
    %v1923 = vpop.xlane.xlu0 %1922
    %v1924 = vrcp.pop %v1920
    %v1925 = vrcp.pop %v1923
    %v1926 = vmul.f32 %v1915, %v1924
    %v1927 = vmul.f32 %v1917, %v1925
    %1928 = vrot.lane.b32.xlu0 %v374, 104
    %v1929 = vpop.permute.xlu0 %1928
    %1930 = vrot.lane.b32.xlu0 %v379, 104
    %v1931 = vpop.permute.xlu0 %1930
    %v1935 = vsel %vm472, %v1926, 0
    %v1938 = vsel %vm472, %v1927, 0
    %1940 = vmatprep.subr.mxu0 0.0
    %1941 = vmatpush1.msra.mxu0 0.0
    %1942 = vmatprep.subr.mxu0 0.0
    %1943 = vmatpush1.msra.mxu0 0.0
    %1944 = vmatprep.subr.mxu0 0.0
    %1945 = vmatpush1.msra.mxu0 0.0
    %1946 = vmatprep.subr.mxu0 0.0
    %1947 = vmatpush1.msra.mxu0 0.0
    %1948 = vmatprep.subr.mxu0 0.0
    %1949 = vmatpush1.msra.mxu0 0.0
    %1950 = vmatprep.subr.mxu0 0.0
    %1951 = vmatpush1.msra.mxu0 0.0
    %1952 = vmatprep.subr.mxu0 0.0
    %1953 = vmatpush1.msra.mxu0 0.0
    %1954 = vmatprep.subr.mxu0 0.0
    %1955 = vmatpush1.msra.mxu0 0.0
    %1956 = vmatprep.subr.mxu0 0.0
    %1957 = vmatpush1.msra.mxu0 0.0
    %1958 = vmatprep.subr.mxu0 0.0
    %1959 = vmatpush1.msra.mxu0 0.0
    %1960 = vmatprep.subr.mxu0 0.0
    %1961 = vmatpush1.msra.mxu0 0.0
    %1962 = vmatprep.subr.mxu0 0.0
    %1963 = vmatpush1.msra.mxu0 0.0
    %1964 = vmatprep.subr.mxu0 0.0
    %1965 = vmatpush1.msra.mxu0 0.0
    %1966 = vmatprep.subr.mxu0 0.0
    %1967 = vmatpush1.msra.mxu0 0.0
    %1968 = vmatprep.subr.mxu0 0.0
    %1969 = vmatpush1.msra.mxu0 %v1931
    %1970 = vmatprep.subr.mxu0 0.0
    %1971 = vmatpush1.msra.mxu0 %v1929
    %1972 = vmatprep.subr.mxu0 0.0
    %1973 = vmatpush2.msra.mxu0 0.0
    %1974 = vmatprep.subr.mxu0 0.0
    %1975 = vmatpush2.msra.mxu0 0.0
    %1976 = vmatprep.subr.mxu0 0.0
    %1977 = vmatpush2.msra.mxu0 0.0
    %1978 = vmatprep.subr.mxu0 0.0
    %1979 = vmatpush2.msra.mxu0 0.0
    %1980 = vmatprep.subr.mxu0 0.0
    %1981 = vmatpush2.msra.mxu0 0.0
    %1982 = vmatprep.subr.mxu0 0.0
    %1983 = vmatpush2.msra.mxu0 0.0
    %1984 = vmatprep.subr.mxu0 0.0
    %1985 = vmatpush2.msra.mxu0 0.0
    %1986 = vmatprep.subr.mxu0 0.0
    %1987 = vmatpush2.msra.mxu0 0.0
    %1988 = vmatprep.subr.mxu0 0.0
    %1989 = vmatpush2.msra.mxu0 0.0
    %1990 = vmatprep.subr.mxu0 0.0
    %1991 = vmatpush2.msra.mxu0 0.0
    %1992 = vmatprep.subr.mxu0 0.0
    %1993 = vmatpush2.msra.mxu0 0.0
    %1994 = vmatprep.subr.mxu0 0.0
    %1995 = vmatpush2.msra.mxu0 0.0
    %1996 = vmatprep.subr.mxu0 0.0
    %1997 = vmatpush2.msra.mxu0 0.0
    %1998 = vmatprep.subr.mxu0 0.0
    %1999 = vmatpush2.msra.mxu0 0.0
    %2000 = vmatprep.subr.mxu0 0.0
    %2001 = vmatpush2.msra.mxu0 0.0
    %2002 = vmatprep.subr.mxu0 0.0
    %2003 = vmatpush2.msra.mxu0 0.0
    %2004 = vmatprep.mubr.f32.mxu0 0.0
    %2005 = vmatmul.mubr.f32.gmra.mxu0 %v1935
    %v2006 = vpop.f32.mrf.mxu0
    %v2007 = vadd.f32 0.0, %v2006
    %v2008 = vpop.f32.mrf.mxu0
    %2009 = vmatprep.mubr.f32.mxu0 0.0
    %2010 = vmatmul.mubr.f32.gmra.mxu0 %v1938
    %v2011 = vpop.f32.mrf.mxu0
    %v2012 = vadd.f32 0.0, %v2011
    %v2013 = vpop.f32.mrf.mxu0
    %2014 = vdwg.mxu0
    %2017 = vrot.lane.b32.xlu0 %v1603, 8
    %v2018 = vpop.permute.xlu0 %2017
    %2019 = vrot.lane.b32.xlu0 %v1608, 8
    %v2020 = vpop.permute.xlu0 %2019
    %2025 = vrot.lane.b32.xlu0 %v1805, 16
    %v2026 = vpop.permute.xlu0 %2025
    %2027 = vrot.lane.b32.xlu0 %v1810, 16
    %v2028 = vpop.permute.xlu0 %2027
    %2033 = vrot.lane.b32.xlu0 %v2007, 24
    %v2034 = vpop.permute.xlu0 %2033
    %2035 = vrot.lane.b32.xlu0 %v2012, 24
    %v2036 = vpop.permute.xlu0 %2035
    %v2039 = vsel %vm382, %v1399, %v2018
    %v2040 = vsel %vm382, %v1404, %v2020
    %v2041 = vsel %vm472, %v2039, %v2026
    %v2042 = vsel %vm472, %v2040, %v2028
    %v2043 = vsel %vm1212, %v2041, %v2034
    %v2044 = vsel %vm1212, %v2042, %v2036
    %v2045 = vld [vmem:[%s7] sm:$0xff]
    %v2046 = vld [vmem:[%s7 + $0x8] sm:$0xff]
    %v2047 = vld [vmem:[%s7 + $0x10] sm:$0xff]
    %v2048 = vld [vmem:[%s7 + $0x18] sm:$0xff]
    %v2049 = vld [vmem:[%s8] sm:$0x1]
    %v2051 = vlaneseq
    %v2052 = vshrl.u32 %v2051, 7
    %v2053 = vsub.s32 0, %v2052
    %v2054 = vrot.slane %v2049, %v2053
    %v2057 = vsel %vm92, %v1213, 0
    %v2060 = vsel %vm92, %v1214, 0
    %v2063 = vsel %vm92, %v2043, 0
    %v2066 = vsel %vm92, %v2044, 0
    %2068 = vmatprep.subr.mxu0 0.0
    %2069 = vmatpush1.msra.mxu0 0.0
    %2070 = vmatprep.subr.mxu0 0.0
    %2071 = vmatpush1.msra.mxu0 0.0
    %2072 = vmatprep.subr.mxu0 0.0
    %2073 = vmatpush1.msra.mxu0 0.0
    %2074 = vmatprep.subr.mxu0 0.0
    %2075 = vmatpush1.msra.mxu0 0.0
    %2076 = vmatprep.subr.mxu0 0.0
    %2077 = vmatpush1.msra.mxu0 0.0
    %2078 = vmatprep.subr.mxu0 0.0
    %2079 = vmatpush1.msra.mxu0 0.0
    %2080 = vmatprep.subr.mxu0 0.0
    %2081 = vmatpush1.msra.mxu0 0.0
    %2082 = vmatprep.subr.mxu0 0.0
    %2083 = vmatpush1.msra.mxu0 0.0
    %2084 = vmatprep.subr.mxu0 0.0
    %2085 = vmatpush1.msra.mxu0 0.0
    %2086 = vmatprep.subr.mxu0 0.0
    %2087 = vmatpush1.msra.mxu0 0.0
    %2088 = vmatprep.subr.mxu0 0.0
    %2089 = vmatpush1.msra.mxu0 0.0
    %2090 = vmatprep.subr.mxu0 0.0
    %2091 = vmatpush1.msra.mxu0 0.0
    %2092 = vmatprep.subr.mxu0 0.0
    %2093 = vmatpush1.msra.mxu0 %v2048
    %2094 = vmatprep.subr.mxu0 0.0
    %2095 = vmatpush1.msra.mxu0 %v2047
    %2096 = vmatprep.subr.mxu0 0.0
    %2097 = vmatpush1.msra.mxu0 %v2046
    %2098 = vmatprep.subr.mxu0 0.0
    %2099 = vmatpush1.msra.mxu0 %v2045
    %2100 = vmatprep.subr.mxu0 0.0
    %2101 = vmatpush2.msra.mxu0 0.0
    %2102 = vmatprep.subr.mxu0 0.0
    %2103 = vmatpush2.msra.mxu0 0.0
    %2104 = vmatprep.subr.mxu0 0.0
    %2105 = vmatpush2.msra.mxu0 0.0
    %2106 = vmatprep.subr.mxu0 0.0
    %2107 = vmatpush2.msra.mxu0 0.0
    %2108 = vmatprep.subr.mxu0 0.0
    %2109 = vmatpush2.msra.mxu0 0.0
    %2110 = vmatprep.subr.mxu0 0.0
    %2111 = vmatpush2.msra.mxu0 0.0
    %2112 = vmatprep.subr.mxu0 0.0
    %2113 = vmatpush2.msra.mxu0 0.0
    %2114 = vmatprep.subr.mxu0 0.0
    %2115 = vmatpush2.msra.mxu0 0.0
    %2116 = vmatprep.subr.mxu0 0.0
    %2117 = vmatpush2.msra.mxu0 0.0
    %2118 = vmatprep.subr.mxu0 0.0
    %2119 = vmatpush2.msra.mxu0 0.0
    %2120 = vmatprep.subr.mxu0 0.0
    %2121 = vmatpush2.msra.mxu0 0.0
    %2122 = vmatprep.subr.mxu0 0.0
    %2123 = vmatpush2.msra.mxu0 0.0
    %2124 = vmatprep.subr.mxu0 0.0
    %2125 = vmatpush2.msra.mxu0 0.0
    %2126 = vmatprep.subr.mxu0 0.0
    %2127 = vmatpush2.msra.mxu0 0.0
    %2128 = vmatprep.subr.mxu0 0.0
    %2129 = vmatpush2.msra.mxu0 0.0
    %2130 = vmatprep.subr.mxu0 0.0
    %2131 = vmatpush2.msra.mxu0 0.0
    %2132 = vmatprep.mubr.f32.mxu0 0.0
    %2133 = vmatmul.mubr.f32.gmra.mxu0 %v2057
    %v2134 = vpop.f32.mrf.mxu0
    %v2135 = vadd.f32 %v2054, %v2134
    %v2136 = vpop.f32.mrf.mxu0
    %2137 = vmatprep.mubr.f32.mxu0 0.0
    %2138 = vmatmul.mubr.f32.gmra.mxu0 %v2060
    %v2139 = vpop.f32.mrf.mxu0
    %v2140 = vadd.f32 %v2054, %v2139
    %v2141 = vpop.f32.mrf.mxu0
    %2142 = vmatprep.mubr.f32.mxu0 0.0
    %2143 = vmatmul.mubr.f32.gmra.mxu0 %v2063
    %v2144 = vpop.f32.mrf.mxu0
    %v2145 = vadd.f32 %v2054, %v2144
    %v2146 = vpop.f32.mrf.mxu0
    %2147 = vmatprep.mubr.f32.mxu0 0.0
    %2148 = vmatmul.mubr.f32.gmra.mxu0 %v2066
    %v2149 = vpop.f32.mrf.mxu0
    %v2150 = vadd.f32 %v2054, %v2149
    %v2151 = vpop.f32.mrf.mxu0
    %2152 = vdwg.mxu0
    %v2153 = vadd.f32 %v77, %v2135
    %v2154 = vadd.f32 %v78, %v2140
    %v2155 = vadd.f32 %v79, %v2145
    %v2156 = vadd.f32 %v80, %v2150
    %v2157 = vld [vmem:[%s9] sm:$0x1]
    %v2158 = vld [vmem:[%s10] sm:$0x1]
    %v2159 = vsel %vm92, %v2153, 0.0
    %2160 = vadd.xlane.f32.xlu0 %v2159
    %v2161 = vpop.xlane.xlu0 %2160
    %v2162 = vsel %vm92, %v2154, 0.0
    %2163 = vadd.xlane.f32.xlu0 %v2162
    %v2164 = vpop.xlane.xlu0 %2163
    %v2165 = vsel %vm92, %v2155, 0.0
    %2166 = vadd.xlane.f32.xlu0 %v2165
    %v2167 = vpop.xlane.xlu0 %2166
    %v2168 = vsel %vm92, %v2156, 0.0
    %2169 = vadd.xlane.f32.xlu0 %v2168
    %v2170 = vpop.xlane.xlu0 %2169
    %v2171 = vrcp.pop 32.0
    %v2172 = vmul.f32 %v2161, %v2171
    %v2173 = vmul.f32 %v2164, %v2171
    %v2174 = vmul.f32 %v2167, %v2171
    %v2175 = vmul.f32 %v2170, %v2171
    %v2176 = vsub.f32 %v2153, %v2172
    %v2177 = vsub.f32 %v2154, %v2173
    %v2178 = vsub.f32 %v2155, %v2174
    %v2179 = vsub.f32 %v2156, %v2175
    %v2180 = vmul.f32 %v2176, %v2176
    %v2181 = vmul.f32 %v2177, %v2177
    %v2182 = vmul.f32 %v2178, %v2178
    %v2183 = vmul.f32 %v2179, %v2179
    %v2184 = vsel %vm92, %v2180, 0.0
    %2185 = vadd.xlane.f32.xlu0 %v2184
    %v2186 = vpop.xlane.xlu0 %2185
    %v2187 = vsel %vm92, %v2181, 0.0
    %2188 = vadd.xlane.f32.xlu0 %v2187
    %v2189 = vpop.xlane.xlu0 %2188
    %v2190 = vsel %vm92, %v2182, 0.0
    %2191 = vadd.xlane.f32.xlu0 %v2190
    %v2192 = vpop.xlane.xlu0 %2191
    %v2193 = vsel %vm92, %v2183, 0.0
    %2194 = vadd.xlane.f32.xlu0 %v2193
    %v2195 = vpop.xlane.xlu0 %2194
    %v2196 = vmul.f32 %v2186, %v2171
    %v2197 = vmul.f32 %v2189, %v2171
    %v2198 = vmul.f32 %v2192, %v2171
    %v2199 = vmul.f32 %v2195, %v2171
    %v2200 = vadd.f32 %v2196, 1e-05
    %v2201 = vadd.f32 %v2197, 1e-05
    %v2202 = vadd.f32 %v2198, 1e-05
    %v2203 = vadd.f32 %v2199, 1e-05
    %v2204 = vrsqrt.pop %v2200
    %v2205 = vrsqrt.pop %v2201
    %v2206 = vrsqrt.pop %v2202
    %v2207 = vrsqrt.pop %v2203
    %v2208 = vmul.f32 %v2176, %v2204
    %v2209 = vmul.f32 %v2177, %v2205
    %v2210 = vmul.f32 %v2178, %v2206
    %v2211 = vmul.f32 %v2179, %v2207
    %v2213 = vlaneseq
    %v2214 = vshrl.u32 %v2213, 7
    %v2215 = vsub.s32 0, %v2214
    %v2216 = vrot.slane %v2157, %v2215
    %v2218 = vmul.f32 %v2208, %v2216
    %v2219 = vmul.f32 %v2209, %v2216
    %v2220 = vmul.f32 %v2210, %v2216
    %v2221 = vmul.f32 %v2211, %v2216
    %v2223 = vlaneseq
    %v2224 = vshrl.u32 %v2223, 7
    %v2225 = vsub.s32 0, %v2224
    %v2226 = vrot.slane %v2158, %v2225
    %v2228 = vadd.f32 %v2218, %v2226
    %v2229 = vadd.f32 %v2219, %v2226
    %v2230 = vadd.f32 %v2220, %v2226
    %v2231 = vadd.f32 %v2221, %v2226
    %v2232 = vld [vmem:[#allocation2] sm:$0xff]
    %v2233 = vld [vmem:[#allocation2 + $0x8] sm:$0xff]
    %v2234 = vld [vmem:[#allocation2 + $0x10] sm:$0xff]
    %v2235 = vld [vmem:[#allocation2 + $0x18] sm:$0xff]
    %v2236 = vld [vmem:[%s12] sm:$0x1]
    %v2238 = vlaneseq
    %v2239 = vshrl.u32 %v2238, 7
    %v2240 = vsub.s32 0, %v2239
    %v2241 = vrot.slane %v2236, %v2240
    %v2244 = vsel %vm92, %v2228, 0
    %v2247 = vsel %vm92, %v2229, 0
    %v2250 = vsel %vm92, %v2230, 0
    %v2253 = vsel %vm92, %v2231, 0
    %2255 = vmatprep.subr.mxu0 0.0
    %2256 = vmatpush1.msra.mxu0 0.0
    %2257 = vmatprep.subr.mxu0 0.0
    %2258 = vmatpush1.msra.mxu0 0.0
    %2259 = vmatprep.subr.mxu0 0.0
    %2260 = vmatpush1.msra.mxu0 0.0
    %2261 = vmatprep.subr.mxu0 0.0
    %2262 = vmatpush1.msra.mxu0 0.0
    %2263 = vmatprep.subr.mxu0 0.0
    %2264 = vmatpush1.msra.mxu0 0.0
    %2265 = vmatprep.subr.mxu0 0.0
    %2266 = vmatpush1.msra.mxu0 0.0
    %2267 = vmatprep.subr.mxu0 0.0
    %2268 = vmatpush1.msra.mxu0 0.0
    %2269 = vmatprep.subr.mxu0 0.0
    %2270 = vmatpush1.msra.mxu0 0.0
    %2271 = vmatprep.subr.mxu0 0.0
    %2272 = vmatpush1.msra.mxu0 0.0
    %2273 = vmatprep.subr.mxu0 0.0
    %2274 = vmatpush1.msra.mxu0 0.0
    %2275 = vmatprep.subr.mxu0 0.0
    %2276 = vmatpush1.msra.mxu0 0.0
    %2277 = vmatprep.subr.mxu0 0.0
    %2278 = vmatpush1.msra.mxu0 0.0
    %2279 = vmatprep.subr.mxu0 0.0
    %2280 = vmatpush1.msra.mxu0 %v2235
    %2281 = vmatprep.subr.mxu0 0.0
    %2282 = vmatpush1.msra.mxu0 %v2234
    %2283 = vmatprep.subr.mxu0 0.0
    %2284 = vmatpush1.msra.mxu0 %v2233
    %2285 = vmatprep.subr.mxu0 0.0
    %2286 = vmatpush1.msra.mxu0 %v2232
    %2287 = vmatprep.subr.mxu0 0.0
    %2288 = vmatpush2.msra.mxu0 0.0
    %2289 = vmatprep.subr.mxu0 0.0
    %2290 = vmatpush2.msra.mxu0 0.0
    %2291 = vmatprep.subr.mxu0 0.0
    %2292 = vmatpush2.msra.mxu0 0.0
    %2293 = vmatprep.subr.mxu0 0.0
    %2294 = vmatpush2.msra.mxu0 0.0
    %2295 = vmatprep.subr.mxu0 0.0
    %2296 = vmatpush2.msra.mxu0 0.0
    %2297 = vmatprep.subr.mxu0 0.0
    %2298 = vmatpush2.msra.mxu0 0.0
    %2299 = vmatprep.subr.mxu0 0.0
    %2300 = vmatpush2.msra.mxu0 0.0
    %2301 = vmatprep.subr.mxu0 0.0
    %2302 = vmatpush2.msra.mxu0 0.0
    %2303 = vmatprep.subr.mxu0 0.0
    %2304 = vmatpush2.msra.mxu0 0.0
    %2305 = vmatprep.subr.mxu0 0.0
    %2306 = vmatpush2.msra.mxu0 0.0
    %2307 = vmatprep.subr.mxu0 0.0
    %2308 = vmatpush2.msra.mxu0 0.0
    %2309 = vmatprep.subr.mxu0 0.0
    %2310 = vmatpush2.msra.mxu0 0.0
    %2311 = vmatprep.subr.mxu0 0.0
    %2312 = vmatpush2.msra.mxu0 0.0
    %2313 = vmatprep.subr.mxu0 0.0
    %2314 = vmatpush2.msra.mxu0 0.0
    %2315 = vmatprep.subr.mxu0 0.0
    %2316 = vmatpush2.msra.mxu0 0.0
    %2317 = vmatprep.subr.mxu0 0.0
    %2318 = vmatpush2.msra.mxu0 0.0
    %2319 = vmatprep.mubr.f32.mxu0 0.0
    %2320 = vmatmul.mubr.f32.gmra.mxu0 %v2244
    %v2321 = vpop.f32.mrf.mxu0
    %v2322 = vadd.f32 %v2241, %v2321
    %v2323 = vpop.f32.mrf.mxu0
    %2324 = vmatprep.mubr.f32.mxu0 0.0
    %2325 = vmatmul.mubr.f32.gmra.mxu0 %v2247
    %v2326 = vpop.f32.mrf.mxu0
    %v2327 = vadd.f32 %v2241, %v2326
    %v2328 = vpop.f32.mrf.mxu0
    %2329 = vmatprep.mubr.f32.mxu0 0.0
    %2330 = vmatmul.mubr.f32.gmra.mxu0 %v2250
    %v2331 = vpop.f32.mrf.mxu0
    %v2332 = vadd.f32 %v2241, %v2331
    %v2333 = vpop.f32.mrf.mxu0
    %2334 = vmatprep.mubr.f32.mxu0 0.0
    %2335 = vmatmul.mubr.f32.gmra.mxu0 %v2253
    %v2336 = vpop.f32.mrf.mxu0
    %v2337 = vadd.f32 %v2241, %v2336
    %v2338 = vpop.f32.mrf.mxu0
    %2339 = vdwg.mxu0
    %v2340 = vmax.f32 %v2322, 0.0
    %v2341 = vmax.f32 %v2327, 0.0
    %v2342 = vmax.f32 %v2332, 0.0
    %v2343 = vmax.f32 %v2337, 0.0
    %v2344 = vld [vmem:[%s13] sm:$0xff]
    %v2345 = vld [vmem:[%s13 + $0x8] sm:$0xff]
    %v2346 = vld [vmem:[%s13 + $0x10] sm:$0xff]
    %v2347 = vld [vmem:[%s13 + $0x18] sm:$0xff]
    %v2348 = vld [vmem:[%s13 + $0x20] sm:$0xff]
    %v2349 = vld [vmem:[%s13 + $0x28] sm:$0xff]
    %v2350 = vld [vmem:[%s13 + $0x30] sm:$0xff]
    %v2351 = vld [vmem:[%s13 + $0x38] sm:$0xff]
    %v2352 = vld [vmem:[%s14] sm:$0x1]
    %v2354 = vlaneseq
    %v2355 = vshrl.u32 %v2354, 7
    %v2356 = vsub.s32 0, %v2355
    %v2357 = vrot.slane %v2352, %v2356
    %vm2359 = vcmask 523264
    %v2361 = vsel %vm2359, %v2340, 0
    %v2364 = vsel %vm2359, %v2341, 0
    %v2367 = vsel %vm2359, %v2342, 0
    %v2370 = vsel %vm2359, %v2343, 0
    %2372 = vmatprep.subr.mxu0 0.0
    %2373 = vmatpush1.msra.mxu0 0.0
    %2374 = vmatprep.subr.mxu0 0.0
    %2375 = vmatpush1.msra.mxu0 0.0
    %2376 = vmatprep.subr.mxu0 0.0
    %2377 = vmatpush1.msra.mxu0 0.0
    %2378 = vmatprep.subr.mxu0 0.0
    %2379 = vmatpush1.msra.mxu0 0.0
    %2380 = vmatprep.subr.mxu0 0.0
    %2381 = vmatpush1.msra.mxu0 0.0
    %2382 = vmatprep.subr.mxu0 0.0
    %2383 = vmatpush1.msra.mxu0 0.0
    %2384 = vmatprep.subr.mxu0 0.0
    %2385 = vmatpush1.msra.mxu0 0.0
    %2386 = vmatprep.subr.mxu0 0.0
    %2387 = vmatpush1.msra.mxu0 0.0
    %2388 = vmatprep.subr.mxu0 0.0
    %2389 = vmatpush1.msra.mxu0 %v2351
    %2390 = vmatprep.subr.mxu0 0.0
    %2391 = vmatpush1.msra.mxu0 %v2350
    %2392 = vmatprep.subr.mxu0 0.0
    %2393 = vmatpush1.msra.mxu0 %v2349
    %2394 = vmatprep.subr.mxu0 0.0
    %2395 = vmatpush1.msra.mxu0 %v2348
    %2396 = vmatprep.subr.mxu0 0.0
    %2397 = vmatpush1.msra.mxu0 %v2347
    %2398 = vmatprep.subr.mxu0 0.0
    %2399 = vmatpush1.msra.mxu0 %v2346
    %2400 = vmatprep.subr.mxu0 0.0
    %2401 = vmatpush1.msra.mxu0 %v2345
    %2402 = vmatprep.subr.mxu0 0.0
    %2403 = vmatpush1.msra.mxu0 %v2344
    %2404 = vmatprep.subr.mxu0 0.0
    %2405 = vmatpush2.msra.mxu0 0.0
    %2406 = vmatprep.subr.mxu0 0.0
    %2407 = vmatpush2.msra.mxu0 0.0
    %2408 = vmatprep.subr.mxu0 0.0
    %2409 = vmatpush2.msra.mxu0 0.0
    %2410 = vmatprep.subr.mxu0 0.0
    %2411 = vmatpush2.msra.mxu0 0.0
    %2412 = vmatprep.subr.mxu0 0.0
    %2413 = vmatpush2.msra.mxu0 0.0
    %2414 = vmatprep.subr.mxu0 0.0
    %2415 = vmatpush2.msra.mxu0 0.0
    %2416 = vmatprep.subr.mxu0 0.0
    %2417 = vmatpush2.msra.mxu0 0.0
    %2418 = vmatprep.subr.mxu0 0.0
    %2419 = vmatpush2.msra.mxu0 0.0
    %2420 = vmatprep.subr.mxu0 0.0
    %2421 = vmatpush2.msra.mxu0 0.0
    %2422 = vmatprep.subr.mxu0 0.0
    %2423 = vmatpush2.msra.mxu0 0.0
    %2424 = vmatprep.subr.mxu0 0.0
    %2425 = vmatpush2.msra.mxu0 0.0
    %2426 = vmatprep.subr.mxu0 0.0
    %2427 = vmatpush2.msra.mxu0 0.0
    %2428 = vmatprep.subr.mxu0 0.0
    %2429 = vmatpush2.msra.mxu0 0.0
    %2430 = vmatprep.subr.mxu0 0.0
    %2431 = vmatpush2.msra.mxu0 0.0
    %2432 = vmatprep.subr.mxu0 0.0
    %2433 = vmatpush2.msra.mxu0 0.0
    %2434 = vmatprep.subr.mxu0 0.0
    %2435 = vmatpush2.msra.mxu0 0.0
    %2436 = vmatprep.mubr.f32.mxu0 0.0
    %2437 = vmatmul.mubr.f32.gmra.mxu0 %v2361
    %v2438 = vpop.f32.mrf.mxu0
    %v2439 = vadd.f32 %v2357, %v2438
    %v2440 = vpop.f32.mrf.mxu0
    %2441 = vmatprep.mubr.f32.mxu0 0.0
    %2442 = vmatmul.mubr.f32.gmra.mxu0 %v2364
    %v2443 = vpop.f32.mrf.mxu0
    %v2444 = vadd.f32 %v2357, %v2443
    %v2445 = vpop.f32.mrf.mxu0
    %2446 = vmatprep.mubr.f32.mxu0 0.0
    %2447 = vmatmul.mubr.f32.gmra.mxu0 %v2367
    %v2448 = vpop.f32.mrf.mxu0
    %v2449 = vadd.f32 %v2357, %v2448
    %v2450 = vpop.f32.mrf.mxu0
    %2451 = vmatprep.mubr.f32.mxu0 0.0
    %2452 = vmatmul.mubr.f32.gmra.mxu0 %v2370
    %v2453 = vpop.f32.mrf.mxu0
    %v2454 = vadd.f32 %v2357, %v2453
    %v2455 = vpop.f32.mrf.mxu0
    %2456 = vdwg.mxu0
    %v2457 = vadd.f32 %v2228, %v2439
    %v2458 = vadd.f32 %v2229, %v2444
    %v2459 = vadd.f32 %v2230, %v2449
    %v2460 = vadd.f32 %v2231, %v2454
    %v2461 = vld [vmem:[%s15] sm:$0x1]
    %v2462 = vld [vmem:[%s16] sm:$0x1]
    %v2463 = vsel %vm92, %v2457, 0.0
    %2464 = vadd.xlane.f32.xlu0 %v2463
    %v2465 = vpop.xlane.xlu0 %2464
    %v2466 = vsel %vm92, %v2458, 0.0
    %2467 = vadd.xlane.f32.xlu0 %v2466
    %v2468 = vpop.xlane.xlu0 %2467
    %v2469 = vsel %vm92, %v2459, 0.0
    %2470 = vadd.xlane.f32.xlu0 %v2469
    %v2471 = vpop.xlane.xlu0 %2470
    %v2472 = vsel %vm92, %v2460, 0.0
    %2473 = vadd.xlane.f32.xlu0 %v2472
    %v2474 = vpop.xlane.xlu0 %2473
    %v2475 = vmul.f32 %v2465, %v2171
    %v2476 = vmul.f32 %v2468, %v2171
    %v2477 = vmul.f32 %v2471, %v2171
    %v2478 = vmul.f32 %v2474, %v2171
    %v2479 = vsub.f32 %v2457, %v2475
    %v2480 = vsub.f32 %v2458, %v2476
    %v2481 = vsub.f32 %v2459, %v2477
    %v2482 = vsub.f32 %v2460, %v2478
    %v2483 = vmul.f32 %v2479, %v2479
    %v2484 = vmul.f32 %v2480, %v2480
    %v2485 = vmul.f32 %v2481, %v2481
    %v2486 = vmul.f32 %v2482, %v2482
    %v2487 = vsel %vm92, %v2483, 0.0
    %2488 = vadd.xlane.f32.xlu0 %v2487
    %v2489 = vpop.xlane.xlu0 %2488
    %v2490 = vsel %vm92, %v2484, 0.0
    %2491 = vadd.xlane.f32.xlu0 %v2490
    %v2492 = vpop.xlane.xlu0 %2491
    %v2493 = vsel %vm92, %v2485, 0.0
    %2494 = vadd.xlane.f32.xlu0 %v2493
    %v2495 = vpop.xlane.xlu0 %2494
    %v2496 = vsel %vm92, %v2486, 0.0
    %2497 = vadd.xlane.f32.xlu0 %v2496
    %v2498 = vpop.xlane.xlu0 %2497
    %v2499 = vmul.f32 %v2489, %v2171
    %v2500 = vmul.f32 %v2492, %v2171
    %v2501 = vmul.f32 %v2495, %v2171
    %v2502 = vmul.f32 %v2498, %v2171
    %v2503 = vadd.f32 %v2499, 1e-05
    %v2504 = vadd.f32 %v2500, 1e-05
    %v2505 = vadd.f32 %v2501, 1e-05
    %v2506 = vadd.f32 %v2502, 1e-05
    %v2507 = vrsqrt.pop %v2503
    %v2508 = vrsqrt.pop %v2504
    %v2509 = vrsqrt.pop %v2505
    %v2510 = vrsqrt.pop %v2506
    %v2511 = vmul.f32 %v2479, %v2507
    %v2512 = vmul.f32 %v2480, %v2508
    %v2513 = vmul.f32 %v2481, %v2509
    %v2514 = vmul.f32 %v2482, %v2510
    %v2516 = vlaneseq
    %v2517 = vshrl.u32 %v2516, 7
    %v2518 = vsub.s32 0, %v2517
    %v2519 = vrot.slane %v2461, %v2518
    %v2521 = vmul.f32 %v2511, %v2519
    %v2522 = vmul.f32 %v2512, %v2519
    %v2523 = vmul.f32 %v2513, %v2519
    %v2524 = vmul.f32 %v2514, %v2519
    %v2526 = vlaneseq
    %v2527 = vshrl.u32 %v2526, 7
    %v2528 = vsub.s32 0, %v2527
    %v2529 = vrot.slane %v2462, %v2528
    %v2531 = vadd.f32 %v2521, %v2529
    %v2532 = vadd.f32 %v2522, %v2529
    %v2533 = vadd.f32 %v2523, %v2529
    %v2534 = vadd.f32 %v2524, %v2529
    %v2535 = vsel %vm92, %v2531, 0.0
    %v2536 = vsel %vm92, %v2532, 0.0
    %v2537 = vadd.f32 %v2535, %v2536
    %v2538 = vrot.slane %v2537, 4
    %v2539 = vadd.f32 %v2537, %v2538
    %v2540 = vrot.slane %v2539, 2
    %v2541 = vadd.f32 %v2539, %v2540
    %v2542 = vrot.slane %v2541, 1
    %v2543 = vadd.f32 %v2541, %v2542
    %v2544 = vmul.f32 %v2543, 0.0625
    %v2545 = vsel %vm92, %v2531, -inf
    %v2546 = vsel %vm92, %v2532, -inf
    %v2547 = vmax.f32 %v2545, %v2546
    %v2548 = vrot.slane %v2547, 4
    %v2549 = vmax.f32 %v2547, %v2548
    %v2550 = vrot.slane %v2549, 2
    %v2551 = vmax.f32 %v2549, %v2550
    %v2552 = vrot.slane %v2551, 1
    %v2553 = vmax.f32 %v2551, %v2552
    %2555 = vrot.lane.b32.xlu0 %v2553, 32
    %v2556 = vpop.permute.xlu0 %2555
    %v2558 = vsel %vm92, %v2544, %v2556
    %v2559 = vsel %vm92, %v2533, 0.0
    %v2560 = vsel %vm92, %v2534, 0.0
    %v2561 = vadd.f32 %v2559, %v2560
    %v2562 = vrot.slane %v2561, 4
    %v2563 = vadd.f32 %v2561, %v2562
    %v2564 = vrot.slane %v2563, 2
    %v2565 = vadd.f32 %v2563, %v2564
    %v2566 = vrot.slane %v2565, 1
    %v2567 = vadd.f32 %v2565, %v2566
    %v2568 = vmul.f32 %v2567, 0.0625
    %v2569 = vsel %vm92, %v2533, -inf
    %v2570 = vsel %vm92, %v2534, -inf
    %v2571 = vmax.f32 %v2569, %v2570
    %v2572 = vrot.slane %v2571, 4
    %v2573 = vmax.f32 %v2571, %v2572
    %v2574 = vrot.slane %v2573, 2
    %v2575 = vmax.f32 %v2573, %v2574
    %v2576 = vrot.slane %v2575, 1
    %v2577 = vmax.f32 %v2575, %v2576
    %2579 = vrot.lane.b32.xlu0 %v2577, 32
    %v2580 = vpop.permute.xlu0 %2579
    %v2582 = vsel %vm92, %v2568, %v2580
    %v2584 = vrot.slane %v2582, 7
    %vm2586 = vcmask 1040384
    %v2587 = vsel %vm2586, %v2558, %v2584
    %v2588 = vld [vmem:[%s17] sm:$0xff]
    %v2589 = vld [vmem:[%s17 + $0x8] sm:$0xff]
    %v2590 = vld [vmem:[%s17 + $0x10] sm:$0xff]
    %v2591 = vld [vmem:[%s17 + $0x18] sm:$0xff]
    %v2592 = vld [vmem:[%s17 + $0x20] sm:$0xff]
    %v2593 = vld [vmem:[%s17 + $0x28] sm:$0xff]
    %v2594 = vld [vmem:[%s17 + $0x30] sm:$0xff]
    %v2595 = vld [vmem:[%s17 + $0x38] sm:$0xff]
    %v2596 = vld [vmem:[%s18] sm:$0x1]
    %v2598 = vlaneseq
    %v2599 = vshrl.u32 %v2598, 7
    %v2600 = vsub.s32 0, %v2599
    %v2601 = vrot.slane %v2596, %v2600
    %v2604 = vsel %vm2359, %v2587, 0
    %2606 = vmatprep.subr.mxu0 0.0
    %2607 = vmatpush1.msra.mxu0 0.0
    %2608 = vmatprep.subr.mxu0 0.0
    %2609 = vmatpush1.msra.mxu0 0.0
    %2610 = vmatprep.subr.mxu0 0.0
    %2611 = vmatpush1.msra.mxu0 0.0
    %2612 = vmatprep.subr.mxu0 0.0
    %2613 = vmatpush1.msra.mxu0 0.0
    %2614 = vmatprep.subr.mxu0 0.0
    %2615 = vmatpush1.msra.mxu0 0.0
    %2616 = vmatprep.subr.mxu0 0.0
    %2617 = vmatpush1.msra.mxu0 0.0
    %2618 = vmatprep.subr.mxu0 0.0
    %2619 = vmatpush1.msra.mxu0 0.0
    %2620 = vmatprep.subr.mxu0 0.0
    %2621 = vmatpush1.msra.mxu0 0.0
    %2622 = vmatprep.subr.mxu0 0.0
    %2623 = vmatpush1.msra.mxu0 %v2595
    %2624 = vmatprep.subr.mxu0 0.0
    %2625 = vmatpush1.msra.mxu0 %v2594
    %2626 = vmatprep.subr.mxu0 0.0
    %2627 = vmatpush1.msra.mxu0 %v2593
    %2628 = vmatprep.subr.mxu0 0.0
    %2629 = vmatpush1.msra.mxu0 %v2592
    %2630 = vmatprep.subr.mxu0 0.0
    %2631 = vmatpush1.msra.mxu0 %v2591
    %2632 = vmatprep.subr.mxu0 0.0
    %2633 = vmatpush1.msra.mxu0 %v2590
    %2634 = vmatprep.subr.mxu0 0.0
    %2635 = vmatpush1.msra.mxu0 %v2589
    %2636 = vmatprep.subr.mxu0 0.0
    %2637 = vmatpush1.msra.mxu0 %v2588
    %2638 = vmatprep.subr.mxu0 0.0
    %2639 = vmatpush2.msra.mxu0 0.0
    %2640 = vmatprep.subr.mxu0 0.0
    %2641 = vmatpush2.msra.mxu0 0.0
    %2642 = vmatprep.subr.mxu0 0.0
    %2643 = vmatpush2.msra.mxu0 0.0
    %2644 = vmatprep.subr.mxu0 0.0
    %2645 = vmatpush2.msra.mxu0 0.0
    %2646 = vmatprep.subr.mxu0 0.0
    %2647 = vmatpush2.msra.mxu0 0.0
    %2648 = vmatprep.subr.mxu0 0.0
    %2649 = vmatpush2.msra.mxu0 0.0
    %2650 = vmatprep.subr.mxu0 0.0
    %2651 = vmatpush2.msra.mxu0 0.0
    %2652 = vmatprep.subr.mxu0 0.0
    %2653 = vmatpush2.msra.mxu0 0.0
    %2654 = vmatprep.subr.mxu0 0.0
    %2655 = vmatpush2.msra.mxu0 0.0
    %2656 = vmatprep.subr.mxu0 0.0
    %2657 = vmatpush2.msra.mxu0 0.0
    %2658 = vmatprep.subr.mxu0 0.0
    %2659 = vmatpush2.msra.mxu0 0.0
    %2660 = vmatprep.subr.mxu0 0.0
    %2661 = vmatpush2.msra.mxu0 0.0
    %2662 = vmatprep.subr.mxu0 0.0
    %2663 = vmatpush2.msra.mxu0 0.0
    %2664 = vmatprep.subr.mxu0 0.0
    %2665 = vmatpush2.msra.mxu0 0.0
    %2666 = vmatprep.subr.mxu0 0.0
    %2667 = vmatpush2.msra.mxu0 0.0
    %2668 = vmatprep.subr.mxu0 0.0
    %2669 = vmatpush2.msra.mxu0 0.0
    %2670 = vmatprep.mubr.f32.mxu0 0.0
    %2671 = vmatmul.mubr.f32.gmra.mxu0 %v2604
    %v2672 = vpop.f32.mrf.mxu0
    %v2673 = vadd.f32 %v2601, %v2672
    %v2674 = vpop.f32.mrf.mxu0
    %2675 = vdwg.mxu0
    %vm2676 = vcmask 41984
    %2677 = vst.msk [vmem:[#allocation5] sm:$0x3] %vm2676, %v2673
    // Predicated region
    $region82: #{tpu_custom_call.1} parent=1 // pred_check
      _
    $region83: #{tpu_custom_call.1} parent=1 // pred_check_branch
      %2679 = sbr.rel (0) target = $region85
    $region84: #{tpu_custom_call.1} parent=1 // pred_region
      %s2681 = ssub.s32 32, 32
      %2682 = vsyncadd [#allocation4], %s2681
      %s2684 = sshll.u32 [#allocation5], 4
      %s2685 = int_to_ptr.vmem [resolvable:$true] %s2684
      %2687 = dma.vmem_to_hbm [thread:$0]  %s2685, 32, %s19, [#allocation4]
    $region85: #{tpu_custom_call.1} parent=1 // pred_fallthru
      _
    // Predicated region
    $region86: #{tpu_custom_call.1} parent=1 // pred_check
      _
    $region87: #{tpu_custom_call.1} parent=1 // pred_check_branch
      %2689 = sbr.rel (0) target = $region89
    $region88: #{tpu_custom_call.1} parent=1 // pred_region
      %2690 = dma.done [#allocation4], 32
    $region89: #{tpu_custom_call.1} parent=1 // pred_fallthru
      _
    %2691 = vsyncpa [#allocation3], 1
    %2692 = vsyncpa [#allocation4], 1

</llo_original>
